<compile_context>
chip_gen: v6e
topology: v6e:2x2x1
jax: 0.10.0
libtpu: 0.0.40
codegen_flags: <defaults>
</compile_context>

<pallas_src>
import functools

import jax
import jax.numpy as jnp
from jax.experimental import pallas as pl
from jax.experimental.pallas import tpu as pltpu


# ---------------------------------------------------------------------------
# Pallas kernel
# ---------------------------------------------------------------------------
def rescnn_kernel(x_ref,                      # (C, TM) bf16, TM = TB * L
                  w1_ref, b1_ref,             # conv1 : (5, 32, C) bf16, (32,1) f32
                  wa_ref, ba_ref,             # fused branch-A: (7, 96, 32), (96,1)
                  wb_ref, bb_ref,             # fused branch-B: (7, 96, 96), (96,1)
                  wm_ref, bm_ref,             # 1x1 mix: (32, 96), (32,1)
                  wc_ref, bc_ref,             # final cov: (3, C, 32), (C,1)
                  o_ref,                      # (C, TM) f32
                  *, seq_len):
    C, TM = x_ref.shape
    L = seq_len

    # Per-lane "position within sample" index, computed once per grid step.
    lane = jax.lax.broadcasted_iota(jnp.int32, (1, TM), 1)
    lmod = lane % L

    def shift(x16, d):
        """x[:, i] -> x[:, i + d] with zeros outside each length-L sample.

        Samples are laid out consecutively along lanes (i = n*L + l), so a
        lane rotate + per-sample mask implements 'same' zero padding without
        any padded copy and without cross-sample leakage.
        """
        if d == 0:
            return x16
        if TM % 128 == 0:
            xs = pltpu.roll(x16, shift=(-d) % TM, axis=1)      # XLU lane rotate
        else:
            # Tiny blocks (lane dim < a full vreg): plain slice + zero pad.
            z = jnp.zeros((x16.shape[0], abs(d)), x16.dtype)
            xs = (jnp.concatenate([x16[:, d:], z], axis=1) if d > 0
                  else jnp.concatenate([z, x16[:, :d]], axis=1))
        mask = jnp.logical_and(lmod >= -d, lmod < L - d)        # (1, TM)
        return jnp.where(mask, xs, jnp.zeros_like(xs))

    def conv(x16, w_ref, b_ref):
        """'same' 1-D conv as K accumulating tap matmuls (no im2col concat).

        x16: (Cin, TM) bf16; w_ref: (K, Cout, Cin) bf16; b_ref: (Cout, 1) f32.
        Returns (Cout, TM) f32.
        """
        K = w_ref.shape[0]
        cout = w_ref.shape[1]
        pad = (K - 1) // 2
        acc = jnp.zeros((cout, TM), jnp.float32)
        for k in range(K):                                      # small static K
            acc = acc + jnp.dot(w_ref[k], shift(x16, k - pad),
                                preferred_element_type=jnp.float32)
        return acc + b_ref[...]                                 # f32 epilogue

    relu = lambda v: jnp.maximum(v, 0.0)

    x = x_ref[...]                                              # (C, TM) bf16

    # Conv1d(C, 32, 5, 'same') + BN(folded) + ReLU
    t = relu(conv(x, w1_ref, b1_ref))                           # (32, TM) f32
    t16 = t.astype(jnp.bfloat16)

    # BasicBlockall: three residual blocks (k=3/5/7) fused into two K=7 convs.
    a = relu(conv(t16, wa_ref, ba_ref))                         # (96, TM)
    bcv = conv(a.astype(jnp.bfloat16), wb_ref, bb_ref)          # (96, TM)
    # Residual add of t to each 32-channel branch block (aligned sublane slices).
    cat = jnp.concatenate([relu(bcv[0:32] + t),
                           relu(bcv[32:64] + t),
                           relu(bcv[64:96] + t)], axis=0)       # (96, TM) f32

    # Conv1d(96, 32, 1, 'same') + BN(folded) + ReLU: plain matmul.
    m = relu(jnp.dot(wm_ref[...], cat.astype(jnp.bfloat16),
                     preferred_element_type=jnp.float32) + bm_ref[...])

    # self.cov: Conv1d(32, C, 3, stride=1, padding=1)
    y = conv(m.astype(jnp.bfloat16), wc_ref, bc_ref)            # (C, TM) f32
    o_ref[...] = y.astype(o_ref.dtype)


# ---------------------------------------------------------------------------
# Wrapper / parameter setup (plain JAX glue)
# ---------------------------------------------------------------------------
def init_raw_params(key, channel_num=4):
    """Deterministic synthetic per-conv params; conv bias + eval-mode BN folded."""
    eps = 1e-5
    keys = iter(jax.random.split(key, 80))

    def conv_w(cin, cout, k):
        bound = 1.0 / (cin * k) ** 0.5
        w = jax.random.uniform(next(keys), (k, cin, cout), jnp.float32, -bound, bound)
        b = jax.random.uniform(next(keys), (cout,), jnp.float32, -bound, bound)
        return w, b

    def bn_stats(c):
        gamma = jax.random.uniform(next(keys), (c,), jnp.float32, 0.5, 1.5)
        beta = 0.1 * jax.random.normal(next(keys), (c,), jnp.float32)
        mean = 0.1 * jax.random.normal(next(keys), (c,), jnp.float32)
        var = jax.random.uniform(next(keys), (c,), jnp.float32, 0.5, 1.5)
        return gamma, beta, mean, var

    p = {}

    def conv_bn(name, cin, cout, k):
        w, b = conv_w(cin, cout, k)
        g, be, m, v = bn_stats(cout)
        s = g / jnp.sqrt(v + eps)
        p['w' + name] = w * s[None, None, :]
        p['b' + name] = (b - m) * s + be

    conv_bn('1', channel_num, 32, 5)
    conv_bn('3a', 32, 32, 3); conv_bn('3b', 32, 32, 3)
    conv_bn('5a', 32, 32, 5); conv_bn('5b', 32, 32, 5)
    conv_bn('7a', 32, 32, 7); conv_bn('7b', 32, 32, 7)
    conv_bn('m', 96, 32, 1)

    wc, bc = conv_w(32, channel_num, 3)   # final cov: no BN
    p['wc'] = wc
    p['bc'] = bc
    return p


def pack_params(p):
    """Fuse the 3 residual branches; emit (K, Cout, Cin) bf16 tap weights."""
    # Fused branch-A conv: K=7, 32 -> 96 (branch b occupies output cols b*32:).
    wA = jnp.zeros((7, 32, 96), jnp.float32)       # (K, Cin, Cout)
    bA = jnp.zeros((96,), jnp.float32)
    # Fused branch-B conv: K=7, 96 -> 96, block-diagonal over the 3 branches.
    wB = jnp.zeros((7, 96, 96), jnp.float32)
    bB = jnp.zeros((96,), jnp.float32)
    for bi, kb in enumerate((3, 5, 7)):
        off = (7 - kb) // 2          # center-align the smaller taps inside K=7
        lo, hi = bi * 32, (bi + 1) * 32
        name = str(kb)
        wA = wA.at[off:off + kb, :, lo:hi].set(p['w' + name + 'a'])
        bA = bA.at[lo:hi].set(p['b' + name + 'a'])
        wB = wB.at[off:off + kb, lo:hi, lo:hi].set(p['w' + name + 'b'])
        bB = bB.at[lo:hi].set(p['b' + name + 'b'])

    def wk(w):   # (K, Cin, Cout) -> (K, Cout, Cin) bf16 tap-matmul operand
        return jnp.transpose(w, (0, 2, 1)).astype(jnp.bfloat16)

    def bias(b):  # (Cout,) -> (Cout, 1) f32 epilogue operand
        return b.reshape(-1, 1).astype(jnp.float32)

    return [
        wk(p['w1']), bias(p['b1']),
        wk(wA), bias(bA),
        wk(wB), bias(bB),
        jnp.transpose(p['wm'][0], (1, 0)).astype(jnp.bfloat16), bias(p['bm']),
        wk(p['wc']), bias(p['bc']),
    ]


def _pick_tile_batch(N, L, target_rows=1024, min_steps=4):
    """Samples per grid step: TB*L >= target_rows when possible, while keeping
    >= min_steps grid steps (>= 2 per v7x TensorCore) and TB | N."""
    tb = max(1, min(N, -(-target_rows // L)))      # ceil(target_rows / L)
    while tb > 1 and N // tb < min_steps:
        tb -= 1
    while N % tb:
        tb -= 1
    return tb


def _vmem_limit_bytes(C, TM):
    """Per-step VMEM need: double-buffered I/O + weights + live intermediates."""
    io = 2 * (C * TM * 2 + C * TM * 4)             # bf16 in + f32 out, x2 buffers
    wbytes = (5 * 32 * C + 7 * 96 * 32 + 7 * 96 * 96 + 32 * 96 + 3 * C * 32) * 2
    bbytes = (32 + 96 + 96 + 32 + C) * 4
    weights = 2 * (wbytes + bbytes)
    inter = TM * (32 * 6          # t (f32) + t16 (bf16)
                  + 96 * 6        # a + a16
                  + 96 * 4        # bconv
                  + 96 * 6        # cat + cat16
                  + 32 * 6        # m + m16
                  + C * 4         # y
                  + 2 * 96 * 2    # live shifted bf16 tap copies (worst conv)
                  + 8 * 4)        # iota / masks
    est = io + weights + inter
    try:
        phys = pltpu.get_tpu_info().vmem_capacity_bytes
    except Exception:
        phys = 64 * 1024 * 1024                    # conservative: v7x per-core VMEM
    ceiling = (3 * phys) // 4                      # headroom for compiler scratch
    return int(min(ceiling, max(32 * 1024 * 1024, 2 * est)))


def multichannel_rescnn(x_ncl, packed):
    """x_ncl: (N, C, L) as in PyTorch Conv1d. Returns (N, C, L) float32."""
    N, C, L = x_ncl.shape
    TB = _pick_tile_batch(N, L)
    G = N // TB
    TM = TB * L

    # Lane-dense channels-on-sublanes layout: (G, C, TB*L), bf16 in HBM.
    # (One XLA copy each way; keeps the kernel free of transposes/relayouts.)
    x_t = (x_ncl.astype(jnp.bfloat16)
           .reshape(G, TB, C, L)
           .transpose(0, 2, 1, 3)
           .reshape(G, C, TM))

    def fullspec(a):
        nd = a.ndim
        return pl.BlockSpec(a.shape, lambda g, _nd=nd: (0,) * _nd)

    in_specs = [pl.BlockSpec((None, C, TM), lambda g: (g, 0, 0))]
    in_specs += [fullspec(a) for a in packed]
    out_spec = pl.BlockSpec((None, C, TM), lambda g: (g, 0, 0))

    y_t = pl.pallas_call(
        functools.partial(rescnn_kernel, seq_len=L),
        out_shape=jax.ShapeDtypeStruct((G, C, TM), jnp.float32),
        grid_spec=pltpu.PrefetchScalarGridSpec(
            num_scalar_prefetch=0,
            grid=(G,),
            in_specs=in_specs,
            out_specs=out_spec),
        compiler_params=pltpu.CompilerParams(
            dimension_semantics=("parallel",),
            vmem_limit_bytes=_vmem_limit_bytes(C, TM)),
    )(x_t, *packed)

    return (y_t.reshape(G, C, TB, L)
            .transpose(0, 2, 1, 3)
            .reshape(N, C, L))


# ---------------------------------------------------------------------------
# Pure-JAX f32 reference on the UNFUSED params (checks fusion + kernel math)
# ---------------------------------------------------------------------------
def ref_forward(x_ncl, p):
    x = jnp.transpose(x_ncl, (0, 2, 1)).astype(jnp.float32)

    def conv(a, w, b):
        K = w.shape[0]
        pad = (K - 1) // 2
        L = a.shape[1]
        ap = jnp.pad(a, ((0, 0), (pad, pad), (0, 0)))
        out = sum(jnp.einsum('nlc,cd->nld', ap[:, k:k + L], w[k]) for k in range(K))
        return out + b.reshape(1, 1, -1)

    relu = lambda a: jnp.maximum(a, 0.0)

    def block(t, wa, ba, wb, bb):
        o = relu(conv(t, wa, ba))
        return relu(conv(o, wb, bb) + t)

    t = relu(conv(x, p['w1'], p['b1']))
    cat = jnp.concatenate([
        block(t, p['w3a'], p['b3a'], p['w3b'], p['b3b']),
        block(t, p['w5a'], p['b5a'], p['w5b'], p['b5b']),
        block(t, p['w7a'], p['b7a'], p['w7b'], p['b7b'])], axis=-1)
    m = relu(conv(cat, p['wm'], p['bm']))
    y = conv(m, p['wc'], p['bc'])
    return jnp.transpose(y, (0, 2, 1))


if __name__ == "__main__":
    key = jax.random.PRNGKey(0)
    kx, kp = jax.random.split(key)

    N, C, L = 2, 4, 16     # small shapes: batch=2, channel_num=4, data_num=16
    x = jax.random.normal(kx, (N, C, L), jnp.float32)

    raw = init_raw_params(kp, channel_num=C)
    packed = pack_params(raw)

    y = multichannel_rescnn(x, packed)
    y = jax.block_until_ready(y)

    assert y.shape == (N, C, L)
    y_ref = ref_forward(x, raw)
    max_err = float(jnp.max(jnp.abs(y - y_ref)))
    # bf16 MXU operands vs f32 reference -> slightly looser tolerance.
    assert jnp.allclose(y, y_ref, rtol=5e-2, atol=5e-2), max_err

    print("KERNEL_OK")
</pallas_src>

<mosaic_0001>
module attributes {stable_mosaic.version = 11 : i64} {
  func.func @rescnn_kernel(%arg0: i32, %arg1: memref<1x4x16xbf16, #tpu.memory_space<vmem>>, %arg2: memref<5x32x4xbf16, #tpu.memory_space<vmem>>, %arg3: memref<32x1xf32, #tpu.memory_space<vmem>>, %arg4: memref<7x96x32xbf16, #tpu.memory_space<vmem>>, %arg5: memref<96x1xf32, #tpu.memory_space<vmem>>, %arg6: memref<7x96x96xbf16, #tpu.memory_space<vmem>>, %arg7: memref<96x1xf32, #tpu.memory_space<vmem>>, %arg8: memref<32x96xbf16, #tpu.memory_space<vmem>>, %arg9: memref<32x1xf32, #tpu.memory_space<vmem>>, %arg10: memref<3x4x32xbf16, #tpu.memory_space<vmem>>, %arg11: memref<4x1xf32, #tpu.memory_space<vmem>>, %arg12: memref<1x4x16xf32, #tpu.memory_space<vmem>>) attributes {dimension_semantics = [#tpu.dimension_semantics<parallel>], iteration_bounds = array<i64: 2>, scalar_prefetch = 0 : i64, scratch_operands = 0 : i64, tpu.core_type = #tpu.core_type<tc>, window_params = [{transform_indices = @transform_0, window_bounds = array<i64: 1, 4, 16>}, {pipeline_mode = #tpu.pipeline_mode<synchronous>, transform_indices = @transform_1, window_bounds = array<i64: 5, 32, 4>}, {pipeline_mode = #tpu.pipeline_mode<synchronous>, transform_indices = @transform_2, window_bounds = array<i64: 32, 1>}, {pipeline_mode = #tpu.pipeline_mode<synchronous>, transform_indices = @transform_3, window_bounds = array<i64: 7, 96, 32>}, {pipeline_mode = #tpu.pipeline_mode<synchronous>, transform_indices = @transform_4, window_bounds = array<i64: 96, 1>}, {pipeline_mode = #tpu.pipeline_mode<synchronous>, transform_indices = @transform_5, window_bounds = array<i64: 7, 96, 96>}, {pipeline_mode = #tpu.pipeline_mode<synchronous>, transform_indices = @transform_6, window_bounds = array<i64: 96, 1>}, {pipeline_mode = #tpu.pipeline_mode<synchronous>, transform_indices = @transform_7, window_bounds = array<i64: 32, 96>}, {pipeline_mode = #tpu.pipeline_mode<synchronous>, transform_indices = @transform_8, window_bounds = array<i64: 32, 1>}, {pipeline_mode = #tpu.pipeline_mode<synchronous>, transform_indices = @transform_9, window_bounds = array<i64: 3, 4, 32>}, {pipeline_mode = #tpu.pipeline_mode<synchronous>, transform_indices = @transform_10, window_bounds = array<i64: 4, 1>}, {transform_indices = @transform_11, window_bounds = array<i64: 1, 4, 16>}]} {
    %0 = tpu.iota {dimensions = array<i32: 1>} : vector<1x16xi32>
    %c16_i32 = arith.constant 16 : i32
    %c0_i32 = arith.constant 0 : i32
    %1 = arith.cmpi eq, %c16_i32, %c0_i32 : i32
    %c1_i32 = arith.constant 1 : i32
    %2 = arith.select %1, %c1_i32, %c16_i32 : i32
    %3 = vector.broadcast %2 : i32 to vector<1x16xi32>
    %4 = arith.remsi %0, %3 : vector<1x16xi32>
    %c0_i32_0 = arith.constant 0 : i32
    %5 = vector.broadcast %c0_i32_0 : i32 to vector<1x16xi32>
    %6 = arith.cmpi ne, %4, %5 : vector<1x16xi32>
    %c0_i32_1 = arith.constant 0 : i32
    %7 = vector.broadcast %c0_i32_1 : i32 to vector<1x16xi32>
    %8 = arith.cmpi slt, %4, %7 : vector<1x16xi32>
    %c0_i32_2 = arith.constant 0 : i32
    %9 = arith.cmpi slt, %2, %c0_i32_2 : i32
    %10 = vector.broadcast %9 : i1 to vector<1x16xi1>
    %11 = vector.broadcast %10 : vector<1x16xi1> to vector<1x16xi1>
    %12 = arith.xori %8, %11 : vector<1x16xi1>
    %13 = arith.andi %12, %6 : vector<1x16xi1>
    %14 = vector.broadcast %2 : i32 to vector<1x16xi32>
    %15 = arith.addi %4, %14 : vector<1x16xi32>
    %16 = arith.select %13, %15, %4 : vector<1x16xi1>, vector<1x16xi32>
    %c0 = arith.constant 0 : index
    %c0_3 = arith.constant 0 : index
    %c0_4 = arith.constant 0 : index
    %17 = vector.load %arg1[%c0, %c0_3, %c0_4] : memref<1x4x16xbf16, #tpu.memory_space<vmem>>, vector<1x4x16xbf16>
    %18 = vector.shape_cast %17 : vector<1x4x16xbf16> to vector<4x16xbf16>
    %cst = arith.constant 0.000000e+00 : f32
    %19 = vector.broadcast %cst : f32 to vector<32x16xf32>
    %c0_5 = arith.constant 0 : index
    %c0_6 = arith.constant 0 : index
    %c0_7 = arith.constant 0 : index
    %20 = vector.load %arg2[%c0_5, %c0_6, %c0_7] : memref<5x32x4xbf16, #tpu.memory_space<vmem>>, vector<1x32x4xbf16>
    %21 = vector.shape_cast %20 : vector<1x32x4xbf16> to vector<32x4xbf16>
    %cst_8 = arith.constant 0.000000e+00 : bf16
    %22 = vector.broadcast %cst_8 : bf16 to vector<4x2xbf16>
    %23 = vector.extract_strided_slice %18 {offsets = [0, 0], sizes = [4, 14], strides = [1, 1]} : vector<4x16xbf16> to vector<4x14xbf16>
    %24 = tpu.concatenate %22, %23 in 1 : vector<4x2xbf16>, vector<4x14xbf16> -> vector<4x16xbf16>
    %c2_i32 = arith.constant 2 : i32
    %25 = vector.broadcast %c2_i32 : i32 to vector<1x16xi32>
    %26 = arith.cmpi sge, %16, %25 : vector<1x16xi32>
    %c18_i32 = arith.constant 18 : i32
    %27 = vector.broadcast %c18_i32 : i32 to vector<1x16xi32>
    %28 = arith.cmpi slt, %16, %27 : vector<1x16xi32>
    %29 = arith.andi %26, %28 : vector<1x16xi1>
    %cst_9 = arith.constant 0.000000e+00 : bf16
    %30 = vector.broadcast %cst_9 : bf16 to vector<4x16xbf16>
    %31 = vector.shape_cast %29 : vector<1x16xi1> to vector<1x16xi1>
    %32 = vector.broadcast %31 : vector<1x16xi1> to vector<4x16xi1>
    %33 = arith.select %32, %24, %30 : vector<4x16xi1>, vector<4x16xbf16>
    %cst_10 = arith.constant dense<0.000000e+00> : vector<32x16xf32>
    %34 = tpu.matmul %21, %33, %cst_10 {dimension_numbers = #tpu.dot_dimension_numbers<[1], [0], [0], [1], [0, 0, 1, 1], [], []>} : vector<32x4xbf16>, vector<4x16xbf16>, vector<32x16xf32> -> vector<32x16xf32>
    %35 = arith.addf %19, %34 : vector<32x16xf32>
    %c1 = arith.constant 1 : index
    %c0_11 = arith.constant 0 : index
    %c0_12 = arith.constant 0 : index
    %36 = vector.load %arg2[%c1, %c0_11, %c0_12] : memref<5x32x4xbf16, #tpu.memory_space<vmem>>, vector<1x32x4xbf16>
    %37 = vector.shape_cast %36 : vector<1x32x4xbf16> to vector<32x4xbf16>
    %cst_13 = arith.constant 0.000000e+00 : bf16
    %38 = vector.broadcast %cst_13 : bf16 to vector<4x1xbf16>
    %39 = vector.extract_strided_slice %18 {offsets = [0, 0], sizes = [4, 15], strides = [1, 1]} : vector<4x16xbf16> to vector<4x15xbf16>
    %40 = tpu.concatenate %38, %39 in 1 : vector<4x1xbf16>, vector<4x15xbf16> -> vector<4x16xbf16>
    %c1_i32_14 = arith.constant 1 : i32
    %41 = vector.broadcast %c1_i32_14 : i32 to vector<1x16xi32>
    %42 = arith.cmpi sge, %16, %41 : vector<1x16xi32>
    %c17_i32 = arith.constant 17 : i32
    %43 = vector.broadcast %c17_i32 : i32 to vector<1x16xi32>
    %44 = arith.cmpi slt, %16, %43 : vector<1x16xi32>
    %45 = arith.andi %42, %44 : vector<1x16xi1>
    %cst_15 = arith.constant 0.000000e+00 : bf16
    %46 = vector.broadcast %cst_15 : bf16 to vector<4x16xbf16>
    %47 = vector.shape_cast %45 : vector<1x16xi1> to vector<1x16xi1>
    %48 = vector.broadcast %47 : vector<1x16xi1> to vector<4x16xi1>
    %49 = arith.select %48, %40, %46 : vector<4x16xi1>, vector<4x16xbf16>
    %cst_16 = arith.constant dense<0.000000e+00> : vector<32x16xf32>
    %50 = tpu.matmul %37, %49, %cst_16 {dimension_numbers = #tpu.dot_dimension_numbers<[1], [0], [0], [1], [0, 0, 1, 1], [], []>} : vector<32x4xbf16>, vector<4x16xbf16>, vector<32x16xf32> -> vector<32x16xf32>
    %51 = arith.addf %35, %50 : vector<32x16xf32>
    %c2 = arith.constant 2 : index
    %c0_17 = arith.constant 0 : index
    %c0_18 = arith.constant 0 : index
    %52 = vector.load %arg2[%c2, %c0_17, %c0_18] : memref<5x32x4xbf16, #tpu.memory_space<vmem>>, vector<1x32x4xbf16>
    %53 = vector.shape_cast %52 : vector<1x32x4xbf16> to vector<32x4xbf16>
    %cst_19 = arith.constant dense<0.000000e+00> : vector<32x16xf32>
    %54 = tpu.matmul %53, %18, %cst_19 {dimension_numbers = #tpu.dot_dimension_numbers<[1], [0], [0], [1], [0, 0, 1, 1], [], []>} : vector<32x4xbf16>, vector<4x16xbf16>, vector<32x16xf32> -> vector<32x16xf32>
    %55 = arith.addf %51, %54 : vector<32x16xf32>
    %c3 = arith.constant 3 : index
    %c0_20 = arith.constant 0 : index
    %c0_21 = arith.constant 0 : index
    %56 = vector.load %arg2[%c3, %c0_20, %c0_21] : memref<5x32x4xbf16, #tpu.memory_space<vmem>>, vector<1x32x4xbf16>
    %57 = vector.shape_cast %56 : vector<1x32x4xbf16> to vector<32x4xbf16>
    %cst_22 = arith.constant 0.000000e+00 : bf16
    %58 = vector.broadcast %cst_22 : bf16 to vector<4x1xbf16>
    %59 = vector.extract_strided_slice %18 {offsets = [0, 1], sizes = [4, 15], strides = [1, 1]} : vector<4x16xbf16> to vector<4x15xbf16>
    %60 = tpu.concatenate %59, %58 in 1 : vector<4x15xbf16>, vector<4x1xbf16> -> vector<4x16xbf16>
    %c-1_i32 = arith.constant -1 : i32
    %61 = vector.broadcast %c-1_i32 : i32 to vector<1x16xi32>
    %62 = arith.cmpi sge, %16, %61 : vector<1x16xi32>
    %c15_i32 = arith.constant 15 : i32
    %63 = vector.broadcast %c15_i32 : i32 to vector<1x16xi32>
    %64 = arith.cmpi slt, %16, %63 : vector<1x16xi32>
    %65 = arith.andi %62, %64 : vector<1x16xi1>
    %cst_23 = arith.constant 0.000000e+00 : bf16
    %66 = vector.broadcast %cst_23 : bf16 to vector<4x16xbf16>
    %67 = vector.shape_cast %65 : vector<1x16xi1> to vector<1x16xi1>
    %68 = vector.broadcast %67 : vector<1x16xi1> to vector<4x16xi1>
    %69 = arith.select %68, %60, %66 : vector<4x16xi1>, vector<4x16xbf16>
    %cst_24 = arith.constant dense<0.000000e+00> : vector<32x16xf32>
    %70 = tpu.matmul %57, %69, %cst_24 {dimension_numbers = #tpu.dot_dimension_numbers<[1], [0], [0], [1], [0, 0, 1, 1], [], []>} : vector<32x4xbf16>, vector<4x16xbf16>, vector<32x16xf32> -> vector<32x16xf32>
    %71 = arith.addf %55, %70 : vector<32x16xf32>
    %c4 = arith.constant 4 : index
    %c0_25 = arith.constant 0 : index
    %c0_26 = arith.constant 0 : index
    %72 = vector.load %arg2[%c4, %c0_25, %c0_26] : memref<5x32x4xbf16, #tpu.memory_space<vmem>>, vector<1x32x4xbf16>
    %73 = vector.shape_cast %72 : vector<1x32x4xbf16> to vector<32x4xbf16>
    %cst_27 = arith.constant 0.000000e+00 : bf16
    %74 = vector.broadcast %cst_27 : bf16 to vector<4x2xbf16>
    %75 = vector.extract_strided_slice %18 {offsets = [0, 2], sizes = [4, 14], strides = [1, 1]} : vector<4x16xbf16> to vector<4x14xbf16>
    %76 = tpu.concatenate %75, %74 in 1 : vector<4x14xbf16>, vector<4x2xbf16> -> vector<4x16xbf16>
    %c-2_i32 = arith.constant -2 : i32
    %77 = vector.broadcast %c-2_i32 : i32 to vector<1x16xi32>
    %78 = arith.cmpi sge, %16, %77 : vector<1x16xi32>
    %c14_i32 = arith.constant 14 : i32
    %79 = vector.broadcast %c14_i32 : i32 to vector<1x16xi32>
    %80 = arith.cmpi slt, %16, %79 : vector<1x16xi32>
    %81 = arith.andi %78, %80 : vector<1x16xi1>
    %cst_28 = arith.constant 0.000000e+00 : bf16
    %82 = vector.broadcast %cst_28 : bf16 to vector<4x16xbf16>
    %83 = vector.shape_cast %81 : vector<1x16xi1> to vector<1x16xi1>
    %84 = vector.broadcast %83 : vector<1x16xi1> to vector<4x16xi1>
    %85 = arith.select %84, %76, %82 : vector<4x16xi1>, vector<4x16xbf16>
    %cst_29 = arith.constant dense<0.000000e+00> : vector<32x16xf32>
    %86 = tpu.matmul %73, %85, %cst_29 {dimension_numbers = #tpu.dot_dimension_numbers<[1], [0], [0], [1], [0, 0, 1, 1], [], []>} : vector<32x4xbf16>, vector<4x16xbf16>, vector<32x16xf32> -> vector<32x16xf32>
    %87 = arith.addf %71, %86 : vector<32x16xf32>
    %c0_30 = arith.constant 0 : index
    %c0_31 = arith.constant 0 : index
    %88 = vector.load %arg3[%c0_30, %c0_31] : memref<32x1xf32, #tpu.memory_space<vmem>>, vector<32x1xf32>
    %89 = vector.broadcast %88 : vector<32x1xf32> to vector<32x16xf32>
    %90 = arith.addf %87, %89 : vector<32x16xf32>
    %cst_32 = arith.constant 0.000000e+00 : f32
    %91 = vector.broadcast %cst_32 : f32 to vector<32x16xf32>
    %92 = arith.maximumf %90, %91 : vector<32x16xf32>
    %93 = arith.truncf %92 : vector<32x16xf32> to vector<32x16xbf16>
    %cst_33 = arith.constant 0.000000e+00 : f32
    %94 = vector.broadcast %cst_33 : f32 to vector<96x16xf32>
    %c0_34 = arith.constant 0 : index
    %c0_35 = arith.constant 0 : index
    %c0_36 = arith.constant 0 : index
    %95 = vector.load %arg4[%c0_34, %c0_35, %c0_36] : memref<7x96x32xbf16, #tpu.memory_space<vmem>>, vector<1x96x32xbf16>
    %96 = vector.shape_cast %95 : vector<1x96x32xbf16> to vector<96x32xbf16>
    %cst_37 = arith.constant 0.000000e+00 : bf16
    %97 = vector.broadcast %cst_37 : bf16 to vector<32x3xbf16>
    %98 = vector.extract_strided_slice %93 {offsets = [0, 0], sizes = [32, 13], strides = [1, 1]} : vector<32x16xbf16> to vector<32x13xbf16>
    %99 = tpu.concatenate %97, %98 in 1 : vector<32x3xbf16>, vector<32x13xbf16> -> vector<32x16xbf16>
    %c3_i32 = arith.constant 3 : i32
    %100 = vector.broadcast %c3_i32 : i32 to vector<1x16xi32>
    %101 = arith.cmpi sge, %16, %100 : vector<1x16xi32>
    %c19_i32 = arith.constant 19 : i32
    %102 = vector.broadcast %c19_i32 : i32 to vector<1x16xi32>
    %103 = arith.cmpi slt, %16, %102 : vector<1x16xi32>
    %104 = arith.andi %101, %103 : vector<1x16xi1>
    %cst_38 = arith.constant 0.000000e+00 : bf16
    %105 = vector.broadcast %cst_38 : bf16 to vector<32x16xbf16>
    %106 = vector.shape_cast %104 : vector<1x16xi1> to vector<1x16xi1>
    %107 = vector.broadcast %106 : vector<1x16xi1> to vector<32x16xi1>
    %108 = arith.select %107, %99, %105 : vector<32x16xi1>, vector<32x16xbf16>
    %cst_39 = arith.constant dense<0.000000e+00> : vector<96x16xf32>
    %109 = tpu.matmul %96, %108, %cst_39 {dimension_numbers = #tpu.dot_dimension_numbers<[1], [0], [0], [1], [0, 0, 1, 1], [], []>} : vector<96x32xbf16>, vector<32x16xbf16>, vector<96x16xf32> -> vector<96x16xf32>
    %110 = arith.addf %94, %109 : vector<96x16xf32>
    %c1_40 = arith.constant 1 : index
    %c0_41 = arith.constant 0 : index
    %c0_42 = arith.constant 0 : index
    %111 = vector.load %arg4[%c1_40, %c0_41, %c0_42] : memref<7x96x32xbf16, #tpu.memory_space<vmem>>, vector<1x96x32xbf16>
    %112 = vector.shape_cast %111 : vector<1x96x32xbf16> to vector<96x32xbf16>
    %cst_43 = arith.constant 0.000000e+00 : bf16
    %113 = vector.broadcast %cst_43 : bf16 to vector<32x2xbf16>
    %114 = vector.extract_strided_slice %93 {offsets = [0, 0], sizes = [32, 14], strides = [1, 1]} : vector<32x16xbf16> to vector<32x14xbf16>
    %115 = tpu.concatenate %113, %114 in 1 : vector<32x2xbf16>, vector<32x14xbf16> -> vector<32x16xbf16>
    %c2_i32_44 = arith.constant 2 : i32
    %116 = vector.broadcast %c2_i32_44 : i32 to vector<1x16xi32>
    %117 = arith.cmpi sge, %16, %116 : vector<1x16xi32>
    %c18_i32_45 = arith.constant 18 : i32
    %118 = vector.broadcast %c18_i32_45 : i32 to vector<1x16xi32>
    %119 = arith.cmpi slt, %16, %118 : vector<1x16xi32>
    %120 = arith.andi %117, %119 : vector<1x16xi1>
    %cst_46 = arith.constant 0.000000e+00 : bf16
    %121 = vector.broadcast %cst_46 : bf16 to vector<32x16xbf16>
    %122 = vector.shape_cast %120 : vector<1x16xi1> to vector<1x16xi1>
    %123 = vector.broadcast %122 : vector<1x16xi1> to vector<32x16xi1>
    %124 = arith.select %123, %115, %121 : vector<32x16xi1>, vector<32x16xbf16>
    %cst_47 = arith.constant dense<0.000000e+00> : vector<96x16xf32>
    %125 = tpu.matmul %112, %124, %cst_47 {dimension_numbers = #tpu.dot_dimension_numbers<[1], [0], [0], [1], [0, 0, 1, 1], [], []>} : vector<96x32xbf16>, vector<32x16xbf16>, vector<96x16xf32> -> vector<96x16xf32>
    %126 = arith.addf %110, %125 : vector<96x16xf32>
    %c2_48 = arith.constant 2 : index
    %c0_49 = arith.constant 0 : index
    %c0_50 = arith.constant 0 : index
    %127 = vector.load %arg4[%c2_48, %c0_49, %c0_50] : memref<7x96x32xbf16, #tpu.memory_space<vmem>>, vector<1x96x32xbf16>
    %128 = vector.shape_cast %127 : vector<1x96x32xbf16> to vector<96x32xbf16>
    %cst_51 = arith.constant 0.000000e+00 : bf16
    %129 = vector.broadcast %cst_51 : bf16 to vector<32x1xbf16>
    %130 = vector.extract_strided_slice %93 {offsets = [0, 0], sizes = [32, 15], strides = [1, 1]} : vector<32x16xbf16> to vector<32x15xbf16>
    %131 = tpu.concatenate %129, %130 in 1 : vector<32x1xbf16>, vector<32x15xbf16> -> vector<32x16xbf16>
    %c1_i32_52 = arith.constant 1 : i32
    %132 = vector.broadcast %c1_i32_52 : i32 to vector<1x16xi32>
    %133 = arith.cmpi sge, %16, %132 : vector<1x16xi32>
    %c17_i32_53 = arith.constant 17 : i32
    %134 = vector.broadcast %c17_i32_53 : i32 to vector<1x16xi32>
    %135 = arith.cmpi slt, %16, %134 : vector<1x16xi32>
    %136 = arith.andi %133, %135 : vector<1x16xi1>
    %cst_54 = arith.constant 0.000000e+00 : bf16
    %137 = vector.broadcast %cst_54 : bf16 to vector<32x16xbf16>
    %138 = vector.shape_cast %136 : vector<1x16xi1> to vector<1x16xi1>
    %139 = vector.broadcast %138 : vector<1x16xi1> to vector<32x16xi1>
    %140 = arith.select %139, %131, %137 : vector<32x16xi1>, vector<32x16xbf16>
    %cst_55 = arith.constant dense<0.000000e+00> : vector<96x16xf32>
    %141 = tpu.matmul %128, %140, %cst_55 {dimension_numbers = #tpu.dot_dimension_numbers<[1], [0], [0], [1], [0, 0, 1, 1], [], []>} : vector<96x32xbf16>, vector<32x16xbf16>, vector<96x16xf32> -> vector<96x16xf32>
    %142 = arith.addf %126, %141 : vector<96x16xf32>
    %c3_56 = arith.constant 3 : index
    %c0_57 = arith.constant 0 : index
    %c0_58 = arith.constant 0 : index
    %143 = vector.load %arg4[%c3_56, %c0_57, %c0_58] : memref<7x96x32xbf16, #tpu.memory_space<vmem>>, vector<1x96x32xbf16>
    %144 = vector.shape_cast %143 : vector<1x96x32xbf16> to vector<96x32xbf16>
    %cst_59 = arith.constant dense<0.000000e+00> : vector<96x16xf32>
    %145 = tpu.matmul %144, %93, %cst_59 {dimension_numbers = #tpu.dot_dimension_numbers<[1], [0], [0], [1], [0, 0, 1, 1], [], []>} : vector<96x32xbf16>, vector<32x16xbf16>, vector<96x16xf32> -> vector<96x16xf32>
    %146 = arith.addf %142, %145 : vector<96x16xf32>
    %c4_60 = arith.constant 4 : index
    %c0_61 = arith.constant 0 : index
    %c0_62 = arith.constant 0 : index
    %147 = vector.load %arg4[%c4_60, %c0_61, %c0_62] : memref<7x96x32xbf16, #tpu.memory_space<vmem>>, vector<1x96x32xbf16>
    %148 = vector.shape_cast %147 : vector<1x96x32xbf16> to vector<96x32xbf16>
    %cst_63 = arith.constant 0.000000e+00 : bf16
    %149 = vector.broadcast %cst_63 : bf16 to vector<32x1xbf16>
    %150 = vector.extract_strided_slice %93 {offsets = [0, 1], sizes = [32, 15], strides = [1, 1]} : vector<32x16xbf16> to vector<32x15xbf16>
    %151 = tpu.concatenate %150, %149 in 1 : vector<32x15xbf16>, vector<32x1xbf16> -> vector<32x16xbf16>
    %c-1_i32_64 = arith.constant -1 : i32
    %152 = vector.broadcast %c-1_i32_64 : i32 to vector<1x16xi32>
    %153 = arith.cmpi sge, %16, %152 : vector<1x16xi32>
    %c15_i32_65 = arith.constant 15 : i32
    %154 = vector.broadcast %c15_i32_65 : i32 to vector<1x16xi32>
    %155 = arith.cmpi slt, %16, %154 : vector<1x16xi32>
    %156 = arith.andi %153, %155 : vector<1x16xi1>
    %cst_66 = arith.constant 0.000000e+00 : bf16
    %157 = vector.broadcast %cst_66 : bf16 to vector<32x16xbf16>
    %158 = vector.shape_cast %156 : vector<1x16xi1> to vector<1x16xi1>
    %159 = vector.broadcast %158 : vector<1x16xi1> to vector<32x16xi1>
    %160 = arith.select %159, %151, %157 : vector<32x16xi1>, vector<32x16xbf16>
    %cst_67 = arith.constant dense<0.000000e+00> : vector<96x16xf32>
    %161 = tpu.matmul %148, %160, %cst_67 {dimension_numbers = #tpu.dot_dimension_numbers<[1], [0], [0], [1], [0, 0, 1, 1], [], []>} : vector<96x32xbf16>, vector<32x16xbf16>, vector<96x16xf32> -> vector<96x16xf32>
    %162 = arith.addf %146, %161 : vector<96x16xf32>
    %c5 = arith.constant 5 : index
    %c0_68 = arith.constant 0 : index
    %c0_69 = arith.constant 0 : index
    %163 = vector.load %arg4[%c5, %c0_68, %c0_69] : memref<7x96x32xbf16, #tpu.memory_space<vmem>>, vector<1x96x32xbf16>
    %164 = vector.shape_cast %163 : vector<1x96x32xbf16> to vector<96x32xbf16>
    %cst_70 = arith.constant 0.000000e+00 : bf16
    %165 = vector.broadcast %cst_70 : bf16 to vector<32x2xbf16>
    %166 = vector.extract_strided_slice %93 {offsets = [0, 2], sizes = [32, 14], strides = [1, 1]} : vector<32x16xbf16> to vector<32x14xbf16>
    %167 = tpu.concatenate %166, %165 in 1 : vector<32x14xbf16>, vector<32x2xbf16> -> vector<32x16xbf16>
    %c-2_i32_71 = arith.constant -2 : i32
    %168 = vector.broadcast %c-2_i32_71 : i32 to vector<1x16xi32>
    %169 = arith.cmpi sge, %16, %168 : vector<1x16xi32>
    %c14_i32_72 = arith.constant 14 : i32
    %170 = vector.broadcast %c14_i32_72 : i32 to vector<1x16xi32>
    %171 = arith.cmpi slt, %16, %170 : vector<1x16xi32>
    %172 = arith.andi %169, %171 : vector<1x16xi1>
    %cst_73 = arith.constant 0.000000e+00 : bf16
    %173 = vector.broadcast %cst_73 : bf16 to vector<32x16xbf16>
    %174 = vector.shape_cast %172 : vector<1x16xi1> to vector<1x16xi1>
    %175 = vector.broadcast %174 : vector<1x16xi1> to vector<32x16xi1>
    %176 = arith.select %175, %167, %173 : vector<32x16xi1>, vector<32x16xbf16>
    %cst_74 = arith.constant dense<0.000000e+00> : vector<96x16xf32>
    %177 = tpu.matmul %164, %176, %cst_74 {dimension_numbers = #tpu.dot_dimension_numbers<[1], [0], [0], [1], [0, 0, 1, 1], [], []>} : vector<96x32xbf16>, vector<32x16xbf16>, vector<96x16xf32> -> vector<96x16xf32>
    %178 = arith.addf %162, %177 : vector<96x16xf32>
    %c6 = arith.constant 6 : index
    %c0_75 = arith.constant 0 : index
    %c0_76 = arith.constant 0 : index
    %179 = vector.load %arg4[%c6, %c0_75, %c0_76] : memref<7x96x32xbf16, #tpu.memory_space<vmem>>, vector<1x96x32xbf16>
    %180 = vector.shape_cast %179 : vector<1x96x32xbf16> to vector<96x32xbf16>
    %cst_77 = arith.constant 0.000000e+00 : bf16
    %181 = vector.broadcast %cst_77 : bf16 to vector<32x3xbf16>
    %182 = vector.extract_strided_slice %93 {offsets = [0, 3], sizes = [32, 13], strides = [1, 1]} : vector<32x16xbf16> to vector<32x13xbf16>
    %183 = tpu.concatenate %182, %181 in 1 : vector<32x13xbf16>, vector<32x3xbf16> -> vector<32x16xbf16>
    %c-3_i32 = arith.constant -3 : i32
    %184 = vector.broadcast %c-3_i32 : i32 to vector<1x16xi32>
    %185 = arith.cmpi sge, %16, %184 : vector<1x16xi32>
    %c13_i32 = arith.constant 13 : i32
    %186 = vector.broadcast %c13_i32 : i32 to vector<1x16xi32>
    %187 = arith.cmpi slt, %16, %186 : vector<1x16xi32>
    %188 = arith.andi %185, %187 : vector<1x16xi1>
    %cst_78 = arith.constant 0.000000e+00 : bf16
    %189 = vector.broadcast %cst_78 : bf16 to vector<32x16xbf16>
    %190 = vector.shape_cast %188 : vector<1x16xi1> to vector<1x16xi1>
    %191 = vector.broadcast %190 : vector<1x16xi1> to vector<32x16xi1>
    %192 = arith.select %191, %183, %189 : vector<32x16xi1>, vector<32x16xbf16>
    %cst_79 = arith.constant dense<0.000000e+00> : vector<96x16xf32>
    %193 = tpu.matmul %180, %192, %cst_79 {dimension_numbers = #tpu.dot_dimension_numbers<[1], [0], [0], [1], [0, 0, 1, 1], [], []>} : vector<96x32xbf16>, vector<32x16xbf16>, vector<96x16xf32> -> vector<96x16xf32>
    %194 = arith.addf %178, %193 : vector<96x16xf32>
    %c0_80 = arith.constant 0 : index
    %c0_81 = arith.constant 0 : index
    %195 = vector.load %arg5[%c0_80, %c0_81] : memref<96x1xf32, #tpu.memory_space<vmem>>, vector<96x1xf32>
    %196 = vector.broadcast %195 : vector<96x1xf32> to vector<96x16xf32>
    %197 = arith.addf %194, %196 : vector<96x16xf32>
    %cst_82 = arith.constant 0.000000e+00 : f32
    %198 = vector.broadcast %cst_82 : f32 to vector<96x16xf32>
    %199 = arith.maximumf %197, %198 : vector<96x16xf32>
    %200 = arith.truncf %199 : vector<96x16xf32> to vector<96x16xbf16>
    %cst_83 = arith.constant 0.000000e+00 : f32
    %201 = vector.broadcast %cst_83 : f32 to vector<96x16xf32>
    %c0_84 = arith.constant 0 : index
    %c0_85 = arith.constant 0 : index
    %c0_86 = arith.constant 0 : index
    %202 = vector.load %arg6[%c0_84, %c0_85, %c0_86] : memref<7x96x96xbf16, #tpu.memory_space<vmem>>, vector<1x96x96xbf16>
    %203 = vector.shape_cast %202 : vector<1x96x96xbf16> to vector<96x96xbf16>
    %cst_87 = arith.constant 0.000000e+00 : bf16
    %204 = vector.broadcast %cst_87 : bf16 to vector<96x3xbf16>
    %205 = vector.extract_strided_slice %200 {offsets = [0, 0], sizes = [96, 13], strides = [1, 1]} : vector<96x16xbf16> to vector<96x13xbf16>
    %206 = tpu.concatenate %204, %205 in 1 : vector<96x3xbf16>, vector<96x13xbf16> -> vector<96x16xbf16>
    %c3_i32_88 = arith.constant 3 : i32
    %207 = vector.broadcast %c3_i32_88 : i32 to vector<1x16xi32>
    %208 = arith.cmpi sge, %16, %207 : vector<1x16xi32>
    %c19_i32_89 = arith.constant 19 : i32
    %209 = vector.broadcast %c19_i32_89 : i32 to vector<1x16xi32>
    %210 = arith.cmpi slt, %16, %209 : vector<1x16xi32>
    %211 = arith.andi %208, %210 : vector<1x16xi1>
    %cst_90 = arith.constant 0.000000e+00 : bf16
    %212 = vector.broadcast %cst_90 : bf16 to vector<96x16xbf16>
    %213 = vector.shape_cast %211 : vector<1x16xi1> to vector<1x16xi1>
    %214 = vector.broadcast %213 : vector<1x16xi1> to vector<96x16xi1>
    %215 = arith.select %214, %206, %212 : vector<96x16xi1>, vector<96x16xbf16>
    %cst_91 = arith.constant dense<0.000000e+00> : vector<96x16xf32>
    %216 = tpu.matmul %203, %215, %cst_91 {dimension_numbers = #tpu.dot_dimension_numbers<[1], [0], [0], [1], [0, 0, 1, 1], [], []>} : vector<96x96xbf16>, vector<96x16xbf16>, vector<96x16xf32> -> vector<96x16xf32>
    %217 = arith.addf %201, %216 : vector<96x16xf32>
    %c1_92 = arith.constant 1 : index
    %c0_93 = arith.constant 0 : index
    %c0_94 = arith.constant 0 : index
    %218 = vector.load %arg6[%c1_92, %c0_93, %c0_94] : memref<7x96x96xbf16, #tpu.memory_space<vmem>>, vector<1x96x96xbf16>
    %219 = vector.shape_cast %218 : vector<1x96x96xbf16> to vector<96x96xbf16>
    %cst_95 = arith.constant 0.000000e+00 : bf16
    %220 = vector.broadcast %cst_95 : bf16 to vector<96x2xbf16>
    %221 = vector.extract_strided_slice %200 {offsets = [0, 0], sizes = [96, 14], strides = [1, 1]} : vector<96x16xbf16> to vector<96x14xbf16>
    %222 = tpu.concatenate %220, %221 in 1 : vector<96x2xbf16>, vector<96x14xbf16> -> vector<96x16xbf16>
    %c2_i32_96 = arith.constant 2 : i32
    %223 = vector.broadcast %c2_i32_96 : i32 to vector<1x16xi32>
    %224 = arith.cmpi sge, %16, %223 : vector<1x16xi32>
    %c18_i32_97 = arith.constant 18 : i32
    %225 = vector.broadcast %c18_i32_97 : i32 to vector<1x16xi32>
    %226 = arith.cmpi slt, %16, %225 : vector<1x16xi32>
    %227 = arith.andi %224, %226 : vector<1x16xi1>
    %cst_98 = arith.constant 0.000000e+00 : bf16
    %228 = vector.broadcast %cst_98 : bf16 to vector<96x16xbf16>
    %229 = vector.shape_cast %227 : vector<1x16xi1> to vector<1x16xi1>
    %230 = vector.broadcast %229 : vector<1x16xi1> to vector<96x16xi1>
    %231 = arith.select %230, %222, %228 : vector<96x16xi1>, vector<96x16xbf16>
    %cst_99 = arith.constant dense<0.000000e+00> : vector<96x16xf32>
    %232 = tpu.matmul %219, %231, %cst_99 {dimension_numbers = #tpu.dot_dimension_numbers<[1], [0], [0], [1], [0, 0, 1, 1], [], []>} : vector<96x96xbf16>, vector<96x16xbf16>, vector<96x16xf32> -> vector<96x16xf32>
    %233 = arith.addf %217, %232 : vector<96x16xf32>
    %c2_100 = arith.constant 2 : index
    %c0_101 = arith.constant 0 : index
    %c0_102 = arith.constant 0 : index
    %234 = vector.load %arg6[%c2_100, %c0_101, %c0_102] : memref<7x96x96xbf16, #tpu.memory_space<vmem>>, vector<1x96x96xbf16>
    %235 = vector.shape_cast %234 : vector<1x96x96xbf16> to vector<96x96xbf16>
    %cst_103 = arith.constant 0.000000e+00 : bf16
    %236 = vector.broadcast %cst_103 : bf16 to vector<96x1xbf16>
    %237 = vector.extract_strided_slice %200 {offsets = [0, 0], sizes = [96, 15], strides = [1, 1]} : vector<96x16xbf16> to vector<96x15xbf16>
    %238 = tpu.concatenate %236, %237 in 1 : vector<96x1xbf16>, vector<96x15xbf16> -> vector<96x16xbf16>
    %c1_i32_104 = arith.constant 1 : i32
    %239 = vector.broadcast %c1_i32_104 : i32 to vector<1x16xi32>
    %240 = arith.cmpi sge, %16, %239 : vector<1x16xi32>
    %c17_i32_105 = arith.constant 17 : i32
    %241 = vector.broadcast %c17_i32_105 : i32 to vector<1x16xi32>
    %242 = arith.cmpi slt, %16, %241 : vector<1x16xi32>
    %243 = arith.andi %240, %242 : vector<1x16xi1>
    %cst_106 = arith.constant 0.000000e+00 : bf16
    %244 = vector.broadcast %cst_106 : bf16 to vector<96x16xbf16>
    %245 = vector.shape_cast %243 : vector<1x16xi1> to vector<1x16xi1>
    %246 = vector.broadcast %245 : vector<1x16xi1> to vector<96x16xi1>
    %247 = arith.select %246, %238, %244 : vector<96x16xi1>, vector<96x16xbf16>
    %cst_107 = arith.constant dense<0.000000e+00> : vector<96x16xf32>
    %248 = tpu.matmul %235, %247, %cst_107 {dimension_numbers = #tpu.dot_dimension_numbers<[1], [0], [0], [1], [0, 0, 1, 1], [], []>} : vector<96x96xbf16>, vector<96x16xbf16>, vector<96x16xf32> -> vector<96x16xf32>
    %249 = arith.addf %233, %248 : vector<96x16xf32>
    %c3_108 = arith.constant 3 : index
    %c0_109 = arith.constant 0 : index
    %c0_110 = arith.constant 0 : index
    %250 = vector.load %arg6[%c3_108, %c0_109, %c0_110] : memref<7x96x96xbf16, #tpu.memory_space<vmem>>, vector<1x96x96xbf16>
    %251 = vector.shape_cast %250 : vector<1x96x96xbf16> to vector<96x96xbf16>
    %cst_111 = arith.constant dense<0.000000e+00> : vector<96x16xf32>
    %252 = tpu.matmul %251, %200, %cst_111 {dimension_numbers = #tpu.dot_dimension_numbers<[1], [0], [0], [1], [0, 0, 1, 1], [], []>} : vector<96x96xbf16>, vector<96x16xbf16>, vector<96x16xf32> -> vector<96x16xf32>
    %253 = arith.addf %249, %252 : vector<96x16xf32>
    %c4_112 = arith.constant 4 : index
    %c0_113 = arith.constant 0 : index
    %c0_114 = arith.constant 0 : index
    %254 = vector.load %arg6[%c4_112, %c0_113, %c0_114] : memref<7x96x96xbf16, #tpu.memory_space<vmem>>, vector<1x96x96xbf16>
    %255 = vector.shape_cast %254 : vector<1x96x96xbf16> to vector<96x96xbf16>
    %cst_115 = arith.constant 0.000000e+00 : bf16
    %256 = vector.broadcast %cst_115 : bf16 to vector<96x1xbf16>
    %257 = vector.extract_strided_slice %200 {offsets = [0, 1], sizes = [96, 15], strides = [1, 1]} : vector<96x16xbf16> to vector<96x15xbf16>
    %258 = tpu.concatenate %257, %256 in 1 : vector<96x15xbf16>, vector<96x1xbf16> -> vector<96x16xbf16>
    %c-1_i32_116 = arith.constant -1 : i32
    %259 = vector.broadcast %c-1_i32_116 : i32 to vector<1x16xi32>
    %260 = arith.cmpi sge, %16, %259 : vector<1x16xi32>
    %c15_i32_117 = arith.constant 15 : i32
    %261 = vector.broadcast %c15_i32_117 : i32 to vector<1x16xi32>
    %262 = arith.cmpi slt, %16, %261 : vector<1x16xi32>
    %263 = arith.andi %260, %262 : vector<1x16xi1>
    %cst_118 = arith.constant 0.000000e+00 : bf16
    %264 = vector.broadcast %cst_118 : bf16 to vector<96x16xbf16>
    %265 = vector.shape_cast %263 : vector<1x16xi1> to vector<1x16xi1>
    %266 = vector.broadcast %265 : vector<1x16xi1> to vector<96x16xi1>
    %267 = arith.select %266, %258, %264 : vector<96x16xi1>, vector<96x16xbf16>
    %cst_119 = arith.constant dense<0.000000e+00> : vector<96x16xf32>
    %268 = tpu.matmul %255, %267, %cst_119 {dimension_numbers = #tpu.dot_dimension_numbers<[1], [0], [0], [1], [0, 0, 1, 1], [], []>} : vector<96x96xbf16>, vector<96x16xbf16>, vector<96x16xf32> -> vector<96x16xf32>
    %269 = arith.addf %253, %268 : vector<96x16xf32>
    %c5_120 = arith.constant 5 : index
    %c0_121 = arith.constant 0 : index
    %c0_122 = arith.constant 0 : index
    %270 = vector.load %arg6[%c5_120, %c0_121, %c0_122] : memref<7x96x96xbf16, #tpu.memory_space<vmem>>, vector<1x96x96xbf16>
    %271 = vector.shape_cast %270 : vector<1x96x96xbf16> to vector<96x96xbf16>
    %cst_123 = arith.constant 0.000000e+00 : bf16
    %272 = vector.broadcast %cst_123 : bf16 to vector<96x2xbf16>
    %273 = vector.extract_strided_slice %200 {offsets = [0, 2], sizes = [96, 14], strides = [1, 1]} : vector<96x16xbf16> to vector<96x14xbf16>
    %274 = tpu.concatenate %273, %272 in 1 : vector<96x14xbf16>, vector<96x2xbf16> -> vector<96x16xbf16>
    %c-2_i32_124 = arith.constant -2 : i32
    %275 = vector.broadcast %c-2_i32_124 : i32 to vector<1x16xi32>
    %276 = arith.cmpi sge, %16, %275 : vector<1x16xi32>
    %c14_i32_125 = arith.constant 14 : i32
    %277 = vector.broadcast %c14_i32_125 : i32 to vector<1x16xi32>
    %278 = arith.cmpi slt, %16, %277 : vector<1x16xi32>
    %279 = arith.andi %276, %278 : vector<1x16xi1>
    %cst_126 = arith.constant 0.000000e+00 : bf16
    %280 = vector.broadcast %cst_126 : bf16 to vector<96x16xbf16>
    %281 = vector.shape_cast %279 : vector<1x16xi1> to vector<1x16xi1>
    %282 = vector.broadcast %281 : vector<1x16xi1> to vector<96x16xi1>
    %283 = arith.select %282, %274, %280 : vector<96x16xi1>, vector<96x16xbf16>
    %cst_127 = arith.constant dense<0.000000e+00> : vector<96x16xf32>
    %284 = tpu.matmul %271, %283, %cst_127 {dimension_numbers = #tpu.dot_dimension_numbers<[1], [0], [0], [1], [0, 0, 1, 1], [], []>} : vector<96x96xbf16>, vector<96x16xbf16>, vector<96x16xf32> -> vector<96x16xf32>
    %285 = arith.addf %269, %284 : vector<96x16xf32>
    %c6_128 = arith.constant 6 : index
    %c0_129 = arith.constant 0 : index
    %c0_130 = arith.constant 0 : index
    %286 = vector.load %arg6[%c6_128, %c0_129, %c0_130] : memref<7x96x96xbf16, #tpu.memory_space<vmem>>, vector<1x96x96xbf16>
    %287 = vector.shape_cast %286 : vector<1x96x96xbf16> to vector<96x96xbf16>
    %cst_131 = arith.constant 0.000000e+00 : bf16
    %288 = vector.broadcast %cst_131 : bf16 to vector<96x3xbf16>
    %289 = vector.extract_strided_slice %200 {offsets = [0, 3], sizes = [96, 13], strides = [1, 1]} : vector<96x16xbf16> to vector<96x13xbf16>
    %290 = tpu.concatenate %289, %288 in 1 : vector<96x13xbf16>, vector<96x3xbf16> -> vector<96x16xbf16>
    %c-3_i32_132 = arith.constant -3 : i32
    %291 = vector.broadcast %c-3_i32_132 : i32 to vector<1x16xi32>
    %292 = arith.cmpi sge, %16, %291 : vector<1x16xi32>
    %c13_i32_133 = arith.constant 13 : i32
    %293 = vector.broadcast %c13_i32_133 : i32 to vector<1x16xi32>
    %294 = arith.cmpi slt, %16, %293 : vector<1x16xi32>
    %295 = arith.andi %292, %294 : vector<1x16xi1>
    %cst_134 = arith.constant 0.000000e+00 : bf16
    %296 = vector.broadcast %cst_134 : bf16 to vector<96x16xbf16>
    %297 = vector.shape_cast %295 : vector<1x16xi1> to vector<1x16xi1>
    %298 = vector.broadcast %297 : vector<1x16xi1> to vector<96x16xi1>
    %299 = arith.select %298, %290, %296 : vector<96x16xi1>, vector<96x16xbf16>
    %cst_135 = arith.constant dense<0.000000e+00> : vector<96x16xf32>
    %300 = tpu.matmul %287, %299, %cst_135 {dimension_numbers = #tpu.dot_dimension_numbers<[1], [0], [0], [1], [0, 0, 1, 1], [], []>} : vector<96x96xbf16>, vector<96x16xbf16>, vector<96x16xf32> -> vector<96x16xf32>
    %301 = arith.addf %285, %300 : vector<96x16xf32>
    %c0_136 = arith.constant 0 : index
    %c0_137 = arith.constant 0 : index
    %302 = vector.load %arg7[%c0_136, %c0_137] : memref<96x1xf32, #tpu.memory_space<vmem>>, vector<96x1xf32>
    %303 = vector.broadcast %302 : vector<96x1xf32> to vector<96x16xf32>
    %304 = arith.addf %301, %303 : vector<96x16xf32>
    %305 = vector.extract_strided_slice %304 {offsets = [0, 0], sizes = [32, 16], strides = [1, 1]} : vector<96x16xf32> to vector<32x16xf32>
    %306 = arith.addf %305, %92 : vector<32x16xf32>
    %cst_138 = arith.constant 0.000000e+00 : f32
    %307 = vector.broadcast %cst_138 : f32 to vector<32x16xf32>
    %308 = arith.maximumf %306, %307 : vector<32x16xf32>
    %309 = vector.extract_strided_slice %304 {offsets = [32, 0], sizes = [32, 16], strides = [1, 1]} : vector<96x16xf32> to vector<32x16xf32>
    %310 = arith.addf %309, %92 : vector<32x16xf32>
    %cst_139 = arith.constant 0.000000e+00 : f32
    %311 = vector.broadcast %cst_139 : f32 to vector<32x16xf32>
    %312 = arith.maximumf %310, %311 : vector<32x16xf32>
    %313 = vector.extract_strided_slice %304 {offsets = [64, 0], sizes = [32, 16], strides = [1, 1]} : vector<96x16xf32> to vector<32x16xf32>
    %314 = arith.addf %313, %92 : vector<32x16xf32>
    %cst_140 = arith.constant 0.000000e+00 : f32
    %315 = vector.broadcast %cst_140 : f32 to vector<32x16xf32>
    %316 = arith.maximumf %314, %315 : vector<32x16xf32>
    %317 = tpu.concatenate %308, %312, %316 in 0 : vector<32x16xf32>, vector<32x16xf32>, vector<32x16xf32> -> vector<96x16xf32>
    %c0_141 = arith.constant 0 : index
    %c0_142 = arith.constant 0 : index
    %318 = vector.load %arg8[%c0_141, %c0_142] : memref<32x96xbf16, #tpu.memory_space<vmem>>, vector<32x96xbf16>
    %319 = arith.truncf %317 : vector<96x16xf32> to vector<96x16xbf16>
    %cst_143 = arith.constant dense<0.000000e+00> : vector<32x16xf32>
    %320 = tpu.matmul %318, %319, %cst_143 {dimension_numbers = #tpu.dot_dimension_numbers<[1], [0], [0], [1], [0, 0, 1, 1], [], []>} : vector<32x96xbf16>, vector<96x16xbf16>, vector<32x16xf32> -> vector<32x16xf32>
    %c0_144 = arith.constant 0 : index
    %c0_145 = arith.constant 0 : index
    %321 = vector.load %arg9[%c0_144, %c0_145] : memref<32x1xf32, #tpu.memory_space<vmem>>, vector<32x1xf32>
    %322 = vector.broadcast %321 : vector<32x1xf32> to vector<32x16xf32>
    %323 = arith.addf %320, %322 : vector<32x16xf32>
    %cst_146 = arith.constant 0.000000e+00 : f32
    %324 = vector.broadcast %cst_146 : f32 to vector<32x16xf32>
    %325 = arith.maximumf %323, %324 : vector<32x16xf32>
    %326 = arith.truncf %325 : vector<32x16xf32> to vector<32x16xbf16>
    %cst_147 = arith.constant 0.000000e+00 : f32
    %327 = vector.broadcast %cst_147 : f32 to vector<4x16xf32>
    %c0_148 = arith.constant 0 : index
    %c0_149 = arith.constant 0 : index
    %c0_150 = arith.constant 0 : index
    %328 = vector.load %arg10[%c0_148, %c0_149, %c0_150] : memref<3x4x32xbf16, #tpu.memory_space<vmem>>, vector<1x4x32xbf16>
    %329 = vector.shape_cast %328 : vector<1x4x32xbf16> to vector<4x32xbf16>
    %cst_151 = arith.constant 0.000000e+00 : bf16
    %330 = vector.broadcast %cst_151 : bf16 to vector<32x1xbf16>
    %331 = vector.extract_strided_slice %326 {offsets = [0, 0], sizes = [32, 15], strides = [1, 1]} : vector<32x16xbf16> to vector<32x15xbf16>
    %332 = tpu.concatenate %330, %331 in 1 : vector<32x1xbf16>, vector<32x15xbf16> -> vector<32x16xbf16>
    %c1_i32_152 = arith.constant 1 : i32
    %333 = vector.broadcast %c1_i32_152 : i32 to vector<1x16xi32>
    %334 = arith.cmpi sge, %16, %333 : vector<1x16xi32>
    %c17_i32_153 = arith.constant 17 : i32
    %335 = vector.broadcast %c17_i32_153 : i32 to vector<1x16xi32>
    %336 = arith.cmpi slt, %16, %335 : vector<1x16xi32>
    %337 = arith.andi %334, %336 : vector<1x16xi1>
    %cst_154 = arith.constant 0.000000e+00 : bf16
    %338 = vector.broadcast %cst_154 : bf16 to vector<32x16xbf16>
    %339 = vector.shape_cast %337 : vector<1x16xi1> to vector<1x16xi1>
    %340 = vector.broadcast %339 : vector<1x16xi1> to vector<32x16xi1>
    %341 = arith.select %340, %332, %338 : vector<32x16xi1>, vector<32x16xbf16>
    %cst_155 = arith.constant dense<0.000000e+00> : vector<4x16xf32>
    %342 = tpu.matmul %329, %341, %cst_155 {dimension_numbers = #tpu.dot_dimension_numbers<[1], [0], [0], [1], [0, 0, 1, 1], [], []>} : vector<4x32xbf16>, vector<32x16xbf16>, vector<4x16xf32> -> vector<4x16xf32>
    %343 = arith.addf %327, %342 : vector<4x16xf32>
    %c1_156 = arith.constant 1 : index
    %c0_157 = arith.constant 0 : index
    %c0_158 = arith.constant 0 : index
    %344 = vector.load %arg10[%c1_156, %c0_157, %c0_158] : memref<3x4x32xbf16, #tpu.memory_space<vmem>>, vector<1x4x32xbf16>
    %345 = vector.shape_cast %344 : vector<1x4x32xbf16> to vector<4x32xbf16>
    %cst_159 = arith.constant dense<0.000000e+00> : vector<4x16xf32>
    %346 = tpu.matmul %345, %326, %cst_159 {dimension_numbers = #tpu.dot_dimension_numbers<[1], [0], [0], [1], [0, 0, 1, 1], [], []>} : vector<4x32xbf16>, vector<32x16xbf16>, vector<4x16xf32> -> vector<4x16xf32>
    %347 = arith.addf %343, %346 : vector<4x16xf32>
    %c2_160 = arith.constant 2 : index
    %c0_161 = arith.constant 0 : index
    %c0_162 = arith.constant 0 : index
    %348 = vector.load %arg10[%c2_160, %c0_161, %c0_162] : memref<3x4x32xbf16, #tpu.memory_space<vmem>>, vector<1x4x32xbf16>
    %349 = vector.shape_cast %348 : vector<1x4x32xbf16> to vector<4x32xbf16>
    %cst_163 = arith.constant 0.000000e+00 : bf16
    %350 = vector.broadcast %cst_163 : bf16 to vector<32x1xbf16>
    %351 = vector.extract_strided_slice %326 {offsets = [0, 1], sizes = [32, 15], strides = [1, 1]} : vector<32x16xbf16> to vector<32x15xbf16>
    %352 = tpu.concatenate %351, %350 in 1 : vector<32x15xbf16>, vector<32x1xbf16> -> vector<32x16xbf16>
    %c-1_i32_164 = arith.constant -1 : i32
    %353 = vector.broadcast %c-1_i32_164 : i32 to vector<1x16xi32>
    %354 = arith.cmpi sge, %16, %353 : vector<1x16xi32>
    %c15_i32_165 = arith.constant 15 : i32
    %355 = vector.broadcast %c15_i32_165 : i32 to vector<1x16xi32>
    %356 = arith.cmpi slt, %16, %355 : vector<1x16xi32>
    %357 = arith.andi %354, %356 : vector<1x16xi1>
    %cst_166 = arith.constant 0.000000e+00 : bf16
    %358 = vector.broadcast %cst_166 : bf16 to vector<32x16xbf16>
    %359 = vector.shape_cast %357 : vector<1x16xi1> to vector<1x16xi1>
    %360 = vector.broadcast %359 : vector<1x16xi1> to vector<32x16xi1>
    %361 = arith.select %360, %352, %358 : vector<32x16xi1>, vector<32x16xbf16>
    %cst_167 = arith.constant dense<0.000000e+00> : vector<4x16xf32>
    %362 = tpu.matmul %349, %361, %cst_167 {dimension_numbers = #tpu.dot_dimension_numbers<[1], [0], [0], [1], [0, 0, 1, 1], [], []>} : vector<4x32xbf16>, vector<32x16xbf16>, vector<4x16xf32> -> vector<4x16xf32>
    %363 = arith.addf %347, %362 : vector<4x16xf32>
    %c0_168 = arith.constant 0 : index
    %c0_169 = arith.constant 0 : index
    %364 = vector.load %arg11[%c0_168, %c0_169] : memref<4x1xf32, #tpu.memory_space<vmem>>, vector<4x1xf32>
    %365 = vector.broadcast %364 : vector<4x1xf32> to vector<4x16xf32>
    %366 = arith.addf %363, %365 : vector<4x16xf32>
    %c0_170 = arith.constant 0 : index
    %c0_171 = arith.constant 0 : index
    %c0_172 = arith.constant 0 : index
    %367 = vector.load %arg12[%c0_170, %c0_171, %c0_172] : memref<1x4x16xf32, #tpu.memory_space<vmem>>, vector<1x4x16xf32>
    %368 = vector.shape_cast %367 : vector<1x4x16xf32> to vector<4x16xf32>
    %369 = vector.shape_cast %366 : vector<4x16xf32> to vector<1x4x16xf32>
    tpu.vector_store %arg12[%c0_170, %c0_171, %c0_172], %369 {strides = array<i32>} : memref<1x4x16xf32, #tpu.memory_space<vmem>>, vector<1x4x16xf32>,
    return
  }
  func.func @transform_0(%arg0: i32) -> (i32, i32, i32) {
    %c0_i32 = arith.constant 0 : i32
    %c0_i32_0 = arith.constant 0 : i32
    %c0_i32_1 = arith.constant 0 : i32
    return %arg0, %c0_i32, %c0_i32_0 : i32, i32, i32
  }
  func.func @transform_1(%arg0: i32) -> (i32, i32, i32) {
    %c0_i32 = arith.constant 0 : i32
    %c0_i32_0 = arith.constant 0 : i32
    %c0_i32_1 = arith.constant 0 : i32
    %c0_i32_2 = arith.constant 0 : i32
    return %c0_i32, %c0_i32_0, %c0_i32_1 : i32, i32, i32
  }
  func.func @transform_2(%arg0: i32) -> (i32, i32) {
    %c0_i32 = arith.constant 0 : i32
    %c0_i32_0 = arith.constant 0 : i32
    %c0_i32_1 = arith.constant 0 : i32
    return %c0_i32, %c0_i32_0 : i32, i32
  }
  func.func @transform_3(%arg0: i32) -> (i32, i32, i32) {
    %c0_i32 = arith.constant 0 : i32
    %c0_i32_0 = arith.constant 0 : i32
    %c0_i32_1 = arith.constant 0 : i32
    %c0_i32_2 = arith.constant 0 : i32
    return %c0_i32, %c0_i32_0, %c0_i32_1 : i32, i32, i32
  }
  func.func @transform_4(%arg0: i32) -> (i32, i32) {
    %c0_i32 = arith.constant 0 : i32
    %c0_i32_0 = arith.constant 0 : i32
    %c0_i32_1 = arith.constant 0 : i32
    return %c0_i32, %c0_i32_0 : i32, i32
  }
  func.func @transform_5(%arg0: i32) -> (i32, i32, i32) {
    %c0_i32 = arith.constant 0 : i32
    %c0_i32_0 = arith.constant 0 : i32
    %c0_i32_1 = arith.constant 0 : i32
    %c0_i32_2 = arith.constant 0 : i32
    return %c0_i32, %c0_i32_0, %c0_i32_1 : i32, i32, i32
  }
  func.func @transform_6(%arg0: i32) -> (i32, i32) {
    %c0_i32 = arith.constant 0 : i32
    %c0_i32_0 = arith.constant 0 : i32
    %c0_i32_1 = arith.constant 0 : i32
    return %c0_i32, %c0_i32_0 : i32, i32
  }
  func.func @transform_7(%arg0: i32) -> (i32, i32) {
    %c0_i32 = arith.constant 0 : i32
    %c0_i32_0 = arith.constant 0 : i32
    %c0_i32_1 = arith.constant 0 : i32
    return %c0_i32, %c0_i32_0 : i32, i32
  }
  func.func @transform_8(%arg0: i32) -> (i32, i32) {
    %c0_i32 = arith.constant 0 : i32
    %c0_i32_0 = arith.constant 0 : i32
    %c0_i32_1 = arith.constant 0 : i32
    return %c0_i32, %c0_i32_0 : i32, i32
  }
  func.func @transform_9(%arg0: i32) -> (i32, i32, i32) {
    %c0_i32 = arith.constant 0 : i32
    %c0_i32_0 = arith.constant 0 : i32
    %c0_i32_1 = arith.constant 0 : i32
    %c0_i32_2 = arith.constant 0 : i32
    return %c0_i32, %c0_i32_0, %c0_i32_1 : i32, i32, i32
  }
  func.func @transform_10(%arg0: i32) -> (i32, i32) {
    %c0_i32 = arith.constant 0 : i32
    %c0_i32_0 = arith.constant 0 : i32
    %c0_i32_1 = arith.constant 0 : i32
    return %c0_i32, %c0_i32_0 : i32, i32
  }
  func.func @transform_11(%arg0: i32) -> (i32, i32, i32) {
    %c0_i32 = arith.constant 0 : i32
    %c0_i32_0 = arith.constant 0 : i32
    %c0_i32_1 = arith.constant 0 : i32
    return %arg0, %c0_i32, %c0_i32_0 : i32, i32, i32
  }
}

</mosaic_0001>

<llo_original>
// kernel: tpu_custom_call.1
$region0: #{tpu_custom_call.1}
  #allocation0 [shape = 'u32[]', space=smem, size = 0x4, offset = 0x4, fixed_abs, tag = 'smem constant byte address 0x4 - core index']
  #allocation1 [shape = 'u32[144,128]{1,0:T(1,128)}', space=vmem, size = 0x12000, scoped, tag = 'internal scratch']
  %s0 = inlined_call_operand.vmem [shape: bf16[2,4,16], index: 0, kind: input, shape index: {}]
  %s1 = inlined_call_operand.vmem [shape: bf16[5,32,4], index: 1, kind: input, shape index: {}]
  %s2 = inlined_call_operand.vmem [shape: f32[32,1], index: 2, kind: input, shape index: {}]
  %s3 = inlined_call_operand.vmem [shape: bf16[7,96,32], index: 3, kind: input, shape index: {}]
  %s4 = inlined_call_operand.vmem [shape: f32[96,1], index: 4, kind: input, shape index: {}]
  %s5 = inlined_call_operand.vmem [shape: bf16[7,96,96], index: 5, kind: input, shape index: {}]
  %s6 = inlined_call_operand.vmem [shape: f32[96,1], index: 6, kind: input, shape index: {}]
  %s7 = inlined_call_operand.vmem [shape: bf16[32,96], index: 7, kind: input, shape index: {}]
  %s8 = inlined_call_operand.vmem [shape: f32[32,1], index: 8, kind: input, shape index: {}]
  %s9 = inlined_call_operand.vmem [shape: bf16[3,4,32], index: 9, kind: input, shape index: {}]
  %s10 = inlined_call_operand.vmem [shape: f32[4,1], index: 10, kind: input, shape index: {}]
  %s11 = inlined_call_operand.hbm [shape: f32[2,4,16], index: 11, kind: output, shape index: {}]
  %s12 = sld [smem:[#allocation0]]
  $region77: #{tpu_custom_call.1} parent=0
    _
  %s14 = ssub.s32 1, %s12
  %s15 = scalar_select 0, %s14, %s12
  $region1: #{tpu_custom_call.1} parent=0
    #allocation2 [shape = 'u8[4096]{0}', space=vmem, size = 0x1000, scoped, tag = 'output window, operand 0']
    #allocation3 [shape = 's32[2]{0}', space=sflag, size = 0x8, scoped, tag = 'scoped memory for tpu_custom_call.1']
    %16 = vsyncpa [#allocation3], 0
    %s17 = scalar_lea.sflag [#allocation3], 1
    %18 = vsyncpa %s17, 0
    loop: start=0, step=1, limit=4
    $region2: #{tpu_custom_call.1} parent=1 // loop_pre_header
      _
    $region3: #{tpu_custom_call.1} parent=1 // loop_header
      %s20 = sphi 0, %s24
      %p21 = scmp.ge.s32.totalorder %s20, 4
      %s30 = sphi 0, %s32
      %s33 = sphi 0, %s30
      %s34 = sphi 0, %s33
      %s50 = sphi 0, %s34
      %s54 = sphi 0, %s54
      %s56 = sphi 0, %s54
      %s57 = sphi 0, %s56
      %s71 = sphi 0, %s57
      %s75 = sphi 0, %s75
      %s77 = sphi 0, %s75
      %s78 = sphi 0, %s77
      %s92 = sphi 0, %s78
      %s96 = sphi 0, %s96
      %s98 = sphi 0, %s96
      %s99 = sphi 0, %s98
      %s113 = sphi 0, %s99
      %s117 = sphi 0, %s117
      %s119 = sphi 0, %s117
      %s120 = sphi 0, %s119
      %s134 = sphi 0, %s120
      %s138 = sphi 0, %s138
      %s140 = sphi 0, %s138
      %s141 = sphi 0, %s140
      %s155 = sphi 0, %s141
      %s159 = sphi 0, %s159
      %s161 = sphi 0, %s159
      %s162 = sphi 0, %s161
      %s176 = sphi 0, %s162
      %s180 = sphi 0, %s180
      %s182 = sphi 0, %s180
      %s183 = sphi 0, %s182
      %s197 = sphi 0, %s183
      %s201 = sphi 0, %s201
      %s203 = sphi 0, %s201
      %s204 = sphi 0, %s203
      %s218 = sphi 0, %s204
      %s222 = sphi 0, %s222
      %s224 = sphi 0, %s222
      %s225 = sphi 0, %s224
      %s239 = sphi 0, %s225
      %s243 = sphi 0, %s243
      %s245 = sphi 0, %s243
      %s246 = sphi 0, %s245
      %s260 = sphi 0, %s246
      %s266 = sphi 0, %s268
      %s269 = sphi 0, %s266
      %s270 = sphi 0, %s269
      %s286 = sphi 0, %s270
    $region4: #{tpu_custom_call.1} parent=1 // loop_header_branch
      %23 = sbr.rel (%p21) target = $region8
    $region5: #{tpu_custom_call.1} parent=1 // loop_body
      %s25 = ssub.s32 %s20, 1
      %s26 = ssub.s32 %s20, 2
      %s27 = sadd.s32 %s20, 1
      %s28 = ssub.s32 %s20, %s27
      %p29 = scmp.eq.s32.totalorder %s28, 0
      %s31 = sadd.s32 %s30, 1
      %s32 = scalar_select %p29, %s30, %s31
      %p35 = pneg %p29
      %p36 = scmp.eq.s32.totalorder %s20, 1
      %p37 = por %p35, %p36
      %p38 = scmp.ne.s32.totalorder %s30, %s33
      %p39 = scmp.eq.s32.totalorder %s20, 0
      %p40 = por %p38, %p39
      %p41 = scmp.ne.s32.totalorder %s30, %s33
      %p42 = scmp.eq.s32.totalorder %s25, 1
      %p43 = por %p41, %p42
      %p44 = scmp.ne.s32.totalorder %s33, %s34
      %p45 = scmp.eq.s32.totalorder %s25, 0
      %p46 = por %p44, %p45
      %p47 = scmp.ne.s32.totalorder %s33, %s34
      %p48 = scmp.eq.s32.totalorder %s26, 1
      %p49 = por %p47, %p48
      %p51 = scmp.ne.s32.totalorder %s34, %s50
      %p52 = scmp.eq.s32.totalorder %s26, 0
      %p53 = por %p51, %p52
      %s55 = sadd.s32 %s54, 1
      %p58 = scmp.eq.s32.totalorder %s20, 1
      %p59 = scmp.ne.s32.totalorder %s54, %s56
      %p60 = scmp.eq.s32.totalorder %s20, 0
      %p61 = por %p59, %p60
      %p62 = scmp.ne.s32.totalorder %s54, %s56
      %p63 = scmp.eq.s32.totalorder %s25, 1
      %p64 = por %p62, %p63
      %p65 = scmp.ne.s32.totalorder %s56, %s57
      %p66 = scmp.eq.s32.totalorder %s25, 0
      %p67 = por %p65, %p66
      %p68 = scmp.ne.s32.totalorder %s56, %s57
      %p69 = scmp.eq.s32.totalorder %s26, 1
      %p70 = por %p68, %p69
      %p72 = scmp.ne.s32.totalorder %s57, %s71
      %p73 = scmp.eq.s32.totalorder %s26, 0
      %p74 = por %p72, %p73
      %s76 = sadd.s32 %s75, 1
      %p79 = scmp.eq.s32.totalorder %s20, 1
      %p80 = scmp.ne.s32.totalorder %s75, %s77
      %p81 = scmp.eq.s32.totalorder %s20, 0
      %p82 = por %p80, %p81
      %p83 = scmp.ne.s32.totalorder %s75, %s77
      %p84 = scmp.eq.s32.totalorder %s25, 1
      %p85 = por %p83, %p84
      %p86 = scmp.ne.s32.totalorder %s77, %s78
      %p87 = scmp.eq.s32.totalorder %s25, 0
      %p88 = por %p86, %p87
      %p89 = scmp.ne.s32.totalorder %s77, %s78
      %p90 = scmp.eq.s32.totalorder %s26, 1
      %p91 = por %p89, %p90
      %p93 = scmp.ne.s32.totalorder %s78, %s92
      %p94 = scmp.eq.s32.totalorder %s26, 0
      %p95 = por %p93, %p94
      %s97 = sadd.s32 %s96, 1
      %p100 = scmp.eq.s32.totalorder %s20, 1
      %p101 = scmp.ne.s32.totalorder %s96, %s98
      %p102 = scmp.eq.s32.totalorder %s20, 0
      %p103 = por %p101, %p102
      %p104 = scmp.ne.s32.totalorder %s96, %s98
      %p105 = scmp.eq.s32.totalorder %s25, 1
      %p106 = por %p104, %p105
      %p107 = scmp.ne.s32.totalorder %s98, %s99
      %p108 = scmp.eq.s32.totalorder %s25, 0
      %p109 = por %p107, %p108
      %p110 = scmp.ne.s32.totalorder %s98, %s99
      %p111 = scmp.eq.s32.totalorder %s26, 1
      %p112 = por %p110, %p111
      %p114 = scmp.ne.s32.totalorder %s99, %s113
      %p115 = scmp.eq.s32.totalorder %s26, 0
      %p116 = por %p114, %p115
      %s118 = sadd.s32 %s117, 1
      %p121 = scmp.eq.s32.totalorder %s20, 1
      %p122 = scmp.ne.s32.totalorder %s117, %s119
      %p123 = scmp.eq.s32.totalorder %s20, 0
      %p124 = por %p122, %p123
      %p125 = scmp.ne.s32.totalorder %s117, %s119
      %p126 = scmp.eq.s32.totalorder %s25, 1
      %p127 = por %p125, %p126
      %p128 = scmp.ne.s32.totalorder %s119, %s120
      %p129 = scmp.eq.s32.totalorder %s25, 0
      %p130 = por %p128, %p129
      %p131 = scmp.ne.s32.totalorder %s119, %s120
      %p132 = scmp.eq.s32.totalorder %s26, 1
      %p133 = por %p131, %p132
      %p135 = scmp.ne.s32.totalorder %s120, %s134
      %p136 = scmp.eq.s32.totalorder %s26, 0
      %p137 = por %p135, %p136
      %s139 = sadd.s32 %s138, 1
      %p142 = scmp.eq.s32.totalorder %s20, 1
      %p143 = scmp.ne.s32.totalorder %s138, %s140
      %p144 = scmp.eq.s32.totalorder %s20, 0
      %p145 = por %p143, %p144
      %p146 = scmp.ne.s32.totalorder %s138, %s140
      %p147 = scmp.eq.s32.totalorder %s25, 1
      %p148 = por %p146, %p147
      %p149 = scmp.ne.s32.totalorder %s140, %s141
      %p150 = scmp.eq.s32.totalorder %s25, 0
      %p151 = por %p149, %p150
      %p152 = scmp.ne.s32.totalorder %s140, %s141
      %p153 = scmp.eq.s32.totalorder %s26, 1
      %p154 = por %p152, %p153
      %p156 = scmp.ne.s32.totalorder %s141, %s155
      %p157 = scmp.eq.s32.totalorder %s26, 0
      %p158 = por %p156, %p157
      %s160 = sadd.s32 %s159, 1
      %p163 = scmp.eq.s32.totalorder %s20, 1
      %p164 = scmp.ne.s32.totalorder %s159, %s161
      %p165 = scmp.eq.s32.totalorder %s20, 0
      %p166 = por %p164, %p165
      %p167 = scmp.ne.s32.totalorder %s159, %s161
      %p168 = scmp.eq.s32.totalorder %s25, 1
      %p169 = por %p167, %p168
      %p170 = scmp.ne.s32.totalorder %s161, %s162
      %p171 = scmp.eq.s32.totalorder %s25, 0
      %p172 = por %p170, %p171
      %p173 = scmp.ne.s32.totalorder %s161, %s162
      %p174 = scmp.eq.s32.totalorder %s26, 1
      %p175 = por %p173, %p174
      %p177 = scmp.ne.s32.totalorder %s162, %s176
      %p178 = scmp.eq.s32.totalorder %s26, 0
      %p179 = por %p177, %p178
      %s181 = sadd.s32 %s180, 1
      %p184 = scmp.eq.s32.totalorder %s20, 1
      %p185 = scmp.ne.s32.totalorder %s180, %s182
      %p186 = scmp.eq.s32.totalorder %s20, 0
      %p187 = por %p185, %p186
      %p188 = scmp.ne.s32.totalorder %s180, %s182
      %p189 = scmp.eq.s32.totalorder %s25, 1
      %p190 = por %p188, %p189
      %p191 = scmp.ne.s32.totalorder %s182, %s183
      %p192 = scmp.eq.s32.totalorder %s25, 0
      %p193 = por %p191, %p192
      %p194 = scmp.ne.s32.totalorder %s182, %s183
      %p195 = scmp.eq.s32.totalorder %s26, 1
      %p196 = por %p194, %p195
      %p198 = scmp.ne.s32.totalorder %s183, %s197
      %p199 = scmp.eq.s32.totalorder %s26, 0
      %p200 = por %p198, %p199
      %s202 = sadd.s32 %s201, 1
      %p205 = scmp.eq.s32.totalorder %s20, 1
      %p206 = scmp.ne.s32.totalorder %s201, %s203
      %p207 = scmp.eq.s32.totalorder %s20, 0
      %p208 = por %p206, %p207
      %p209 = scmp.ne.s32.totalorder %s201, %s203
      %p210 = scmp.eq.s32.totalorder %s25, 1
      %p211 = por %p209, %p210
      %p212 = scmp.ne.s32.totalorder %s203, %s204
      %p213 = scmp.eq.s32.totalorder %s25, 0
      %p214 = por %p212, %p213
      %p215 = scmp.ne.s32.totalorder %s203, %s204
      %p216 = scmp.eq.s32.totalorder %s26, 1
      %p217 = por %p215, %p216
      %p219 = scmp.ne.s32.totalorder %s204, %s218
      %p220 = scmp.eq.s32.totalorder %s26, 0
      %p221 = por %p219, %p220
      %s223 = sadd.s32 %s222, 1
      %p226 = scmp.eq.s32.totalorder %s20, 1
      %p227 = scmp.ne.s32.totalorder %s222, %s224
      %p228 = scmp.eq.s32.totalorder %s20, 0
      %p229 = por %p227, %p228
      %p230 = scmp.ne.s32.totalorder %s222, %s224
      %p231 = scmp.eq.s32.totalorder %s25, 1
      %p232 = por %p230, %p231
      %p233 = scmp.ne.s32.totalorder %s224, %s225
      %p234 = scmp.eq.s32.totalorder %s25, 0
      %p235 = por %p233, %p234
      %p236 = scmp.ne.s32.totalorder %s224, %s225
      %p237 = scmp.eq.s32.totalorder %s26, 1
      %p238 = por %p236, %p237
      %p240 = scmp.ne.s32.totalorder %s225, %s239
      %p241 = scmp.eq.s32.totalorder %s26, 0
      %p242 = por %p240, %p241
      %s244 = sadd.s32 %s243, 1
      %p247 = scmp.eq.s32.totalorder %s20, 1
      %p248 = scmp.ne.s32.totalorder %s243, %s245
      %p249 = scmp.eq.s32.totalorder %s20, 0
      %p250 = por %p248, %p249
      %p251 = scmp.ne.s32.totalorder %s243, %s245
      %p252 = scmp.eq.s32.totalorder %s25, 1
      %p253 = por %p251, %p252
      %p254 = scmp.ne.s32.totalorder %s245, %s246
      %p255 = scmp.eq.s32.totalorder %s25, 0
      %p256 = por %p254, %p255
      %p257 = scmp.ne.s32.totalorder %s245, %s246
      %p258 = scmp.eq.s32.totalorder %s26, 1
      %p259 = por %p257, %p258
      %p261 = scmp.ne.s32.totalorder %s246, %s260
      %p262 = scmp.eq.s32.totalorder %s26, 0
      %p263 = por %p261, %p262
      %s264 = ssub.s32 %s20, %s27
      %p265 = scmp.eq.s32.totalorder %s264, 0
      %s267 = sadd.s32 %s266, 1
      %s268 = scalar_select %p265, %s266, %s267
      %p271 = pneg %p265
      %p272 = scmp.eq.s32.totalorder %s20, 1
      %p273 = por %p271, %p272
      %p274 = scmp.ne.s32.totalorder %s266, %s269
      %p275 = scmp.eq.s32.totalorder %s20, 0
      %p276 = por %p274, %p275
      %p277 = scmp.ne.s32.totalorder %s266, %s269
      %p278 = scmp.eq.s32.totalorder %s25, 1
      %p279 = por %p277, %p278
      %p280 = scmp.ne.s32.totalorder %s269, %s270
      %p281 = scmp.eq.s32.totalorder %s25, 0
      %p282 = por %p280, %p281
      %p283 = scmp.ne.s32.totalorder %s269, %s270
      %p284 = scmp.eq.s32.totalorder %s26, 1
      %p285 = por %p283, %p284
      %p287 = scmp.ne.s32.totalorder %s270, %s286
      %p288 = scmp.eq.s32.totalorder %s26, 0
      %p289 = por %p287, %p288
      %p290 = scmp.le.s32.totalorder 1, %s20
      %p291 = scmp.lt.s32.totalorder %s20, 3
      %p292 = pnand %p290, %p291
      %p293 = pneg %p292
      // Predicated region
      $region9: #{tpu_custom_call.1} parent=5 // pred_check
        _
      $region10: #{tpu_custom_call.1} parent=5 // pred_check_branch
        %295 = sbr.rel (%p292) target = $region12
      $region11: #{tpu_custom_call.1} parent=5 // pred_region
        %s296 = ssub.s32 %s20, 1
        // Predicated region
        $region13: #{tpu_custom_call.1} parent=11 // pred_check
          %p297 = pneg %p67
        $region14: #{tpu_custom_call.1} parent=11 // pred_check_branch
          %299 = sbr.rel (%p297) target = $region16
        $region15: #{tpu_custom_call.1} parent=11 // pred_region
          _
        $region16: #{tpu_custom_call.1} parent=11 // pred_fallthru
          _
        // Predicated region
        $region17: #{tpu_custom_call.1} parent=11 // pred_check
          %p300 = pneg %p88
        $region18: #{tpu_custom_call.1} parent=11 // pred_check_branch
          %302 = sbr.rel (%p300) target = $region20
        $region19: #{tpu_custom_call.1} parent=11 // pred_region
          _
        $region20: #{tpu_custom_call.1} parent=11 // pred_fallthru
          _
        // Predicated region
        $region21: #{tpu_custom_call.1} parent=11 // pred_check
          %p303 = pneg %p109
        $region22: #{tpu_custom_call.1} parent=11 // pred_check_branch
          %305 = sbr.rel (%p303) target = $region24
        $region23: #{tpu_custom_call.1} parent=11 // pred_region
          _
        $region24: #{tpu_custom_call.1} parent=11 // pred_fallthru
          _
        // Predicated region
        $region25: #{tpu_custom_call.1} parent=11 // pred_check
          %p306 = pneg %p130
        $region26: #{tpu_custom_call.1} parent=11 // pred_check_branch
          %308 = sbr.rel (%p306) target = $region28
        $region27: #{tpu_custom_call.1} parent=11 // pred_region
          _
        $region28: #{tpu_custom_call.1} parent=11 // pred_fallthru
          _
        // Predicated region
        $region29: #{tpu_custom_call.1} parent=11 // pred_check
          %p309 = pneg %p151
        $region30: #{tpu_custom_call.1} parent=11 // pred_check_branch
          %311 = sbr.rel (%p309) target = $region32
        $region31: #{tpu_custom_call.1} parent=11 // pred_region
          _
        $region32: #{tpu_custom_call.1} parent=11 // pred_fallthru
          _
        // Predicated region
        $region33: #{tpu_custom_call.1} parent=11 // pred_check
          %p312 = pneg %p172
        $region34: #{tpu_custom_call.1} parent=11 // pred_check_branch
          %314 = sbr.rel (%p312) target = $region36
        $region35: #{tpu_custom_call.1} parent=11 // pred_region
          _
        $region36: #{tpu_custom_call.1} parent=11 // pred_fallthru
          _
        // Predicated region
        $region37: #{tpu_custom_call.1} parent=11 // pred_check
          %p315 = pneg %p193
        $region38: #{tpu_custom_call.1} parent=11 // pred_check_branch
          %317 = sbr.rel (%p315) target = $region40
        $region39: #{tpu_custom_call.1} parent=11 // pred_region
          _
        $region40: #{tpu_custom_call.1} parent=11 // pred_fallthru
          _
        // Predicated region
        $region41: #{tpu_custom_call.1} parent=11 // pred_check
          %p318 = pneg %p214
        $region42: #{tpu_custom_call.1} parent=11 // pred_check_branch
          %320 = sbr.rel (%p318) target = $region44
        $region43: #{tpu_custom_call.1} parent=11 // pred_region
          _
        $region44: #{tpu_custom_call.1} parent=11 // pred_fallthru
          _
        // Predicated region
        $region45: #{tpu_custom_call.1} parent=11 // pred_check
          %p321 = pneg %p235
        $region46: #{tpu_custom_call.1} parent=11 // pred_check_branch
          %323 = sbr.rel (%p321) target = $region48
        $region47: #{tpu_custom_call.1} parent=11 // pred_region
          _
        $region48: #{tpu_custom_call.1} parent=11 // pred_fallthru
          _
        // Predicated region
        $region49: #{tpu_custom_call.1} parent=11 // pred_check
          %p324 = pneg %p256
        $region50: #{tpu_custom_call.1} parent=11 // pred_check_branch
          %326 = sbr.rel (%p324) target = $region52
        $region51: #{tpu_custom_call.1} parent=11 // pred_region
          _
        $region52: #{tpu_custom_call.1} parent=11 // pred_fallthru
          _
      $region12: #{tpu_custom_call.1} parent=5 // pred_fallthru
        _
      %p327 = scmp.lt.s32.totalorder %s20, 2
      // Predicated region
      $region53: #{tpu_custom_call.1} parent=5 // pred_check
        %p328 = pneg %p327
      $region54: #{tpu_custom_call.1} parent=5 // pred_check_branch
        %330 = sbr.rel (%p328) target = $region56
      $region55: #{tpu_custom_call.1} parent=5 // pred_region
        // Predicated region
        $region57: #{tpu_custom_call.1} parent=55 // pred_check
          %p331 = pneg %p40
        $region58: #{tpu_custom_call.1} parent=55 // pred_check_branch
          %333 = sbr.rel (%p331) target = $region60
        $region59: #{tpu_custom_call.1} parent=55 // pred_region
          %p334 = scmp.lt.s32.totalorder %s20, 1
          %s335 = scalar_select %p334, %s20, 1
          %s336 = smul.addr %s335, 2
          %s337 = scalar_lea.vmem %s0, %s336
        $region60: #{tpu_custom_call.1} parent=55 // pred_fallthru
          _
      $region56: #{tpu_custom_call.1} parent=5 // pred_fallthru
        _
      %p338 = scmp.le.s32.totalorder 1, %s20
      %p339 = scmp.lt.s32.totalorder %s20, 3
      %p340 = pnand %p338, %p339
      %p341 = pneg %p340
      // Predicated region
      $region61: #{tpu_custom_call.1} parent=5 // pred_check
        _
      $region62: #{tpu_custom_call.1} parent=5 // pred_check_branch
        %343 = sbr.rel (%p340) target = $region64
      $region63: #{tpu_custom_call.1} parent=5 // pred_region
        %s344 = ssub.s32 %s20, 1
        %p345 = scmp.lt.s32.totalorder %s25, 1
        %s346 = scalar_select %p345, %s25, 1
        %s347 = smul.addr %s346, 2
        %s348 = scalar_lea.vmem %s0, %s347
        %p349 = pneg %p46
        %p350 = pneg %p43
        %p351 = pneg %p67
        %p352 = pneg %p64
        %p353 = pneg %p88
        %p354 = pneg %p85
        %p355 = pneg %p109
        %p356 = pneg %p106
        %p357 = pneg %p130
        %p358 = pneg %p127
        %p359 = pneg %p151
        %p360 = pneg %p148
        %p361 = pneg %p172
        %p362 = pneg %p169
        %p363 = pneg %p193
        %p364 = pneg %p190
        %p365 = pneg %p214
        %p366 = pneg %p211
        %p367 = pneg %p235
        %p368 = pneg %p232
        %p369 = pneg %p256
        %p370 = pneg %p253
        %p371 = pneg %p282
        %p372 = pneg %p279
        %s373 = sand.u32 %s269, 1
        %s374 = scalar_lea.sflag [#allocation3], %s373
        %s375 = sand.u32 %s269, 1
        %s376 = smul.addr %s375, 4
        %s377 = scalar_lea.vmem [#allocation2], %s376
        %p378 = scmp.lt.s32.totalorder %s25, 1
        %s379 = scalar_select %p378, %s25, 1
        %s380 = smul.addr %s379, 2
        %s381 = scalar_lea.vmem %s0, %s380
        %v385 = vlaneseq
        %v386 = vand.u32 %v385, 127
        %vm387 = vcmp.lt.s32.totalorder %v386, 0
        %v388 = vsub.s32 0, %v386
        %v389 = vsel %vm387, %v388, %v386
        %v390 = vshrl.u32 %v389, 4
        %v391 = vand.u32 %v389, 15
        %v392 = vsub.s32 0, %v391
        %v393 = vsel %vm387, %v392, %v391
        %vm394 = vcmp.ne.s32.totalorder %v393, 0
        %vm395 = vcmp.lt.s32.totalorder %v393, 0
        %vm396 = vmand %vm395, %vm394
        %v397 = vadd.s32 %v393, 16
        %v398 = vsel %vm396, %v397, %v393
        %v399 = vld [vmem:[%s381] sm:$0x3]
        %v400 = vld [vmem:[%s1] sm:$0xf]
        %v401 = vld [vmem:[%s1 + $0x4] sm:$0xf]
        %v402 = vld [vmem:[%s1 + $0x8] sm:$0xf]
        %v403 = vld [vmem:[%s1 + $0xc] sm:$0xf]
        %v406 = vunpack.c.l.s4 1983009808
        %v407 = vunpack.c.0.s8 %v406
        %v408 = vlaneseq
        %v409 = vshrl.u32 %v408, 7
        %v410 = vsub.s32 %v407, %v409
        %v411 = vrot.slane %v399, %v410
        %412 = vrot.lane.b32.xlu0 %v411, 2
        %v413 = vpop.permute.xlu0 %412
        %vm414 = vcmask 15360
        %v417 = vsel %vm414, 0, %v413
        %vm419 = vcmp.ge.s32.totalorder %v398, 2
        %vm420 = vcmp.lt.s32.totalorder %v398, 18
        %vm421 = vmand %vm419, %vm420
        %v422 = vsel %vm421, 1, 0
        %vm423 = vcmp.eq.s32.totalorder %v422, 1
        %vm424 = vmpackc.low %vm423, %vm423
        %v425 = vsel %vm424, %v417, 0
        %s426 = scalar_lea.vmem %s1, 16
        %v427 = vld [vmem:[%s426] sm:$0xf]
        %v428 = vld [vmem:[%s426 + $0x4] sm:$0xf]
        %v429 = vld [vmem:[%s426 + $0x8] sm:$0xf]
        %v430 = vld [vmem:[%s426 + $0xc] sm:$0xf]
        %431 = vrot.lane.b32.xlu0 %v411, 1
        %v432 = vpop.permute.xlu0 %431
        %vm433 = vcmask 7168
        %v435 = vsel %vm433, 0, %v432
        %vm437 = vcmp.ge.s32.totalorder %v398, 1
        %vm438 = vcmp.lt.s32.totalorder %v398, 17
        %vm439 = vmand %vm437, %vm438
        %v440 = vsel %vm439, 1, 0
        %vm441 = vcmp.eq.s32.totalorder %v440, 1
        %vm442 = vmpackc.low %vm441, %vm441
        %v443 = vsel %vm442, %v435, 0
        %v448 = vunpack.c.l.b16 %v427
        %v449 = vunpack.c.l.b16 %v428
        %v450 = vunpack.c.l.b16 %v429
        %v451 = vunpack.c.l.b16 %v430
        %v452 = vpack.c.b16 %v449, %v448
        %v453 = vpack.c.b16 %v451, %v450
        %vm454 = vcmask 31744
        %v456 = vsel %vm454, %v452, 0
        %v459 = vsel %vm454, %v453, 0
        %vm461 = vcmask 1041408
        %v463 = vsel %vm461, %v443, 0
        %465 = vmatprep.subr.bf16.mxu0 0
        %466 = vmatpush1.bf16.msra.mxu0 0
        %467 = vmatprep.subr.bf16.mxu0 0
        %468 = vmatpush1.bf16.msra.mxu0 0
        %469 = vmatprep.subr.bf16.mxu0 0
        %470 = vmatpush1.bf16.msra.mxu0 0
        %471 = vmatprep.subr.bf16.mxu0 0
        %472 = vmatpush1.bf16.msra.mxu0 0
        %473 = vmatprep.subr.bf16.mxu0 0
        %474 = vmatpush1.bf16.msra.mxu0 0
        %475 = vmatprep.subr.bf16.mxu0 0
        %476 = vmatpush1.bf16.msra.mxu0 0
        %477 = vmatprep.subr.bf16.mxu0 0
        %478 = vmatpush1.bf16.msra.mxu0 0
        %479 = vmatprep.subr.bf16.mxu0 0
        %480 = vmatpush1.bf16.msra.mxu0 %v463
        %481 = vmatprep.subr.bf16.mxu0 0
        %482 = vmatpush2.bf16.msra.mxu0 0
        %483 = vmatprep.subr.bf16.mxu0 0
        %484 = vmatpush2.bf16.msra.mxu0 0
        %485 = vmatprep.subr.bf16.mxu0 0
        %486 = vmatpush2.bf16.msra.mxu0 0
        %487 = vmatprep.subr.bf16.mxu0 0
        %488 = vmatpush2.bf16.msra.mxu0 0
        %489 = vmatprep.subr.bf16.mxu0 0
        %490 = vmatpush2.bf16.msra.mxu0 0
        %491 = vmatprep.subr.bf16.mxu0 0
        %492 = vmatpush2.bf16.msra.mxu0 0
        %493 = vmatprep.subr.bf16.mxu0 0
        %494 = vmatpush2.bf16.msra.mxu0 0
        %495 = vmatprep.subr.bf16.mxu0 0
        %496 = vmatpush2.bf16.msra.mxu0 0
        %497 = vmatprep.mubr.bf16.mxu0 0
        %498 = vmatmul.mubr.bf16.gmra.mxu0 %v456
        %v499 = vpop.f32.mrf.mxu0
        %v500 = vadd.f32 0.0, %v499
        %v501 = vpop.f32.mrf.mxu0
        %v502 = vpop.f32.mrf.mxu0
        %v503 = vadd.f32 0.0, %v502
        %v504 = vpop.f32.mrf.mxu0
        %505 = vmatprep.mubr.bf16.mxu0 0
        %506 = vmatmul.mubr.bf16.gmra.mxu0 %v459
        %v507 = vpop.f32.mrf.mxu0
        %v508 = vadd.f32 0.0, %v507
        %v509 = vpop.f32.mrf.mxu0
        %v510 = vpop.f32.mrf.mxu0
        %v511 = vadd.f32 0.0, %v510
        %v512 = vpop.f32.mrf.mxu0
        %513 = vdwg.mxu0
        %v518 = vunpack.c.l.b16 %v400
        %v519 = vunpack.c.l.b16 %v401
        %v520 = vunpack.c.l.b16 %v402
        %v521 = vunpack.c.l.b16 %v403
        %v522 = vpack.c.b16 %v519, %v518
        %v523 = vpack.c.b16 %v521, %v520
        %v525 = vsel %vm454, %v522, 0
        %v528 = vsel %vm454, %v523, 0
        %v531 = vsel %vm461, %v425, 0
        %533 = vmatprep.subr.bf16.mxu0 0
        %534 = vmatpush1.bf16.msra.mxu0 0
        %535 = vmatprep.subr.bf16.mxu0 0
        %536 = vmatpush1.bf16.msra.mxu0 0
        %537 = vmatprep.subr.bf16.mxu0 0
        %538 = vmatpush1.bf16.msra.mxu0 0
        %539 = vmatprep.subr.bf16.mxu0 0
        %540 = vmatpush1.bf16.msra.mxu0 0
        %541 = vmatprep.subr.bf16.mxu0 0
        %542 = vmatpush1.bf16.msra.mxu0 0
        %543 = vmatprep.subr.bf16.mxu0 0
        %544 = vmatpush1.bf16.msra.mxu0 0
        %545 = vmatprep.subr.bf16.mxu0 0
        %546 = vmatpush1.bf16.msra.mxu0 0
        %547 = vmatprep.subr.bf16.mxu0 0
        %548 = vmatpush1.bf16.msra.mxu0 %v531
        %549 = vmatprep.subr.bf16.mxu0 0
        %550 = vmatpush2.bf16.msra.mxu0 0
        %551 = vmatprep.subr.bf16.mxu0 0
        %552 = vmatpush2.bf16.msra.mxu0 0
        %553 = vmatprep.subr.bf16.mxu0 0
        %554 = vmatpush2.bf16.msra.mxu0 0
        %555 = vmatprep.subr.bf16.mxu0 0
        %556 = vmatpush2.bf16.msra.mxu0 0
        %557 = vmatprep.subr.bf16.mxu0 0
        %558 = vmatpush2.bf16.msra.mxu0 0
        %559 = vmatprep.subr.bf16.mxu0 0
        %560 = vmatpush2.bf16.msra.mxu0 0
        %561 = vmatprep.subr.bf16.mxu0 0
        %562 = vmatpush2.bf16.msra.mxu0 0
        %563 = vmatprep.subr.bf16.mxu0 0
        %564 = vmatpush2.bf16.msra.mxu0 0
        %565 = vmatprep.mubr.bf16.mxu0 0
        %566 = vmatmul.mubr.bf16.gmra.mxu0 %v525
        %v567 = vpop.f32.mrf.mxu0
        %v568 = vadd.f32 %v500, %v567
        %v569 = vpop.f32.mrf.mxu0
        %v570 = vpop.f32.mrf.mxu0
        %v571 = vadd.f32 %v503, %v570
        %v572 = vpop.f32.mrf.mxu0
        %573 = vmatprep.mubr.bf16.mxu0 0
        %574 = vmatmul.mubr.bf16.gmra.mxu0 %v528
        %v575 = vpop.f32.mrf.mxu0
        %v576 = vadd.f32 %v508, %v575
        %v577 = vpop.f32.mrf.mxu0
        %v578 = vpop.f32.mrf.mxu0
        %v579 = vadd.f32 %v511, %v578
        %v580 = vpop.f32.mrf.mxu0
        %581 = vdwg.mxu0
        %s582 = scalar_lea.vmem %s1, 32
        %v583 = vld [vmem:[%s582] sm:$0xf]
        %v584 = vld [vmem:[%s582 + $0x4] sm:$0xf]
        %v585 = vld [vmem:[%s582 + $0x8] sm:$0xf]
        %v586 = vld [vmem:[%s582 + $0xc] sm:$0xf]
        %v591 = vunpack.c.l.b16 %v583
        %v592 = vunpack.c.l.b16 %v584
        %v593 = vunpack.c.l.b16 %v585
        %v594 = vunpack.c.l.b16 %v586
        %v595 = vpack.c.b16 %v592, %v591
        %v596 = vpack.c.b16 %v594, %v593
        %v598 = vsel %vm454, %v595, 0
        %v601 = vsel %vm454, %v596, 0
        %v604 = vsel %vm461, %v399, 0
        %606 = vmatprep.subr.bf16.mxu0 0
        %607 = vmatpush1.bf16.msra.mxu0 0
        %608 = vmatprep.subr.bf16.mxu0 0
        %609 = vmatpush1.bf16.msra.mxu0 0
        %610 = vmatprep.subr.bf16.mxu0 0
        %611 = vmatpush1.bf16.msra.mxu0 0
        %612 = vmatprep.subr.bf16.mxu0 0
        %613 = vmatpush1.bf16.msra.mxu0 0
        %614 = vmatprep.subr.bf16.mxu0 0
        %615 = vmatpush1.bf16.msra.mxu0 0
        %616 = vmatprep.subr.bf16.mxu0 0
        %617 = vmatpush1.bf16.msra.mxu0 0
        %618 = vmatprep.subr.bf16.mxu0 0
        %619 = vmatpush1.bf16.msra.mxu0 0
        %620 = vmatprep.subr.bf16.mxu0 0
        %621 = vmatpush1.bf16.msra.mxu0 %v604
        %622 = vmatprep.subr.bf16.mxu0 0
        %623 = vmatpush2.bf16.msra.mxu0 0
        %624 = vmatprep.subr.bf16.mxu0 0
        %625 = vmatpush2.bf16.msra.mxu0 0
        %626 = vmatprep.subr.bf16.mxu0 0
        %627 = vmatpush2.bf16.msra.mxu0 0
        %628 = vmatprep.subr.bf16.mxu0 0
        %629 = vmatpush2.bf16.msra.mxu0 0
        %630 = vmatprep.subr.bf16.mxu0 0
        %631 = vmatpush2.bf16.msra.mxu0 0
        %632 = vmatprep.subr.bf16.mxu0 0
        %633 = vmatpush2.bf16.msra.mxu0 0
        %634 = vmatprep.subr.bf16.mxu0 0
        %635 = vmatpush2.bf16.msra.mxu0 0
        %636 = vmatprep.subr.bf16.mxu0 0
        %637 = vmatpush2.bf16.msra.mxu0 0
        %638 = vmatprep.mubr.bf16.mxu0 0
        %639 = vmatmul.mubr.bf16.gmra.mxu0 %v598
        %v640 = vpop.f32.mrf.mxu0
        %v641 = vadd.f32 0.0, %v640
        %v642 = vpop.f32.mrf.mxu0
        %v643 = vpop.f32.mrf.mxu0
        %v644 = vadd.f32 0.0, %v643
        %v645 = vpop.f32.mrf.mxu0
        %646 = vmatprep.mubr.bf16.mxu0 0
        %647 = vmatmul.mubr.bf16.gmra.mxu0 %v601
        %v648 = vpop.f32.mrf.mxu0
        %v649 = vadd.f32 0.0, %v648
        %v650 = vpop.f32.mrf.mxu0
        %v651 = vpop.f32.mrf.mxu0
        %v652 = vadd.f32 0.0, %v651
        %v653 = vpop.f32.mrf.mxu0
        %654 = vdwg.mxu0
        %v655 = vadd.f32 %v568, %v641
        %v656 = vadd.f32 %v571, %v644
        %v657 = vadd.f32 %v576, %v649
        %v658 = vadd.f32 %v579, %v652
        %s659 = scalar_lea.vmem %s1, 48
        %v660 = vld [vmem:[%s659] sm:$0xf]
        %v661 = vld [vmem:[%s659 + $0x4] sm:$0xf]
        %v662 = vld [vmem:[%s659 + $0x8] sm:$0xf]
        %v663 = vld [vmem:[%s659 + $0xc] sm:$0xf]
        %664 = vrot.lane.b32.xlu0 %v411, 127
        %v665 = vpop.permute.xlu0 %664
        %vm666 = vcmask 121856
        %v668 = vsel %vm666, %v665, 0
        %vm670 = vcmp.ge.s32.totalorder %v398, 4294967295
        %vm671 = vcmp.lt.s32.totalorder %v398, 15
        %vm672 = vmand %vm670, %vm671
        %v673 = vsel %vm672, 1, 0
        %vm674 = vcmp.eq.s32.totalorder %v673, 1
        %vm675 = vmpackc.low %vm674, %vm674
        %v676 = vsel %vm675, %v668, 0
        %v681 = vunpack.c.l.b16 %v660
        %v682 = vunpack.c.l.b16 %v661
        %v683 = vunpack.c.l.b16 %v662
        %v684 = vunpack.c.l.b16 %v663
        %v685 = vpack.c.b16 %v682, %v681
        %v686 = vpack.c.b16 %v684, %v683
        %v688 = vsel %vm454, %v685, 0
        %v691 = vsel %vm454, %v686, 0
        %v694 = vsel %vm461, %v676, 0
        %696 = vmatprep.subr.bf16.mxu0 0
        %697 = vmatpush1.bf16.msra.mxu0 0
        %698 = vmatprep.subr.bf16.mxu0 0
        %699 = vmatpush1.bf16.msra.mxu0 0
        %700 = vmatprep.subr.bf16.mxu0 0
        %701 = vmatpush1.bf16.msra.mxu0 0
        %702 = vmatprep.subr.bf16.mxu0 0
        %703 = vmatpush1.bf16.msra.mxu0 0
        %704 = vmatprep.subr.bf16.mxu0 0
        %705 = vmatpush1.bf16.msra.mxu0 0
        %706 = vmatprep.subr.bf16.mxu0 0
        %707 = vmatpush1.bf16.msra.mxu0 0
        %708 = vmatprep.subr.bf16.mxu0 0
        %709 = vmatpush1.bf16.msra.mxu0 0
        %710 = vmatprep.subr.bf16.mxu0 0
        %711 = vmatpush1.bf16.msra.mxu0 %v694
        %712 = vmatprep.subr.bf16.mxu0 0
        %713 = vmatpush2.bf16.msra.mxu0 0
        %714 = vmatprep.subr.bf16.mxu0 0
        %715 = vmatpush2.bf16.msra.mxu0 0
        %716 = vmatprep.subr.bf16.mxu0 0
        %717 = vmatpush2.bf16.msra.mxu0 0
        %718 = vmatprep.subr.bf16.mxu0 0
        %719 = vmatpush2.bf16.msra.mxu0 0
        %720 = vmatprep.subr.bf16.mxu0 0
        %721 = vmatpush2.bf16.msra.mxu0 0
        %722 = vmatprep.subr.bf16.mxu0 0
        %723 = vmatpush2.bf16.msra.mxu0 0
        %724 = vmatprep.subr.bf16.mxu0 0
        %725 = vmatpush2.bf16.msra.mxu0 0
        %726 = vmatprep.subr.bf16.mxu0 0
        %727 = vmatpush2.bf16.msra.mxu0 0
        %728 = vmatprep.mubr.bf16.mxu0 0
        %729 = vmatmul.mubr.bf16.gmra.mxu0 %v688
        %v730 = vpop.f32.mrf.mxu0
        %v731 = vadd.f32 0.0, %v730
        %v732 = vpop.f32.mrf.mxu0
        %v733 = vpop.f32.mrf.mxu0
        %v734 = vadd.f32 0.0, %v733
        %v735 = vpop.f32.mrf.mxu0
        %736 = vmatprep.mubr.bf16.mxu0 0
        %737 = vmatmul.mubr.bf16.gmra.mxu0 %v691
        %v738 = vpop.f32.mrf.mxu0
        %v739 = vadd.f32 0.0, %v738
        %v740 = vpop.f32.mrf.mxu0
        %v741 = vpop.f32.mrf.mxu0
        %v742 = vadd.f32 0.0, %v741
        %v743 = vpop.f32.mrf.mxu0
        %744 = vdwg.mxu0
        %v745 = vadd.f32 %v655, %v731
        %v746 = vadd.f32 %v656, %v734
        %v747 = vadd.f32 %v657, %v739
        %v748 = vadd.f32 %v658, %v742
        %s749 = scalar_lea.vmem %s1, 64
        %v750 = vld [vmem:[%s749] sm:$0xf]
        %v751 = vld [vmem:[%s749 + $0x4] sm:$0xf]
        %v752 = vld [vmem:[%s749 + $0x8] sm:$0xf]
        %v753 = vld [vmem:[%s749 + $0xc] sm:$0xf]
        %754 = vrot.lane.b32.xlu0 %v411, 126
        %v755 = vpop.permute.xlu0 %754
        %vm756 = vcmask 113664
        %v758 = vsel %vm756, %v755, 0
        %vm760 = vcmp.ge.s32.totalorder %v398, 4294967294
        %vm761 = vcmp.lt.s32.totalorder %v398, 14
        %vm762 = vmand %vm760, %vm761
        %v763 = vsel %vm762, 1, 0
        %vm764 = vcmp.eq.s32.totalorder %v763, 1
        %vm765 = vmpackc.low %vm764, %vm764
        %v766 = vsel %vm765, %v758, 0
        %v771 = vunpack.c.l.b16 %v750
        %v772 = vunpack.c.l.b16 %v751
        %v773 = vunpack.c.l.b16 %v752
        %v774 = vunpack.c.l.b16 %v753
        %v775 = vpack.c.b16 %v772, %v771
        %v776 = vpack.c.b16 %v774, %v773
        %v778 = vsel %vm454, %v775, 0
        %v781 = vsel %vm454, %v776, 0
        %v784 = vsel %vm461, %v766, 0
        %786 = vmatprep.subr.bf16.mxu0 0
        %787 = vmatpush1.bf16.msra.mxu0 0
        %788 = vmatprep.subr.bf16.mxu0 0
        %789 = vmatpush1.bf16.msra.mxu0 0
        %790 = vmatprep.subr.bf16.mxu0 0
        %791 = vmatpush1.bf16.msra.mxu0 0
        %792 = vmatprep.subr.bf16.mxu0 0
        %793 = vmatpush1.bf16.msra.mxu0 0
        %794 = vmatprep.subr.bf16.mxu0 0
        %795 = vmatpush1.bf16.msra.mxu0 0
        %796 = vmatprep.subr.bf16.mxu0 0
        %797 = vmatpush1.bf16.msra.mxu0 0
        %798 = vmatprep.subr.bf16.mxu0 0
        %799 = vmatpush1.bf16.msra.mxu0 0
        %800 = vmatprep.subr.bf16.mxu0 0
        %801 = vmatpush1.bf16.msra.mxu0 %v784
        %802 = vmatprep.subr.bf16.mxu0 0
        %803 = vmatpush2.bf16.msra.mxu0 0
        %804 = vmatprep.subr.bf16.mxu0 0
        %805 = vmatpush2.bf16.msra.mxu0 0
        %806 = vmatprep.subr.bf16.mxu0 0
        %807 = vmatpush2.bf16.msra.mxu0 0
        %808 = vmatprep.subr.bf16.mxu0 0
        %809 = vmatpush2.bf16.msra.mxu0 0
        %810 = vmatprep.subr.bf16.mxu0 0
        %811 = vmatpush2.bf16.msra.mxu0 0
        %812 = vmatprep.subr.bf16.mxu0 0
        %813 = vmatpush2.bf16.msra.mxu0 0
        %814 = vmatprep.subr.bf16.mxu0 0
        %815 = vmatpush2.bf16.msra.mxu0 0
        %816 = vmatprep.subr.bf16.mxu0 0
        %817 = vmatpush2.bf16.msra.mxu0 0
        %818 = vmatprep.mubr.bf16.mxu0 0
        %819 = vmatmul.mubr.bf16.gmra.mxu0 %v778
        %v820 = vpop.f32.mrf.mxu0
        %v821 = vadd.f32 0.0, %v820
        %v822 = vpop.f32.mrf.mxu0
        %v823 = vpop.f32.mrf.mxu0
        %v824 = vadd.f32 0.0, %v823
        %v825 = vpop.f32.mrf.mxu0
        %826 = vmatprep.mubr.bf16.mxu0 0
        %827 = vmatmul.mubr.bf16.gmra.mxu0 %v781
        %v828 = vpop.f32.mrf.mxu0
        %v829 = vadd.f32 0.0, %v828
        %v830 = vpop.f32.mrf.mxu0
        %v831 = vpop.f32.mrf.mxu0
        %v832 = vadd.f32 0.0, %v831
        %v833 = vpop.f32.mrf.mxu0
        %834 = vdwg.mxu0
        %v835 = vadd.f32 %v745, %v821
        %v836 = vadd.f32 %v746, %v824
        %v837 = vadd.f32 %v747, %v829
        %v838 = vadd.f32 %v748, %v832
        %v839 = vld [vmem:[%s2] sm:$0xff]
        %v840 = vld [vmem:[%s2 + $0x8] sm:$0xff]
        %v841 = vld [vmem:[%s2 + $0x10] sm:$0xff]
        %v842 = vld [vmem:[%s2 + $0x18] sm:$0xff]
        %844 = vset.pattern.permute.xlu0 0
        %845 = vperm.xlu0 %844, %v839
        %v846 = vpop.permute.xlu0 %845
        %849 = vset.pattern.permute.xlu0 0
        %850 = vperm.xlu0 %849, %v840
        %v851 = vpop.permute.xlu0 %850
        %854 = vset.pattern.permute.xlu0 0
        %855 = vperm.xlu0 %854, %v841
        %v856 = vpop.permute.xlu0 %855
        %859 = vset.pattern.permute.xlu0 0
        %860 = vperm.xlu0 %859, %v842
        %v861 = vpop.permute.xlu0 %860
        %v863 = vadd.f32 %v835, %v846
        %v864 = vadd.f32 %v836, %v851
        %v865 = vadd.f32 %v837, %v856
        %v866 = vadd.f32 %v838, %v861
        %v867 = vmax.f32 %v863, 0.0
        %v868 = vmax.f32 %v864, 0.0
        %v869 = vmax.f32 %v865, 0.0
        %v870 = vmax.f32 %v866, 0.0
        %v871 = vpack.c.bf16 %v868, %v867
        %v872 = vpack.c.bf16 %v870, %v869
        %v873 = vld [vmem:[%s3] sm:$0xf]
        %v874 = vld [vmem:[%s3 + $0x4] sm:$0xf]
        %v875 = vld [vmem:[%s3 + $0x8] sm:$0xf]
        %v876 = vld [vmem:[%s3 + $0xc] sm:$0xf]
        %v877 = vld [vmem:[%s3 + $0x10] sm:$0xf]
        %v878 = vld [vmem:[%s3 + $0x14] sm:$0xf]
        %v879 = vld [vmem:[%s3 + $0x18] sm:$0xf]
        %v880 = vld [vmem:[%s3 + $0x1c] sm:$0xf]
        %v881 = vld [vmem:[%s3 + $0x20] sm:$0xf]
        %v882 = vld [vmem:[%s3 + $0x24] sm:$0xf]
        %v883 = vld [vmem:[%s3 + $0x28] sm:$0xf]
        %v884 = vld [vmem:[%s3 + $0x2c] sm:$0xf]
        %887 = vrot.lane.b32.xlu0 %v871, 3
        %v888 = vpop.permute.xlu0 %887
        %889 = vrot.lane.b32.xlu0 %v872, 3
        %v890 = vpop.permute.xlu0 %889
        %vm891 = vcmask 23552
        %v893 = vsel %vm891, 0, %v888
        %v896 = vsel %vm891, 0, %v890
        %vm898 = vcmp.ge.s32.totalorder %v398, 3
        %vm899 = vcmp.lt.s32.totalorder %v398, 19
        %vm900 = vmand %vm898, %vm899
        %v901 = vsel %vm900, 1, 0
        %vm902 = vcmp.eq.s32.totalorder %v901, 1
        %vm903 = vmpackc.low %vm902, %vm902
        %v904 = vsel %vm903, 65537, 0
        %v905 = vlaneseq
        %v906 = vshrl.u32 %v905, 7
        %v907 = vsub.s32 0, %v906
        %v908 = vrot.slane %v904, %v907
        %vm909 = vcmp.ne.s16.totalorder %v908, 0
        %v910 = vsel %vm909, %v893, 0
        %v911 = vsel %vm909, %v896, 0
        %s912 = scalar_lea.vmem %s3, 48
        %v913 = vld [vmem:[%s912] sm:$0xf]
        %v914 = vld [vmem:[%s912 + $0x4] sm:$0xf]
        %v915 = vld [vmem:[%s912 + $0x8] sm:$0xf]
        %v916 = vld [vmem:[%s912 + $0xc] sm:$0xf]
        %v917 = vld [vmem:[%s912 + $0x10] sm:$0xf]
        %v918 = vld [vmem:[%s912 + $0x14] sm:$0xf]
        %v919 = vld [vmem:[%s912 + $0x18] sm:$0xf]
        %v920 = vld [vmem:[%s912 + $0x1c] sm:$0xf]
        %v921 = vld [vmem:[%s912 + $0x20] sm:$0xf]
        %v922 = vld [vmem:[%s912 + $0x24] sm:$0xf]
        %v923 = vld [vmem:[%s912 + $0x28] sm:$0xf]
        %v924 = vld [vmem:[%s912 + $0x2c] sm:$0xf]
        %925 = vrot.lane.b32.xlu0 %v871, 2
        %v926 = vpop.permute.xlu0 %925
        %927 = vrot.lane.b32.xlu0 %v872, 2
        %v928 = vpop.permute.xlu0 %927
        %v930 = vsel %vm414, 0, %v926
        %v933 = vsel %vm414, 0, %v928
        %v935 = vsel %vm424, 65537, 0
        %v936 = vlaneseq
        %v937 = vshrl.u32 %v936, 7
        %v938 = vsub.s32 0, %v937
        %v939 = vrot.slane %v935, %v938
        %vm940 = vcmp.ne.s16.totalorder %v939, 0
        %v941 = vsel %vm940, %v930, 0
        %v942 = vsel %vm940, %v933, 0
        %v955 = vunpack.c.l.b16 %v913
        %v956 = vunpack.c.l.b16 %v914
        %v957 = vunpack.c.l.b16 %v915
        %v958 = vunpack.c.l.b16 %v916
        %v959 = vunpack.c.l.b16 %v917
        %v960 = vunpack.c.l.b16 %v918
        %v961 = vunpack.c.l.b16 %v919
        %v962 = vunpack.c.l.b16 %v920
        %v963 = vunpack.c.l.b16 %v921
        %v964 = vunpack.c.l.b16 %v922
        %v965 = vunpack.c.l.b16 %v923
        %v966 = vunpack.c.l.b16 %v924
        %v967 = vpack.c.b16 %v956, %v955
        %v968 = vpack.c.b16 %v958, %v957
        %v969 = vpack.c.b16 %v960, %v959
        %v970 = vpack.c.b16 %v962, %v961
        %v971 = vpack.c.b16 %v964, %v963
        %v972 = vpack.c.b16 %v966, %v965
        %vm973 = vcmask 261120
        %v975 = vsel %vm973, %v967, 0
        %v978 = vsel %vm973, %v968, 0
        %v981 = vsel %vm973, %v969, 0
        %v984 = vsel %vm973, %v970, 0
        %v987 = vsel %vm973, %v971, 0
        %v990 = vsel %vm973, %v972, 0
        %992 = vmatprep.subr.bf16.mxu0 0
        %993 = vmatpush1.bf16.msra.mxu0 0
        %994 = vmatprep.subr.bf16.mxu0 0
        %995 = vmatpush1.bf16.msra.mxu0 0
        %996 = vmatprep.subr.bf16.mxu0 0
        %997 = vmatpush1.bf16.msra.mxu0 0
        %998 = vmatprep.subr.bf16.mxu0 0
        %999 = vmatpush1.bf16.msra.mxu0 0
        %1000 = vmatprep.subr.bf16.mxu0 0
        %1001 = vmatpush1.bf16.msra.mxu0 0
        %1002 = vmatprep.subr.bf16.mxu0 0
        %1003 = vmatpush1.bf16.msra.mxu0 0
        %1004 = vmatprep.subr.bf16.mxu0 0
        %1005 = vmatpush1.bf16.msra.mxu0 %v942
        %1006 = vmatprep.subr.bf16.mxu0 0
        %1007 = vmatpush1.bf16.msra.mxu0 %v941
        %1008 = vmatprep.subr.bf16.mxu0 0
        %1009 = vmatpush2.bf16.msra.mxu0 0
        %1010 = vmatprep.subr.bf16.mxu0 0
        %1011 = vmatpush2.bf16.msra.mxu0 0
        %1012 = vmatprep.subr.bf16.mxu0 0
        %1013 = vmatpush2.bf16.msra.mxu0 0
        %1014 = vmatprep.subr.bf16.mxu0 0
        %1015 = vmatpush2.bf16.msra.mxu0 0
        %1016 = vmatprep.subr.bf16.mxu0 0
        %1017 = vmatpush2.bf16.msra.mxu0 0
        %1018 = vmatprep.subr.bf16.mxu0 0
        %1019 = vmatpush2.bf16.msra.mxu0 0
        %1020 = vmatprep.subr.bf16.mxu0 0
        %1021 = vmatpush2.bf16.msra.mxu0 0
        %1022 = vmatprep.subr.bf16.mxu0 0
        %1023 = vmatpush2.bf16.msra.mxu0 0
        %1024 = vmatprep.mubr.bf16.mxu0 0
        %1025 = vmatmul.mubr.bf16.gmra.mxu0 %v975
        %v1026 = vpop.f32.mrf.mxu0
        %v1027 = vadd.f32 0.0, %v1026
        %v1028 = vpop.f32.mrf.mxu0
        %v1029 = vpop.f32.mrf.mxu0
        %v1030 = vadd.f32 0.0, %v1029
        %v1031 = vpop.f32.mrf.mxu0
        %1032 = vmatprep.mubr.bf16.mxu0 0
        %1033 = vmatmul.mubr.bf16.gmra.mxu0 %v978
        %v1034 = vpop.f32.mrf.mxu0
        %v1035 = vadd.f32 0.0, %v1034
        %v1036 = vpop.f32.mrf.mxu0
        %v1037 = vpop.f32.mrf.mxu0
        %v1038 = vadd.f32 0.0, %v1037
        %v1039 = vpop.f32.mrf.mxu0
        %1040 = vmatprep.mubr.bf16.mxu0 0
        %1041 = vmatmul.mubr.bf16.gmra.mxu0 %v981
        %v1042 = vpop.f32.mrf.mxu0
        %v1043 = vadd.f32 0.0, %v1042
        %v1044 = vpop.f32.mrf.mxu0
        %v1045 = vpop.f32.mrf.mxu0
        %v1046 = vadd.f32 0.0, %v1045
        %v1047 = vpop.f32.mrf.mxu0
        %1048 = vmatprep.mubr.bf16.mxu0 0
        %1049 = vmatmul.mubr.bf16.gmra.mxu0 %v984
        %v1050 = vpop.f32.mrf.mxu0
        %v1051 = vadd.f32 0.0, %v1050
        %v1052 = vpop.f32.mrf.mxu0
        %v1053 = vpop.f32.mrf.mxu0
        %v1054 = vadd.f32 0.0, %v1053
        %v1055 = vpop.f32.mrf.mxu0
        %1056 = vmatprep.mubr.bf16.mxu0 0
        %1057 = vmatmul.mubr.bf16.gmra.mxu0 %v987
        %v1058 = vpop.f32.mrf.mxu0
        %v1059 = vadd.f32 0.0, %v1058
        %v1060 = vpop.f32.mrf.mxu0
        %v1061 = vpop.f32.mrf.mxu0
        %v1062 = vadd.f32 0.0, %v1061
        %v1063 = vpop.f32.mrf.mxu0
        %1064 = vmatprep.mubr.bf16.mxu0 0
        %1065 = vmatmul.mubr.bf16.gmra.mxu0 %v990
        %v1066 = vpop.f32.mrf.mxu0
        %v1067 = vadd.f32 0.0, %v1066
        %v1068 = vpop.f32.mrf.mxu0
        %v1069 = vpop.f32.mrf.mxu0
        %v1070 = vadd.f32 0.0, %v1069
        %v1071 = vpop.f32.mrf.mxu0
        %1072 = vdwg.mxu0
        %v1085 = vunpack.c.l.b16 %v873
        %v1086 = vunpack.c.l.b16 %v874
        %v1087 = vunpack.c.l.b16 %v875
        %v1088 = vunpack.c.l.b16 %v876
        %v1089 = vunpack.c.l.b16 %v877
        %v1090 = vunpack.c.l.b16 %v878
        %v1091 = vunpack.c.l.b16 %v879
        %v1092 = vunpack.c.l.b16 %v880
        %v1093 = vunpack.c.l.b16 %v881
        %v1094 = vunpack.c.l.b16 %v882
        %v1095 = vunpack.c.l.b16 %v883
        %v1096 = vunpack.c.l.b16 %v884
        %v1097 = vpack.c.b16 %v1086, %v1085
        %v1098 = vpack.c.b16 %v1088, %v1087
        %v1099 = vpack.c.b16 %v1090, %v1089
        %v1100 = vpack.c.b16 %v1092, %v1091
        %v1101 = vpack.c.b16 %v1094, %v1093
        %v1102 = vpack.c.b16 %v1096, %v1095
        %v1104 = vsel %vm973, %v1097, 0
        %v1107 = vsel %vm973, %v1098, 0
        %v1110 = vsel %vm973, %v1099, 0
        %v1113 = vsel %vm973, %v1100, 0
        %v1116 = vsel %vm973, %v1101, 0
        %v1119 = vsel %vm973, %v1102, 0
        %1121 = vmatprep.subr.bf16.mxu0 0
        %1122 = vmatpush1.bf16.msra.mxu0 0
        %1123 = vmatprep.subr.bf16.mxu0 0
        %1124 = vmatpush1.bf16.msra.mxu0 0
        %1125 = vmatprep.subr.bf16.mxu0 0
        %1126 = vmatpush1.bf16.msra.mxu0 0
        %1127 = vmatprep.subr.bf16.mxu0 0
        %1128 = vmatpush1.bf16.msra.mxu0 0
        %1129 = vmatprep.subr.bf16.mxu0 0
        %1130 = vmatpush1.bf16.msra.mxu0 0
        %1131 = vmatprep.subr.bf16.mxu0 0
        %1132 = vmatpush1.bf16.msra.mxu0 0
        %1133 = vmatprep.subr.bf16.mxu0 0
        %1134 = vmatpush1.bf16.msra.mxu0 %v911
        %1135 = vmatprep.subr.bf16.mxu0 0
        %1136 = vmatpush1.bf16.msra.mxu0 %v910
        %1137 = vmatprep.subr.bf16.mxu0 0
        %1138 = vmatpush2.bf16.msra.mxu0 0
        %1139 = vmatprep.subr.bf16.mxu0 0
        %1140 = vmatpush2.bf16.msra.mxu0 0
        %1141 = vmatprep.subr.bf16.mxu0 0
        %1142 = vmatpush2.bf16.msra.mxu0 0
        %1143 = vmatprep.subr.bf16.mxu0 0
        %1144 = vmatpush2.bf16.msra.mxu0 0
        %1145 = vmatprep.subr.bf16.mxu0 0
        %1146 = vmatpush2.bf16.msra.mxu0 0
        %1147 = vmatprep.subr.bf16.mxu0 0
        %1148 = vmatpush2.bf16.msra.mxu0 0
        %1149 = vmatprep.subr.bf16.mxu0 0
        %1150 = vmatpush2.bf16.msra.mxu0 0
        %1151 = vmatprep.subr.bf16.mxu0 0
        %1152 = vmatpush2.bf16.msra.mxu0 0
        %1153 = vmatprep.mubr.bf16.mxu0 0
        %1154 = vmatmul.mubr.bf16.gmra.mxu0 %v1104
        %v1155 = vpop.f32.mrf.mxu0
        %v1156 = vadd.f32 %v1027, %v1155
        %v1157 = vpop.f32.mrf.mxu0
        %v1158 = vpop.f32.mrf.mxu0
        %v1159 = vadd.f32 %v1030, %v1158
        %v1160 = vpop.f32.mrf.mxu0
        %1161 = vmatprep.mubr.bf16.mxu0 0
        %1162 = vmatmul.mubr.bf16.gmra.mxu0 %v1107
        %v1163 = vpop.f32.mrf.mxu0
        %v1164 = vadd.f32 %v1035, %v1163
        %v1165 = vpop.f32.mrf.mxu0
        %v1166 = vpop.f32.mrf.mxu0
        %v1167 = vadd.f32 %v1038, %v1166
        %v1168 = vpop.f32.mrf.mxu0
        %1169 = vmatprep.mubr.bf16.mxu0 0
        %1170 = vmatmul.mubr.bf16.gmra.mxu0 %v1110
        %v1171 = vpop.f32.mrf.mxu0
        %v1172 = vadd.f32 %v1043, %v1171
        %v1173 = vpop.f32.mrf.mxu0
        %v1174 = vpop.f32.mrf.mxu0
        %v1175 = vadd.f32 %v1046, %v1174
        %v1176 = vpop.f32.mrf.mxu0
        %1177 = vmatprep.mubr.bf16.mxu0 0
        %1178 = vmatmul.mubr.bf16.gmra.mxu0 %v1113
        %v1179 = vpop.f32.mrf.mxu0
        %v1180 = vadd.f32 %v1051, %v1179
        %v1181 = vpop.f32.mrf.mxu0
        %v1182 = vpop.f32.mrf.mxu0
        %v1183 = vadd.f32 %v1054, %v1182
        %v1184 = vpop.f32.mrf.mxu0
        %1185 = vmatprep.mubr.bf16.mxu0 0
        %1186 = vmatmul.mubr.bf16.gmra.mxu0 %v1116
        %v1187 = vpop.f32.mrf.mxu0
        %v1188 = vadd.f32 %v1059, %v1187
        %v1189 = vpop.f32.mrf.mxu0
        %v1190 = vpop.f32.mrf.mxu0
        %v1191 = vadd.f32 %v1062, %v1190
        %v1192 = vpop.f32.mrf.mxu0
        %1193 = vmatprep.mubr.bf16.mxu0 0
        %1194 = vmatmul.mubr.bf16.gmra.mxu0 %v1119
        %v1195 = vpop.f32.mrf.mxu0
        %v1196 = vadd.f32 %v1067, %v1195
        %v1197 = vpop.f32.mrf.mxu0
        %v1198 = vpop.f32.mrf.mxu0
        %v1199 = vadd.f32 %v1070, %v1198
        %v1200 = vpop.f32.mrf.mxu0
        %1201 = vdwg.mxu0
        %s1202 = scalar_lea.vmem %s3, 96
        %v1203 = vld [vmem:[%s1202] sm:$0xf]
        %v1204 = vld [vmem:[%s1202 + $0x4] sm:$0xf]
        %v1205 = vld [vmem:[%s1202 + $0x8] sm:$0xf]
        %v1206 = vld [vmem:[%s1202 + $0xc] sm:$0xf]
        %v1207 = vld [vmem:[%s1202 + $0x10] sm:$0xf]
        %v1208 = vld [vmem:[%s1202 + $0x14] sm:$0xf]
        %v1209 = vld [vmem:[%s1202 + $0x18] sm:$0xf]
        %v1210 = vld [vmem:[%s1202 + $0x1c] sm:$0xf]
        %v1211 = vld [vmem:[%s1202 + $0x20] sm:$0xf]
        %v1212 = vld [vmem:[%s1202 + $0x24] sm:$0xf]
        %v1213 = vld [vmem:[%s1202 + $0x28] sm:$0xf]
        %v1214 = vld [vmem:[%s1202 + $0x2c] sm:$0xf]
        %1215 = vrot.lane.b32.xlu0 %v871, 1
        %v1216 = vpop.permute.xlu0 %1215
        %1217 = vrot.lane.b32.xlu0 %v872, 1
        %v1218 = vpop.permute.xlu0 %1217
        %v1220 = vsel %vm433, 0, %v1216
        %v1223 = vsel %vm433, 0, %v1218
        %v1225 = vsel %vm442, 65537, 0
        %v1226 = vlaneseq
        %v1227 = vshrl.u32 %v1226, 7
        %v1228 = vsub.s32 0, %v1227
        %v1229 = vrot.slane %v1225, %v1228
        %vm1230 = vcmp.ne.s16.totalorder %v1229, 0
        %v1231 = vsel %vm1230, %v1220, 0
        %v1232 = vsel %vm1230, %v1223, 0
        %v1245 = vunpack.c.l.b16 %v1203
        %v1246 = vunpack.c.l.b16 %v1204
        %v1247 = vunpack.c.l.b16 %v1205
        %v1248 = vunpack.c.l.b16 %v1206
        %v1249 = vunpack.c.l.b16 %v1207
        %v1250 = vunpack.c.l.b16 %v1208
        %v1251 = vunpack.c.l.b16 %v1209
        %v1252 = vunpack.c.l.b16 %v1210
        %v1253 = vunpack.c.l.b16 %v1211
        %v1254 = vunpack.c.l.b16 %v1212
        %v1255 = vunpack.c.l.b16 %v1213
        %v1256 = vunpack.c.l.b16 %v1214
        %v1257 = vpack.c.b16 %v1246, %v1245
        %v1258 = vpack.c.b16 %v1248, %v1247
        %v1259 = vpack.c.b16 %v1250, %v1249
        %v1260 = vpack.c.b16 %v1252, %v1251
        %v1261 = vpack.c.b16 %v1254, %v1253
        %v1262 = vpack.c.b16 %v1256, %v1255
        %v1264 = vsel %vm973, %v1257, 0
        %v1267 = vsel %vm973, %v1258, 0
        %v1270 = vsel %vm973, %v1259, 0
        %v1273 = vsel %vm973, %v1260, 0
        %v1276 = vsel %vm973, %v1261, 0
        %v1279 = vsel %vm973, %v1262, 0
        %1281 = vmatprep.subr.bf16.mxu0 0
        %1282 = vmatpush1.bf16.msra.mxu0 0
        %1283 = vmatprep.subr.bf16.mxu0 0
        %1284 = vmatpush1.bf16.msra.mxu0 0
        %1285 = vmatprep.subr.bf16.mxu0 0
        %1286 = vmatpush1.bf16.msra.mxu0 0
        %1287 = vmatprep.subr.bf16.mxu0 0
        %1288 = vmatpush1.bf16.msra.mxu0 0
        %1289 = vmatprep.subr.bf16.mxu0 0
        %1290 = vmatpush1.bf16.msra.mxu0 0
        %1291 = vmatprep.subr.bf16.mxu0 0
        %1292 = vmatpush1.bf16.msra.mxu0 0
        %1293 = vmatprep.subr.bf16.mxu0 0
        %1294 = vmatpush1.bf16.msra.mxu0 %v1232
        %1295 = vmatprep.subr.bf16.mxu0 0
        %1296 = vmatpush1.bf16.msra.mxu0 %v1231
        %1297 = vmatprep.subr.bf16.mxu0 0
        %1298 = vmatpush2.bf16.msra.mxu0 0
        %1299 = vmatprep.subr.bf16.mxu0 0
        %1300 = vmatpush2.bf16.msra.mxu0 0
        %1301 = vmatprep.subr.bf16.mxu0 0
        %1302 = vmatpush2.bf16.msra.mxu0 0
        %1303 = vmatprep.subr.bf16.mxu0 0
        %1304 = vmatpush2.bf16.msra.mxu0 0
        %1305 = vmatprep.subr.bf16.mxu0 0
        %1306 = vmatpush2.bf16.msra.mxu0 0
        %1307 = vmatprep.subr.bf16.mxu0 0
        %1308 = vmatpush2.bf16.msra.mxu0 0
        %1309 = vmatprep.subr.bf16.mxu0 0
        %1310 = vmatpush2.bf16.msra.mxu0 0
        %1311 = vmatprep.subr.bf16.mxu0 0
        %1312 = vmatpush2.bf16.msra.mxu0 0
        %1313 = vmatprep.mubr.bf16.mxu0 0
        %1314 = vmatmul.mubr.bf16.gmra.mxu0 %v1264
        %v1315 = vpop.f32.mrf.mxu0
        %v1316 = vadd.f32 0.0, %v1315
        %v1317 = vpop.f32.mrf.mxu0
        %v1318 = vpop.f32.mrf.mxu0
        %v1319 = vadd.f32 0.0, %v1318
        %v1320 = vpop.f32.mrf.mxu0
        %1321 = vmatprep.mubr.bf16.mxu0 0
        %1322 = vmatmul.mubr.bf16.gmra.mxu0 %v1267
        %v1323 = vpop.f32.mrf.mxu0
        %v1324 = vadd.f32 0.0, %v1323
        %v1325 = vpop.f32.mrf.mxu0
        %v1326 = vpop.f32.mrf.mxu0
        %v1327 = vadd.f32 0.0, %v1326
        %v1328 = vpop.f32.mrf.mxu0
        %1329 = vmatprep.mubr.bf16.mxu0 0
        %1330 = vmatmul.mubr.bf16.gmra.mxu0 %v1270
        %v1331 = vpop.f32.mrf.mxu0
        %v1332 = vadd.f32 0.0, %v1331
        %v1333 = vpop.f32.mrf.mxu0
        %v1334 = vpop.f32.mrf.mxu0
        %v1335 = vadd.f32 0.0, %v1334
        %v1336 = vpop.f32.mrf.mxu0
        %1337 = vmatprep.mubr.bf16.mxu0 0
        %1338 = vmatmul.mubr.bf16.gmra.mxu0 %v1273
        %v1339 = vpop.f32.mrf.mxu0
        %v1340 = vadd.f32 0.0, %v1339
        %v1341 = vpop.f32.mrf.mxu0
        %v1342 = vpop.f32.mrf.mxu0
        %v1343 = vadd.f32 0.0, %v1342
        %v1344 = vpop.f32.mrf.mxu0
        %1345 = vmatprep.mubr.bf16.mxu0 0
        %1346 = vmatmul.mubr.bf16.gmra.mxu0 %v1276
        %v1347 = vpop.f32.mrf.mxu0
        %v1348 = vadd.f32 0.0, %v1347
        %v1349 = vpop.f32.mrf.mxu0
        %v1350 = vpop.f32.mrf.mxu0
        %v1351 = vadd.f32 0.0, %v1350
        %v1352 = vpop.f32.mrf.mxu0
        %1353 = vmatprep.mubr.bf16.mxu0 0
        %1354 = vmatmul.mubr.bf16.gmra.mxu0 %v1279
        %v1355 = vpop.f32.mrf.mxu0
        %v1356 = vadd.f32 0.0, %v1355
        %v1357 = vpop.f32.mrf.mxu0
        %v1358 = vpop.f32.mrf.mxu0
        %v1359 = vadd.f32 0.0, %v1358
        %v1360 = vpop.f32.mrf.mxu0
        %1361 = vdwg.mxu0
        %v1362 = vadd.f32 %v1156, %v1316
        %v1363 = vadd.f32 %v1159, %v1319
        %v1364 = vadd.f32 %v1164, %v1324
        %v1365 = vadd.f32 %v1167, %v1327
        %v1366 = vadd.f32 %v1172, %v1332
        %v1367 = vadd.f32 %v1175, %v1335
        %v1368 = vadd.f32 %v1180, %v1340
        %v1369 = vadd.f32 %v1183, %v1343
        %v1370 = vadd.f32 %v1188, %v1348
        %v1371 = vadd.f32 %v1191, %v1351
        %v1372 = vadd.f32 %v1196, %v1356
        %v1373 = vadd.f32 %v1199, %v1359
        %s1374 = scalar_lea.vmem %s3, 144
        %v1375 = vld [vmem:[%s1374] sm:$0xf]
        %v1376 = vld [vmem:[%s1374 + $0x4] sm:$0xf]
        %v1377 = vld [vmem:[%s1374 + $0x8] sm:$0xf]
        %v1378 = vld [vmem:[%s1374 + $0xc] sm:$0xf]
        %v1379 = vld [vmem:[%s1374 + $0x10] sm:$0xf]
        %v1380 = vld [vmem:[%s1374 + $0x14] sm:$0xf]
        %v1381 = vld [vmem:[%s1374 + $0x18] sm:$0xf]
        %v1382 = vld [vmem:[%s1374 + $0x1c] sm:$0xf]
        %v1383 = vld [vmem:[%s1374 + $0x20] sm:$0xf]
        %v1384 = vld [vmem:[%s1374 + $0x24] sm:$0xf]
        %v1385 = vld [vmem:[%s1374 + $0x28] sm:$0xf]
        %v1386 = vld [vmem:[%s1374 + $0x2c] sm:$0xf]
        %v1399 = vunpack.c.l.b16 %v1375
        %v1400 = vunpack.c.l.b16 %v1376
        %v1401 = vunpack.c.l.b16 %v1377
        %v1402 = vunpack.c.l.b16 %v1378
        %v1403 = vunpack.c.l.b16 %v1379
        %v1404 = vunpack.c.l.b16 %v1380
        %v1405 = vunpack.c.l.b16 %v1381
        %v1406 = vunpack.c.l.b16 %v1382
        %v1407 = vunpack.c.l.b16 %v1383
        %v1408 = vunpack.c.l.b16 %v1384
        %v1409 = vunpack.c.l.b16 %v1385
        %v1410 = vunpack.c.l.b16 %v1386
        %v1411 = vpack.c.b16 %v1400, %v1399
        %v1412 = vpack.c.b16 %v1402, %v1401
        %v1413 = vpack.c.b16 %v1404, %v1403
        %v1414 = vpack.c.b16 %v1406, %v1405
        %v1415 = vpack.c.b16 %v1408, %v1407
        %v1416 = vpack.c.b16 %v1410, %v1409
        %v1418 = vsel %vm973, %v1411, 0
        %v1421 = vsel %vm973, %v1412, 0
        %v1424 = vsel %vm973, %v1413, 0
        %v1427 = vsel %vm973, %v1414, 0
        %v1430 = vsel %vm973, %v1415, 0
        %v1433 = vsel %vm973, %v1416, 0
        %1435 = vmatprep.subr.bf16.mxu0 0
        %1436 = vmatpush1.bf16.msra.mxu0 0
        %1437 = vmatprep.subr.bf16.mxu0 0
        %1438 = vmatpush1.bf16.msra.mxu0 0
        %1439 = vmatprep.subr.bf16.mxu0 0
        %1440 = vmatpush1.bf16.msra.mxu0 0
        %1441 = vmatprep.subr.bf16.mxu0 0
        %1442 = vmatpush1.bf16.msra.mxu0 0
        %1443 = vmatprep.subr.bf16.mxu0 0
        %1444 = vmatpush1.bf16.msra.mxu0 0
        %1445 = vmatprep.subr.bf16.mxu0 0
        %1446 = vmatpush1.bf16.msra.mxu0 0
        %1447 = vmatprep.subr.bf16.mxu0 0
        %1448 = vmatpush1.bf16.msra.mxu0 %v872
        %1449 = vmatprep.subr.bf16.mxu0 0
        %1450 = vmatpush1.bf16.msra.mxu0 %v871
        %1451 = vmatprep.subr.bf16.mxu0 0
        %1452 = vmatpush2.bf16.msra.mxu0 0
        %1453 = vmatprep.subr.bf16.mxu0 0
        %1454 = vmatpush2.bf16.msra.mxu0 0
        %1455 = vmatprep.subr.bf16.mxu0 0
        %1456 = vmatpush2.bf16.msra.mxu0 0
        %1457 = vmatprep.subr.bf16.mxu0 0
        %1458 = vmatpush2.bf16.msra.mxu0 0
        %1459 = vmatprep.subr.bf16.mxu0 0
        %1460 = vmatpush2.bf16.msra.mxu0 0
        %1461 = vmatprep.subr.bf16.mxu0 0
        %1462 = vmatpush2.bf16.msra.mxu0 0
        %1463 = vmatprep.subr.bf16.mxu0 0
        %1464 = vmatpush2.bf16.msra.mxu0 0
        %1465 = vmatprep.subr.bf16.mxu0 0
        %1466 = vmatpush2.bf16.msra.mxu0 0
        %1467 = vmatprep.mubr.bf16.mxu0 0
        %1468 = vmatmul.mubr.bf16.gmra.mxu0 %v1418
        %v1469 = vpop.f32.mrf.mxu0
        %v1470 = vadd.f32 0.0, %v1469
        %v1471 = vpop.f32.mrf.mxu0
        %v1472 = vpop.f32.mrf.mxu0
        %v1473 = vadd.f32 0.0, %v1472
        %v1474 = vpop.f32.mrf.mxu0
        %1475 = vmatprep.mubr.bf16.mxu0 0
        %1476 = vmatmul.mubr.bf16.gmra.mxu0 %v1421
        %v1477 = vpop.f32.mrf.mxu0
        %v1478 = vadd.f32 0.0, %v1477
        %v1479 = vpop.f32.mrf.mxu0
        %v1480 = vpop.f32.mrf.mxu0
        %v1481 = vadd.f32 0.0, %v1480
        %v1482 = vpop.f32.mrf.mxu0
        %1483 = vmatprep.mubr.bf16.mxu0 0
        %1484 = vmatmul.mubr.bf16.gmra.mxu0 %v1424
        %v1485 = vpop.f32.mrf.mxu0
        %v1486 = vadd.f32 0.0, %v1485
        %v1487 = vpop.f32.mrf.mxu0
        %v1488 = vpop.f32.mrf.mxu0
        %v1489 = vadd.f32 0.0, %v1488
        %v1490 = vpop.f32.mrf.mxu0
        %1491 = vmatprep.mubr.bf16.mxu0 0
        %1492 = vmatmul.mubr.bf16.gmra.mxu0 %v1427
        %v1493 = vpop.f32.mrf.mxu0
        %v1494 = vadd.f32 0.0, %v1493
        %v1495 = vpop.f32.mrf.mxu0
        %v1496 = vpop.f32.mrf.mxu0
        %v1497 = vadd.f32 0.0, %v1496
        %v1498 = vpop.f32.mrf.mxu0
        %1499 = vmatprep.mubr.bf16.mxu0 0
        %1500 = vmatmul.mubr.bf16.gmra.mxu0 %v1430
        %v1501 = vpop.f32.mrf.mxu0
        %v1502 = vadd.f32 0.0, %v1501
        %v1503 = vpop.f32.mrf.mxu0
        %v1504 = vpop.f32.mrf.mxu0
        %v1505 = vadd.f32 0.0, %v1504
        %v1506 = vpop.f32.mrf.mxu0
        %1507 = vmatprep.mubr.bf16.mxu0 0
        %1508 = vmatmul.mubr.bf16.gmra.mxu0 %v1433
        %v1509 = vpop.f32.mrf.mxu0
        %v1510 = vadd.f32 0.0, %v1509
        %v1511 = vpop.f32.mrf.mxu0
        %v1512 = vpop.f32.mrf.mxu0
        %v1513 = vadd.f32 0.0, %v1512
        %v1514 = vpop.f32.mrf.mxu0
        %1515 = vdwg.mxu0
        %v1516 = vadd.f32 %v1362, %v1470
        %v1517 = vadd.f32 %v1363, %v1473
        %v1518 = vadd.f32 %v1364, %v1478
        %v1519 = vadd.f32 %v1365, %v1481
        %v1520 = vadd.f32 %v1366, %v1486
        %v1521 = vadd.f32 %v1367, %v1489
        %v1522 = vadd.f32 %v1368, %v1494
        %v1523 = vadd.f32 %v1369, %v1497
        %v1524 = vadd.f32 %v1370, %v1502
        %v1525 = vadd.f32 %v1371, %v1505
        %v1526 = vadd.f32 %v1372, %v1510
        %v1527 = vadd.f32 %v1373, %v1513
        %s1528 = scalar_lea.vmem %s3, 192
        %v1529 = vld [vmem:[%s1528] sm:$0xf]
        %v1530 = vld [vmem:[%s1528 + $0x4] sm:$0xf]
        %v1531 = vld [vmem:[%s1528 + $0x8] sm:$0xf]
        %v1532 = vld [vmem:[%s1528 + $0xc] sm:$0xf]
        %v1533 = vld [vmem:[%s1528 + $0x10] sm:$0xf]
        %v1534 = vld [vmem:[%s1528 + $0x14] sm:$0xf]
        %v1535 = vld [vmem:[%s1528 + $0x18] sm:$0xf]
        %v1536 = vld [vmem:[%s1528 + $0x1c] sm:$0xf]
        %v1537 = vld [vmem:[%s1528 + $0x20] sm:$0xf]
        %v1538 = vld [vmem:[%s1528 + $0x24] sm:$0xf]
        %v1539 = vld [vmem:[%s1528 + $0x28] sm:$0xf]
        %v1540 = vld [vmem:[%s1528 + $0x2c] sm:$0xf]
        %1541 = vrot.lane.b32.xlu0 %v871, 127
        %v1542 = vpop.permute.xlu0 %1541
        %1543 = vrot.lane.b32.xlu0 %v872, 127
        %v1544 = vpop.permute.xlu0 %1543
        %v1546 = vsel %vm666, %v1542, 0
        %v1549 = vsel %vm666, %v1544, 0
        %v1551 = vsel %vm675, 65537, 0
        %v1552 = vlaneseq
        %v1553 = vshrl.u32 %v1552, 7
        %v1554 = vsub.s32 0, %v1553
        %v1555 = vrot.slane %v1551, %v1554
        %vm1556 = vcmp.ne.s16.totalorder %v1555, 0
        %v1557 = vsel %vm1556, %v1546, 0
        %v1558 = vsel %vm1556, %v1549, 0
        %v1571 = vunpack.c.l.b16 %v1529
        %v1572 = vunpack.c.l.b16 %v1530
        %v1573 = vunpack.c.l.b16 %v1531
        %v1574 = vunpack.c.l.b16 %v1532
        %v1575 = vunpack.c.l.b16 %v1533
        %v1576 = vunpack.c.l.b16 %v1534
        %v1577 = vunpack.c.l.b16 %v1535
        %v1578 = vunpack.c.l.b16 %v1536
        %v1579 = vunpack.c.l.b16 %v1537
        %v1580 = vunpack.c.l.b16 %v1538
        %v1581 = vunpack.c.l.b16 %v1539
        %v1582 = vunpack.c.l.b16 %v1540
        %v1583 = vpack.c.b16 %v1572, %v1571
        %v1584 = vpack.c.b16 %v1574, %v1573
        %v1585 = vpack.c.b16 %v1576, %v1575
        %v1586 = vpack.c.b16 %v1578, %v1577
        %v1587 = vpack.c.b16 %v1580, %v1579
        %v1588 = vpack.c.b16 %v1582, %v1581
        %v1590 = vsel %vm973, %v1583, 0
        %v1593 = vsel %vm973, %v1584, 0
        %v1596 = vsel %vm973, %v1585, 0
        %v1599 = vsel %vm973, %v1586, 0
        %v1602 = vsel %vm973, %v1587, 0
        %v1605 = vsel %vm973, %v1588, 0
        %1607 = vmatprep.subr.bf16.mxu0 0
        %1608 = vmatpush1.bf16.msra.mxu0 0
        %1609 = vmatprep.subr.bf16.mxu0 0
        %1610 = vmatpush1.bf16.msra.mxu0 0
        %1611 = vmatprep.subr.bf16.mxu0 0
        %1612 = vmatpush1.bf16.msra.mxu0 0
        %1613 = vmatprep.subr.bf16.mxu0 0
        %1614 = vmatpush1.bf16.msra.mxu0 0
        %1615 = vmatprep.subr.bf16.mxu0 0
        %1616 = vmatpush1.bf16.msra.mxu0 0
        %1617 = vmatprep.subr.bf16.mxu0 0
        %1618 = vmatpush1.bf16.msra.mxu0 0
        %1619 = vmatprep.subr.bf16.mxu0 0
        %1620 = vmatpush1.bf16.msra.mxu0 %v1558
        %1621 = vmatprep.subr.bf16.mxu0 0
        %1622 = vmatpush1.bf16.msra.mxu0 %v1557
        %1623 = vmatprep.subr.bf16.mxu0 0
        %1624 = vmatpush2.bf16.msra.mxu0 0
        %1625 = vmatprep.subr.bf16.mxu0 0
        %1626 = vmatpush2.bf16.msra.mxu0 0
        %1627 = vmatprep.subr.bf16.mxu0 0
        %1628 = vmatpush2.bf16.msra.mxu0 0
        %1629 = vmatprep.subr.bf16.mxu0 0
        %1630 = vmatpush2.bf16.msra.mxu0 0
        %1631 = vmatprep.subr.bf16.mxu0 0
        %1632 = vmatpush2.bf16.msra.mxu0 0
        %1633 = vmatprep.subr.bf16.mxu0 0
        %1634 = vmatpush2.bf16.msra.mxu0 0
        %1635 = vmatprep.subr.bf16.mxu0 0
        %1636 = vmatpush2.bf16.msra.mxu0 0
        %1637 = vmatprep.subr.bf16.mxu0 0
        %1638 = vmatpush2.bf16.msra.mxu0 0
        %1639 = vmatprep.mubr.bf16.mxu0 0
        %1640 = vmatmul.mubr.bf16.gmra.mxu0 %v1590
        %v1641 = vpop.f32.mrf.mxu0
        %v1642 = vadd.f32 0.0, %v1641
        %v1643 = vpop.f32.mrf.mxu0
        %v1644 = vpop.f32.mrf.mxu0
        %v1645 = vadd.f32 0.0, %v1644
        %v1646 = vpop.f32.mrf.mxu0
        %1647 = vmatprep.mubr.bf16.mxu0 0
        %1648 = vmatmul.mubr.bf16.gmra.mxu0 %v1593
        %v1649 = vpop.f32.mrf.mxu0
        %v1650 = vadd.f32 0.0, %v1649
        %v1651 = vpop.f32.mrf.mxu0
        %v1652 = vpop.f32.mrf.mxu0
        %v1653 = vadd.f32 0.0, %v1652
        %v1654 = vpop.f32.mrf.mxu0
        %1655 = vmatprep.mubr.bf16.mxu0 0
        %1656 = vmatmul.mubr.bf16.gmra.mxu0 %v1596
        %v1657 = vpop.f32.mrf.mxu0
        %v1658 = vadd.f32 0.0, %v1657
        %v1659 = vpop.f32.mrf.mxu0
        %v1660 = vpop.f32.mrf.mxu0
        %v1661 = vadd.f32 0.0, %v1660
        %v1662 = vpop.f32.mrf.mxu0
        %1663 = vmatprep.mubr.bf16.mxu0 0
        %1664 = vmatmul.mubr.bf16.gmra.mxu0 %v1599
        %v1665 = vpop.f32.mrf.mxu0
        %v1666 = vadd.f32 0.0, %v1665
        %v1667 = vpop.f32.mrf.mxu0
        %v1668 = vpop.f32.mrf.mxu0
        %v1669 = vadd.f32 0.0, %v1668
        %v1670 = vpop.f32.mrf.mxu0
        %1671 = vmatprep.mubr.bf16.mxu0 0
        %1672 = vmatmul.mubr.bf16.gmra.mxu0 %v1602
        %v1673 = vpop.f32.mrf.mxu0
        %v1674 = vadd.f32 0.0, %v1673
        %v1675 = vpop.f32.mrf.mxu0
        %v1676 = vpop.f32.mrf.mxu0
        %v1677 = vadd.f32 0.0, %v1676
        %v1678 = vpop.f32.mrf.mxu0
        %1679 = vmatprep.mubr.bf16.mxu0 0
        %1680 = vmatmul.mubr.bf16.gmra.mxu0 %v1605
        %v1681 = vpop.f32.mrf.mxu0
        %v1682 = vadd.f32 0.0, %v1681
        %v1683 = vpop.f32.mrf.mxu0
        %v1684 = vpop.f32.mrf.mxu0
        %v1685 = vadd.f32 0.0, %v1684
        %v1686 = vpop.f32.mrf.mxu0
        %1687 = vdwg.mxu0
        %v1688 = vadd.f32 %v1516, %v1642
        %v1689 = vadd.f32 %v1517, %v1645
        %v1690 = vadd.f32 %v1518, %v1650
        %v1691 = vadd.f32 %v1519, %v1653
        %v1692 = vadd.f32 %v1520, %v1658
        %v1693 = vadd.f32 %v1521, %v1661
        %v1694 = vadd.f32 %v1522, %v1666
        %v1695 = vadd.f32 %v1523, %v1669
        %v1696 = vadd.f32 %v1524, %v1674
        %v1697 = vadd.f32 %v1525, %v1677
        %v1698 = vadd.f32 %v1526, %v1682
        %v1699 = vadd.f32 %v1527, %v1685
        %s1700 = scalar_lea.vmem %s3, 240
        %v1701 = vld [vmem:[%s1700] sm:$0xf]
        %v1702 = vld [vmem:[%s1700 + $0x4] sm:$0xf]
        %v1703 = vld [vmem:[%s1700 + $0x8] sm:$0xf]
        %v1704 = vld [vmem:[%s1700 + $0xc] sm:$0xf]
        %v1705 = vld [vmem:[%s1700 + $0x10] sm:$0xf]
        %v1706 = vld [vmem:[%s1700 + $0x14] sm:$0xf]
        %v1707 = vld [vmem:[%s1700 + $0x18] sm:$0xf]
        %v1708 = vld [vmem:[%s1700 + $0x1c] sm:$0xf]
        %v1709 = vld [vmem:[%s1700 + $0x20] sm:$0xf]
        %v1710 = vld [vmem:[%s1700 + $0x24] sm:$0xf]
        %v1711 = vld [vmem:[%s1700 + $0x28] sm:$0xf]
        %v1712 = vld [vmem:[%s1700 + $0x2c] sm:$0xf]
        %1713 = vrot.lane.b32.xlu0 %v871, 126
        %v1714 = vpop.permute.xlu0 %1713
        %1715 = vrot.lane.b32.xlu0 %v872, 126
        %v1716 = vpop.permute.xlu0 %1715
        %v1718 = vsel %vm756, %v1714, 0
        %v1721 = vsel %vm756, %v1716, 0
        %v1723 = vsel %vm765, 65537, 0
        %v1724 = vlaneseq
        %v1725 = vshrl.u32 %v1724, 7
        %v1726 = vsub.s32 0, %v1725
        %v1727 = vrot.slane %v1723, %v1726
        %vm1728 = vcmp.ne.s16.totalorder %v1727, 0
        %v1729 = vsel %vm1728, %v1718, 0
        %v1730 = vsel %vm1728, %v1721, 0
        %v1743 = vunpack.c.l.b16 %v1701
        %v1744 = vunpack.c.l.b16 %v1702
        %v1745 = vunpack.c.l.b16 %v1703
        %v1746 = vunpack.c.l.b16 %v1704
        %v1747 = vunpack.c.l.b16 %v1705
        %v1748 = vunpack.c.l.b16 %v1706
        %v1749 = vunpack.c.l.b16 %v1707
        %v1750 = vunpack.c.l.b16 %v1708
        %v1751 = vunpack.c.l.b16 %v1709
        %v1752 = vunpack.c.l.b16 %v1710
        %v1753 = vunpack.c.l.b16 %v1711
        %v1754 = vunpack.c.l.b16 %v1712
        %v1755 = vpack.c.b16 %v1744, %v1743
        %v1756 = vpack.c.b16 %v1746, %v1745
        %v1757 = vpack.c.b16 %v1748, %v1747
        %v1758 = vpack.c.b16 %v1750, %v1749
        %v1759 = vpack.c.b16 %v1752, %v1751
        %v1760 = vpack.c.b16 %v1754, %v1753
        %v1762 = vsel %vm973, %v1755, 0
        %v1765 = vsel %vm973, %v1756, 0
        %v1768 = vsel %vm973, %v1757, 0
        %v1771 = vsel %vm973, %v1758, 0
        %v1774 = vsel %vm973, %v1759, 0
        %v1777 = vsel %vm973, %v1760, 0
        %1779 = vmatprep.subr.bf16.mxu0 0
        %1780 = vmatpush1.bf16.msra.mxu0 0
        %1781 = vmatprep.subr.bf16.mxu0 0
        %1782 = vmatpush1.bf16.msra.mxu0 0
        %1783 = vmatprep.subr.bf16.mxu0 0
        %1784 = vmatpush1.bf16.msra.mxu0 0
        %1785 = vmatprep.subr.bf16.mxu0 0
        %1786 = vmatpush1.bf16.msra.mxu0 0
        %1787 = vmatprep.subr.bf16.mxu0 0
        %1788 = vmatpush1.bf16.msra.mxu0 0
        %1789 = vmatprep.subr.bf16.mxu0 0
        %1790 = vmatpush1.bf16.msra.mxu0 0
        %1791 = vmatprep.subr.bf16.mxu0 0
        %1792 = vmatpush1.bf16.msra.mxu0 %v1730
        %1793 = vmatprep.subr.bf16.mxu0 0
        %1794 = vmatpush1.bf16.msra.mxu0 %v1729
        %1795 = vmatprep.subr.bf16.mxu0 0
        %1796 = vmatpush2.bf16.msra.mxu0 0
        %1797 = vmatprep.subr.bf16.mxu0 0
        %1798 = vmatpush2.bf16.msra.mxu0 0
        %1799 = vmatprep.subr.bf16.mxu0 0
        %1800 = vmatpush2.bf16.msra.mxu0 0
        %1801 = vmatprep.subr.bf16.mxu0 0
        %1802 = vmatpush2.bf16.msra.mxu0 0
        %1803 = vmatprep.subr.bf16.mxu0 0
        %1804 = vmatpush2.bf16.msra.mxu0 0
        %1805 = vmatprep.subr.bf16.mxu0 0
        %1806 = vmatpush2.bf16.msra.mxu0 0
        %1807 = vmatprep.subr.bf16.mxu0 0
        %1808 = vmatpush2.bf16.msra.mxu0 0
        %1809 = vmatprep.subr.bf16.mxu0 0
        %1810 = vmatpush2.bf16.msra.mxu0 0
        %1811 = vmatprep.mubr.bf16.mxu0 0
        %1812 = vmatmul.mubr.bf16.gmra.mxu0 %v1762
        %v1813 = vpop.f32.mrf.mxu0
        %v1814 = vadd.f32 0.0, %v1813
        %v1815 = vpop.f32.mrf.mxu0
        %v1816 = vpop.f32.mrf.mxu0
        %v1817 = vadd.f32 0.0, %v1816
        %v1818 = vpop.f32.mrf.mxu0
        %1819 = vmatprep.mubr.bf16.mxu0 0
        %1820 = vmatmul.mubr.bf16.gmra.mxu0 %v1765
        %v1821 = vpop.f32.mrf.mxu0
        %v1822 = vadd.f32 0.0, %v1821
        %v1823 = vpop.f32.mrf.mxu0
        %v1824 = vpop.f32.mrf.mxu0
        %v1825 = vadd.f32 0.0, %v1824
        %v1826 = vpop.f32.mrf.mxu0
        %1827 = vmatprep.mubr.bf16.mxu0 0
        %1828 = vmatmul.mubr.bf16.gmra.mxu0 %v1768
        %v1829 = vpop.f32.mrf.mxu0
        %v1830 = vadd.f32 0.0, %v1829
        %v1831 = vpop.f32.mrf.mxu0
        %v1832 = vpop.f32.mrf.mxu0
        %v1833 = vadd.f32 0.0, %v1832
        %v1834 = vpop.f32.mrf.mxu0
        %1835 = vmatprep.mubr.bf16.mxu0 0
        %1836 = vmatmul.mubr.bf16.gmra.mxu0 %v1771
        %v1837 = vpop.f32.mrf.mxu0
        %v1838 = vadd.f32 0.0, %v1837
        %v1839 = vpop.f32.mrf.mxu0
        %v1840 = vpop.f32.mrf.mxu0
        %v1841 = vadd.f32 0.0, %v1840
        %v1842 = vpop.f32.mrf.mxu0
        %1843 = vmatprep.mubr.bf16.mxu0 0
        %1844 = vmatmul.mubr.bf16.gmra.mxu0 %v1774
        %v1845 = vpop.f32.mrf.mxu0
        %v1846 = vadd.f32 0.0, %v1845
        %v1847 = vpop.f32.mrf.mxu0
        %v1848 = vpop.f32.mrf.mxu0
        %v1849 = vadd.f32 0.0, %v1848
        %v1850 = vpop.f32.mrf.mxu0
        %1851 = vmatprep.mubr.bf16.mxu0 0
        %1852 = vmatmul.mubr.bf16.gmra.mxu0 %v1777
        %v1853 = vpop.f32.mrf.mxu0
        %v1854 = vadd.f32 0.0, %v1853
        %v1855 = vpop.f32.mrf.mxu0
        %v1856 = vpop.f32.mrf.mxu0
        %v1857 = vadd.f32 0.0, %v1856
        %v1858 = vpop.f32.mrf.mxu0
        %1859 = vdwg.mxu0
        %v1860 = vadd.f32 %v1688, %v1814
        %v1861 = vadd.f32 %v1689, %v1817
        %v1862 = vadd.f32 %v1690, %v1822
        %v1863 = vadd.f32 %v1691, %v1825
        %v1864 = vadd.f32 %v1692, %v1830
        %v1865 = vadd.f32 %v1693, %v1833
        %v1866 = vadd.f32 %v1694, %v1838
        %v1867 = vadd.f32 %v1695, %v1841
        %v1868 = vadd.f32 %v1696, %v1846
        %v1869 = vadd.f32 %v1697, %v1849
        %v1870 = vadd.f32 %v1698, %v1854
        %v1871 = vadd.f32 %v1699, %v1857
        %s1872 = scalar_lea.vmem %s3, 288
        %v1873 = vld [vmem:[%s1872] sm:$0xf]
        %v1874 = vld [vmem:[%s1872 + $0x4] sm:$0xf]
        %v1875 = vld [vmem:[%s1872 + $0x8] sm:$0xf]
        %v1876 = vld [vmem:[%s1872 + $0xc] sm:$0xf]
        %v1877 = vld [vmem:[%s1872 + $0x10] sm:$0xf]
        %v1878 = vld [vmem:[%s1872 + $0x14] sm:$0xf]
        %v1879 = vld [vmem:[%s1872 + $0x18] sm:$0xf]
        %v1880 = vld [vmem:[%s1872 + $0x1c] sm:$0xf]
        %v1881 = vld [vmem:[%s1872 + $0x20] sm:$0xf]
        %v1882 = vld [vmem:[%s1872 + $0x24] sm:$0xf]
        %v1883 = vld [vmem:[%s1872 + $0x28] sm:$0xf]
        %v1884 = vld [vmem:[%s1872 + $0x2c] sm:$0xf]
        %1885 = vrot.lane.b32.xlu0 %v871, 125
        %v1886 = vpop.permute.xlu0 %1885
        %1887 = vrot.lane.b32.xlu0 %v872, 125
        %v1888 = vpop.permute.xlu0 %1887
        %vm1889 = vcmask 105472
        %v1891 = vsel %vm1889, %v1886, 0
        %v1894 = vsel %vm1889, %v1888, 0
        %vm1896 = vcmp.ge.s32.totalorder %v398, 4294967293
        %vm1897 = vcmp.lt.s32.totalorder %v398, 13
        %vm1898 = vmand %vm1896, %vm1897
        %v1899 = vsel %vm1898, 1, 0
        %vm1900 = vcmp.eq.s32.totalorder %v1899, 1
        %vm1901 = vmpackc.low %vm1900, %vm1900
        %v1902 = vsel %vm1901, 65537, 0
        %v1903 = vlaneseq
        %v1904 = vshrl.u32 %v1903, 7
        %v1905 = vsub.s32 0, %v1904
        %v1906 = vrot.slane %v1902, %v1905
        %vm1907 = vcmp.ne.s16.totalorder %v1906, 0
        %v1908 = vsel %vm1907, %v1891, 0
        %v1909 = vsel %vm1907, %v1894, 0
        %v1922 = vunpack.c.l.b16 %v1873
        %v1923 = vunpack.c.l.b16 %v1874
        %v1924 = vunpack.c.l.b16 %v1875
        %v1925 = vunpack.c.l.b16 %v1876
        %v1926 = vunpack.c.l.b16 %v1877
        %v1927 = vunpack.c.l.b16 %v1878
        %v1928 = vunpack.c.l.b16 %v1879
        %v1929 = vunpack.c.l.b16 %v1880
        %v1930 = vunpack.c.l.b16 %v1881
        %v1931 = vunpack.c.l.b16 %v1882
        %v1932 = vunpack.c.l.b16 %v1883
        %v1933 = vunpack.c.l.b16 %v1884
        %v1934 = vpack.c.b16 %v1923, %v1922
        %v1935 = vpack.c.b16 %v1925, %v1924
        %v1936 = vpack.c.b16 %v1927, %v1926
        %v1937 = vpack.c.b16 %v1929, %v1928
        %v1938 = vpack.c.b16 %v1931, %v1930
        %v1939 = vpack.c.b16 %v1933, %v1932
        %v1941 = vsel %vm973, %v1934, 0
        %v1944 = vsel %vm973, %v1935, 0
        %v1947 = vsel %vm973, %v1936, 0
        %v1950 = vsel %vm973, %v1937, 0
        %v1953 = vsel %vm973, %v1938, 0
        %v1956 = vsel %vm973, %v1939, 0
        %1958 = vmatprep.subr.bf16.mxu0 0
        %1959 = vmatpush1.bf16.msra.mxu0 0
        %1960 = vmatprep.subr.bf16.mxu0 0
        %1961 = vmatpush1.bf16.msra.mxu0 0
        %1962 = vmatprep.subr.bf16.mxu0 0
        %1963 = vmatpush1.bf16.msra.mxu0 0
        %1964 = vmatprep.subr.bf16.mxu0 0
        %1965 = vmatpush1.bf16.msra.mxu0 0
        %1966 = vmatprep.subr.bf16.mxu0 0
        %1967 = vmatpush1.bf16.msra.mxu0 0
        %1968 = vmatprep.subr.bf16.mxu0 0
        %1969 = vmatpush1.bf16.msra.mxu0 0
        %1970 = vmatprep.subr.bf16.mxu0 0
        %1971 = vmatpush1.bf16.msra.mxu0 %v1909
        %1972 = vmatprep.subr.bf16.mxu0 0
        %1973 = vmatpush1.bf16.msra.mxu0 %v1908
        %1974 = vmatprep.subr.bf16.mxu0 0
        %1975 = vmatpush2.bf16.msra.mxu0 0
        %1976 = vmatprep.subr.bf16.mxu0 0
        %1977 = vmatpush2.bf16.msra.mxu0 0
        %1978 = vmatprep.subr.bf16.mxu0 0
        %1979 = vmatpush2.bf16.msra.mxu0 0
        %1980 = vmatprep.subr.bf16.mxu0 0
        %1981 = vmatpush2.bf16.msra.mxu0 0
        %1982 = vmatprep.subr.bf16.mxu0 0
        %1983 = vmatpush2.bf16.msra.mxu0 0
        %1984 = vmatprep.subr.bf16.mxu0 0
        %1985 = vmatpush2.bf16.msra.mxu0 0
        %1986 = vmatprep.subr.bf16.mxu0 0
        %1987 = vmatpush2.bf16.msra.mxu0 0
        %1988 = vmatprep.subr.bf16.mxu0 0
        %1989 = vmatpush2.bf16.msra.mxu0 0
        %1990 = vmatprep.mubr.bf16.mxu0 0
        %1991 = vmatmul.mubr.bf16.gmra.mxu0 %v1941
        %v1992 = vpop.f32.mrf.mxu0
        %v1993 = vadd.f32 0.0, %v1992
        %v1994 = vpop.f32.mrf.mxu0
        %v1995 = vpop.f32.mrf.mxu0
        %v1996 = vadd.f32 0.0, %v1995
        %v1997 = vpop.f32.mrf.mxu0
        %1998 = vmatprep.mubr.bf16.mxu0 0
        %1999 = vmatmul.mubr.bf16.gmra.mxu0 %v1944
        %v2000 = vpop.f32.mrf.mxu0
        %v2001 = vadd.f32 0.0, %v2000
        %v2002 = vpop.f32.mrf.mxu0
        %v2003 = vpop.f32.mrf.mxu0
        %v2004 = vadd.f32 0.0, %v2003
        %v2005 = vpop.f32.mrf.mxu0
        %2006 = vmatprep.mubr.bf16.mxu0 0
        %2007 = vmatmul.mubr.bf16.gmra.mxu0 %v1947
        %v2008 = vpop.f32.mrf.mxu0
        %v2009 = vadd.f32 0.0, %v2008
        %v2010 = vpop.f32.mrf.mxu0
        %v2011 = vpop.f32.mrf.mxu0
        %v2012 = vadd.f32 0.0, %v2011
        %v2013 = vpop.f32.mrf.mxu0
        %2014 = vmatprep.mubr.bf16.mxu0 0
        %2015 = vmatmul.mubr.bf16.gmra.mxu0 %v1950
        %v2016 = vpop.f32.mrf.mxu0
        %v2017 = vadd.f32 0.0, %v2016
        %v2018 = vpop.f32.mrf.mxu0
        %v2019 = vpop.f32.mrf.mxu0
        %v2020 = vadd.f32 0.0, %v2019
        %v2021 = vpop.f32.mrf.mxu0
        %2022 = vmatprep.mubr.bf16.mxu0 0
        %2023 = vmatmul.mubr.bf16.gmra.mxu0 %v1953
        %v2024 = vpop.f32.mrf.mxu0
        %v2025 = vadd.f32 0.0, %v2024
        %v2026 = vpop.f32.mrf.mxu0
        %v2027 = vpop.f32.mrf.mxu0
        %v2028 = vadd.f32 0.0, %v2027
        %v2029 = vpop.f32.mrf.mxu0
        %2030 = vmatprep.mubr.bf16.mxu0 0
        %2031 = vmatmul.mubr.bf16.gmra.mxu0 %v1956
        %v2032 = vpop.f32.mrf.mxu0
        %v2033 = vadd.f32 0.0, %v2032
        %v2034 = vpop.f32.mrf.mxu0
        %v2035 = vpop.f32.mrf.mxu0
        %v2036 = vadd.f32 0.0, %v2035
        %v2037 = vpop.f32.mrf.mxu0
        %2038 = vdwg.mxu0
        %v2039 = vadd.f32 %v1860, %v1993
        %v2040 = vadd.f32 %v1861, %v1996
        %v2041 = vadd.f32 %v1862, %v2001
        %v2042 = vadd.f32 %v1863, %v2004
        %v2043 = vadd.f32 %v1864, %v2009
        %v2044 = vadd.f32 %v1865, %v2012
        %v2045 = vadd.f32 %v1866, %v2017
        %v2046 = vadd.f32 %v1867, %v2020
        %v2047 = vadd.f32 %v1868, %v2025
        %v2048 = vadd.f32 %v1869, %v2028
        %v2049 = vadd.f32 %v1870, %v2033
        %v2050 = vadd.f32 %v1871, %v2036
        %v2051 = vld [vmem:[%s4] sm:$0xff]
        %v2052 = vld [vmem:[%s4 + $0x8] sm:$0xff]
        %v2053 = vld [vmem:[%s4 + $0x10] sm:$0xff]
        %v2054 = vld [vmem:[%s4 + $0x18] sm:$0xff]
        %v2055 = vld [vmem:[%s4 + $0x20] sm:$0xff]
        %v2056 = vld [vmem:[%s4 + $0x28] sm:$0xff]
        %v2057 = vld [vmem:[%s4 + $0x30] sm:$0xff]
        %v2058 = vld [vmem:[%s4 + $0x38] sm:$0xff]
        %v2059 = vld [vmem:[%s4 + $0x40] sm:$0xff]
        %v2060 = vld [vmem:[%s4 + $0x48] sm:$0xff]
        %v2061 = vld [vmem:[%s4 + $0x50] sm:$0xff]
        %v2062 = vld [vmem:[%s4 + $0x58] sm:$0xff]
        %2064 = vset.pattern.permute.xlu0 0
        %2065 = vperm.xlu0 %2064, %v2051
        %v2066 = vpop.permute.xlu0 %2065
        %2069 = vset.pattern.permute.xlu0 0
        %2070 = vperm.xlu0 %2069, %v2052
        %v2071 = vpop.permute.xlu0 %2070
        %2074 = vset.pattern.permute.xlu0 0
        %2075 = vperm.xlu0 %2074, %v2053
        %v2076 = vpop.permute.xlu0 %2075
        %2079 = vset.pattern.permute.xlu0 0
        %2080 = vperm.xlu0 %2079, %v2054
        %v2081 = vpop.permute.xlu0 %2080
        %2084 = vset.pattern.permute.xlu0 0
        %2085 = vperm.xlu0 %2084, %v2055
        %v2086 = vpop.permute.xlu0 %2085
        %2089 = vset.pattern.permute.xlu0 0
        %2090 = vperm.xlu0 %2089, %v2056
        %v2091 = vpop.permute.xlu0 %2090
        %2094 = vset.pattern.permute.xlu0 0
        %2095 = vperm.xlu0 %2094, %v2057
        %v2096 = vpop.permute.xlu0 %2095
        %2099 = vset.pattern.permute.xlu0 0
        %2100 = vperm.xlu0 %2099, %v2058
        %v2101 = vpop.permute.xlu0 %2100
        %2104 = vset.pattern.permute.xlu0 0
        %2105 = vperm.xlu0 %2104, %v2059
        %v2106 = vpop.permute.xlu0 %2105
        %2109 = vset.pattern.permute.xlu0 0
        %2110 = vperm.xlu0 %2109, %v2060
        %v2111 = vpop.permute.xlu0 %2110
        %2114 = vset.pattern.permute.xlu0 0
        %2115 = vperm.xlu0 %2114, %v2061
        %v2116 = vpop.permute.xlu0 %2115
        %2119 = vset.pattern.permute.xlu0 0
        %2120 = vperm.xlu0 %2119, %v2062
        %v2121 = vpop.permute.xlu0 %2120
        %v2123 = vadd.f32 %v2039, %v2066
        %v2124 = vadd.f32 %v2040, %v2071
        %v2125 = vadd.f32 %v2041, %v2076
        %v2126 = vadd.f32 %v2042, %v2081
        %v2127 = vadd.f32 %v2043, %v2086
        %v2128 = vadd.f32 %v2044, %v2091
        %v2129 = vadd.f32 %v2045, %v2096
        %v2130 = vadd.f32 %v2046, %v2101
        %v2131 = vadd.f32 %v2047, %v2106
        %v2132 = vadd.f32 %v2048, %v2111
        %v2133 = vadd.f32 %v2049, %v2116
        %v2134 = vadd.f32 %v2050, %v2121
        %v2135 = vmax.f32 %v2123, 0.0
        %v2136 = vmax.f32 %v2124, 0.0
        %v2137 = vmax.f32 %v2125, 0.0
        %v2138 = vmax.f32 %v2126, 0.0
        %v2139 = vmax.f32 %v2127, 0.0
        %v2140 = vmax.f32 %v2128, 0.0
        %v2141 = vmax.f32 %v2129, 0.0
        %v2142 = vmax.f32 %v2130, 0.0
        %v2143 = vmax.f32 %v2131, 0.0
        %v2144 = vmax.f32 %v2132, 0.0
        %v2145 = vmax.f32 %v2133, 0.0
        %v2146 = vmax.f32 %v2134, 0.0
        %v2147 = vpack.c.bf16 %v2136, %v2135
        %v2148 = vpack.c.bf16 %v2138, %v2137
        %v2149 = vpack.c.bf16 %v2140, %v2139
        %v2150 = vpack.c.bf16 %v2142, %v2141
        %v2151 = vpack.c.bf16 %v2144, %v2143
        %v2152 = vpack.c.bf16 %v2146, %v2145
        %v2153 = vld [vmem:[%s5] sm:$0xf]
        %v2154 = vld [vmem:[%s5 + $0x4] sm:$0xf]
        %v2155 = vld [vmem:[%s5 + $0x8] sm:$0xf]
        %v2156 = vld [vmem:[%s5 + $0xc] sm:$0xf]
        %v2157 = vld [vmem:[%s5 + $0x10] sm:$0xf]
        %v2158 = vld [vmem:[%s5 + $0x14] sm:$0xf]
        %v2159 = vld [vmem:[%s5 + $0x18] sm:$0xf]
        %v2160 = vld [vmem:[%s5 + $0x1c] sm:$0xf]
        %v2161 = vld [vmem:[%s5 + $0x20] sm:$0xf]
        %v2162 = vld [vmem:[%s5 + $0x24] sm:$0xf]
        %v2163 = vld [vmem:[%s5 + $0x28] sm:$0xf]
        %v2164 = vld [vmem:[%s5 + $0x2c] sm:$0xf]
        %2171 = vrot.lane.b32.xlu0 %v2147, 3
        %v2172 = vpop.permute.xlu0 %2171
        %2173 = vrot.lane.b32.xlu0 %v2148, 3
        %v2174 = vpop.permute.xlu0 %2173
        %2175 = vrot.lane.b32.xlu0 %v2149, 3
        %v2176 = vpop.permute.xlu0 %2175
        %2177 = vrot.lane.b32.xlu0 %v2150, 3
        %v2178 = vpop.permute.xlu0 %2177
        %2179 = vrot.lane.b32.xlu0 %v2151, 3
        %v2180 = vpop.permute.xlu0 %2179
        %2181 = vrot.lane.b32.xlu0 %v2152, 3
        %v2182 = vpop.permute.xlu0 %2181
        %v2184 = vsel %vm891, 0, %v2172
        %v2187 = vsel %vm891, 0, %v2174
        %v2190 = vsel %vm891, 0, %v2176
        %v2193 = vsel %vm891, 0, %v2178
        %v2196 = vsel %vm891, 0, %v2180
        %v2199 = vsel %vm891, 0, %v2182
        %v2201 = vsel %vm909, %v2184, 0
        %v2202 = vsel %vm909, %v2187, 0
        %v2203 = vsel %vm909, %v2190, 0
        %v2204 = vsel %vm909, %v2193, 0
        %v2205 = vsel %vm909, %v2196, 0
        %v2206 = vsel %vm909, %v2199, 0
        %s2207 = scalar_lea.vmem %s5, 48
        %v2208 = vld [vmem:[%s2207] sm:$0xf]
        %v2209 = vld [vmem:[%s2207 + $0x4] sm:$0xf]
        %v2210 = vld [vmem:[%s2207 + $0x8] sm:$0xf]
        %v2211 = vld [vmem:[%s2207 + $0xc] sm:$0xf]
        %v2212 = vld [vmem:[%s2207 + $0x10] sm:$0xf]
        %v2213 = vld [vmem:[%s2207 + $0x14] sm:$0xf]
        %v2214 = vld [vmem:[%s2207 + $0x18] sm:$0xf]
        %v2215 = vld [vmem:[%s2207 + $0x1c] sm:$0xf]
        %v2216 = vld [vmem:[%s2207 + $0x20] sm:$0xf]
        %v2217 = vld [vmem:[%s2207 + $0x24] sm:$0xf]
        %v2218 = vld [vmem:[%s2207 + $0x28] sm:$0xf]
        %v2219 = vld [vmem:[%s2207 + $0x2c] sm:$0xf]
        %2220 = vrot.lane.b32.xlu0 %v2147, 2
        %v2221 = vpop.permute.xlu0 %2220
        %2222 = vrot.lane.b32.xlu0 %v2148, 2
        %v2223 = vpop.permute.xlu0 %2222
        %2224 = vrot.lane.b32.xlu0 %v2149, 2
        %v2225 = vpop.permute.xlu0 %2224
        %2226 = vrot.lane.b32.xlu0 %v2150, 2
        %v2227 = vpop.permute.xlu0 %2226
        %2228 = vrot.lane.b32.xlu0 %v2151, 2
        %v2229 = vpop.permute.xlu0 %2228
        %2230 = vrot.lane.b32.xlu0 %v2152, 2
        %v2231 = vpop.permute.xlu0 %2230
        %v2233 = vsel %vm414, 0, %v2221
        %v2236 = vsel %vm414, 0, %v2223
        %v2239 = vsel %vm414, 0, %v2225
        %v2242 = vsel %vm414, 0, %v2227
        %v2245 = vsel %vm414, 0, %v2229
        %v2248 = vsel %vm414, 0, %v2231
        %v2250 = vsel %vm940, %v2233, 0
        %v2251 = vsel %vm940, %v2236, 0
        %v2252 = vsel %vm940, %v2239, 0
        %v2253 = vsel %vm940, %v2242, 0
        %v2254 = vsel %vm940, %v2245, 0
        %v2255 = vsel %vm940, %v2248, 0
        %v2268 = vunpack.c.l.b16 %v2208
        %v2269 = vunpack.c.l.b16 %v2209
        %v2270 = vunpack.c.l.b16 %v2210
        %v2271 = vunpack.c.l.b16 %v2211
        %v2272 = vunpack.c.l.b16 %v2212
        %v2273 = vunpack.c.l.b16 %v2213
        %v2274 = vunpack.c.l.b16 %v2214
        %v2275 = vunpack.c.l.b16 %v2215
        %v2276 = vunpack.c.l.b16 %v2216
        %v2277 = vunpack.c.l.b16 %v2217
        %v2278 = vunpack.c.l.b16 %v2218
        %v2279 = vunpack.c.l.b16 %v2219
        %v2280 = vpack.c.b16 %v2269, %v2268
        %v2281 = vpack.c.b16 %v2271, %v2270
        %v2282 = vpack.c.b16 %v2273, %v2272
        %v2283 = vpack.c.b16 %v2275, %v2274
        %v2284 = vpack.c.b16 %v2277, %v2276
        %v2285 = vpack.c.b16 %v2279, %v2278
        %vm2286 = vcmask 785408
        %v2288 = vsel %vm2286, %v2280, 0
        %v2291 = vsel %vm2286, %v2281, 0
        %v2294 = vsel %vm2286, %v2282, 0
        %v2297 = vsel %vm2286, %v2283, 0
        %v2300 = vsel %vm2286, %v2284, 0
        %v2303 = vsel %vm2286, %v2285, 0
        %2305 = vmatprep.subr.bf16.mxu0 0
        %2306 = vmatpush1.bf16.msra.mxu0 0
        %2307 = vmatprep.subr.bf16.mxu0 0
        %2308 = vmatpush1.bf16.msra.mxu0 0
        %2309 = vmatprep.subr.bf16.mxu0 0
        %2310 = vmatpush1.bf16.msra.mxu0 %v2255
        %2311 = vmatprep.subr.bf16.mxu0 0
        %2312 = vmatpush1.bf16.msra.mxu0 %v2254
        %2313 = vmatprep.subr.bf16.mxu0 0
        %2314 = vmatpush1.bf16.msra.mxu0 %v2253
        %2315 = vmatprep.subr.bf16.mxu0 0
        %2316 = vmatpush1.bf16.msra.mxu0 %v2252
        %2317 = vmatprep.subr.bf16.mxu0 0
        %2318 = vmatpush1.bf16.msra.mxu0 %v2251
        %2319 = vmatprep.subr.bf16.mxu0 0
        %2320 = vmatpush1.bf16.msra.mxu0 %v2250
        %2321 = vmatprep.subr.bf16.mxu0 0
        %2322 = vmatpush2.bf16.msra.mxu0 0
        %2323 = vmatprep.subr.bf16.mxu0 0
        %2324 = vmatpush2.bf16.msra.mxu0 0
        %2325 = vmatprep.subr.bf16.mxu0 0
        %2326 = vmatpush2.bf16.msra.mxu0 0
        %2327 = vmatprep.subr.bf16.mxu0 0
        %2328 = vmatpush2.bf16.msra.mxu0 0
        %2329 = vmatprep.subr.bf16.mxu0 0
        %2330 = vmatpush2.bf16.msra.mxu0 0
        %2331 = vmatprep.subr.bf16.mxu0 0
        %2332 = vmatpush2.bf16.msra.mxu0 0
        %2333 = vmatprep.subr.bf16.mxu0 0
        %2334 = vmatpush2.bf16.msra.mxu0 0
        %2335 = vmatprep.subr.bf16.mxu0 0
        %2336 = vmatpush2.bf16.msra.mxu0 0
        %2337 = vmatprep.mubr.bf16.mxu0 0
        %2338 = vmatmul.mubr.bf16.gmra.mxu0 %v2288
        %v2339 = vpop.f32.mrf.mxu0
        %v2340 = vadd.f32 0.0, %v2339
        %v2341 = vpop.f32.mrf.mxu0
        %v2342 = vpop.f32.mrf.mxu0
        %v2343 = vadd.f32 0.0, %v2342
        %v2344 = vpop.f32.mrf.mxu0
        %2345 = vmatprep.mubr.bf16.mxu0 0
        %2346 = vmatmul.mubr.bf16.gmra.mxu0 %v2291
        %v2347 = vpop.f32.mrf.mxu0
        %v2348 = vadd.f32 0.0, %v2347
        %v2349 = vpop.f32.mrf.mxu0
        %v2350 = vpop.f32.mrf.mxu0
        %v2351 = vadd.f32 0.0, %v2350
        %v2352 = vpop.f32.mrf.mxu0
        %2353 = vmatprep.mubr.bf16.mxu0 0
        %2354 = vmatmul.mubr.bf16.gmra.mxu0 %v2294
        %v2355 = vpop.f32.mrf.mxu0
        %v2356 = vadd.f32 0.0, %v2355
        %v2357 = vpop.f32.mrf.mxu0
        %v2358 = vpop.f32.mrf.mxu0
        %v2359 = vadd.f32 0.0, %v2358
        %v2360 = vpop.f32.mrf.mxu0
        %2361 = vmatprep.mubr.bf16.mxu0 0
        %2362 = vmatmul.mubr.bf16.gmra.mxu0 %v2297
        %v2363 = vpop.f32.mrf.mxu0
        %v2364 = vadd.f32 0.0, %v2363
        %v2365 = vpop.f32.mrf.mxu0
        %v2366 = vpop.f32.mrf.mxu0
        %v2367 = vadd.f32 0.0, %v2366
        %v2368 = vpop.f32.mrf.mxu0
        %2369 = vmatprep.mubr.bf16.mxu0 0
        %2370 = vmatmul.mubr.bf16.gmra.mxu0 %v2300
        %v2371 = vpop.f32.mrf.mxu0
        %v2372 = vadd.f32 0.0, %v2371
        %v2373 = vpop.f32.mrf.mxu0
        %v2374 = vpop.f32.mrf.mxu0
        %v2375 = vadd.f32 0.0, %v2374
        %v2376 = vpop.f32.mrf.mxu0
        %2377 = vmatprep.mubr.bf16.mxu0 0
        %2378 = vmatmul.mubr.bf16.gmra.mxu0 %v2303
        %v2379 = vpop.f32.mrf.mxu0
        %v2380 = vadd.f32 0.0, %v2379
        %v2381 = vpop.f32.mrf.mxu0
        %v2382 = vpop.f32.mrf.mxu0
        %v2383 = vadd.f32 0.0, %v2382
        %v2384 = vpop.f32.mrf.mxu0
        %2385 = vdwg.mxu0
        %v2398 = vunpack.c.l.b16 %v2153
        %v2399 = vunpack.c.l.b16 %v2154
        %v2400 = vunpack.c.l.b16 %v2155
        %v2401 = vunpack.c.l.b16 %v2156
        %v2402 = vunpack.c.l.b16 %v2157
        %v2403 = vunpack.c.l.b16 %v2158
        %v2404 = vunpack.c.l.b16 %v2159
        %v2405 = vunpack.c.l.b16 %v2160
        %v2406 = vunpack.c.l.b16 %v2161
        %v2407 = vunpack.c.l.b16 %v2162
        %v2408 = vunpack.c.l.b16 %v2163
        %v2409 = vunpack.c.l.b16 %v2164
        %v2410 = vpack.c.b16 %v2399, %v2398
        %v2411 = vpack.c.b16 %v2401, %v2400
        %v2412 = vpack.c.b16 %v2403, %v2402
        %v2413 = vpack.c.b16 %v2405, %v2404
        %v2414 = vpack.c.b16 %v2407, %v2406
        %v2415 = vpack.c.b16 %v2409, %v2408
        %v2417 = vsel %vm2286, %v2410, 0
        %v2420 = vsel %vm2286, %v2411, 0
        %v2423 = vsel %vm2286, %v2412, 0
        %v2426 = vsel %vm2286, %v2413, 0
        %v2429 = vsel %vm2286, %v2414, 0
        %v2432 = vsel %vm2286, %v2415, 0
        %2434 = vmatprep.subr.bf16.mxu0 0
        %2435 = vmatpush1.bf16.msra.mxu0 0
        %2436 = vmatprep.subr.bf16.mxu0 0
        %2437 = vmatpush1.bf16.msra.mxu0 0
        %2438 = vmatprep.subr.bf16.mxu0 0
        %2439 = vmatpush1.bf16.msra.mxu0 %v2206
        %2440 = vmatprep.subr.bf16.mxu0 0
        %2441 = vmatpush1.bf16.msra.mxu0 %v2205
        %2442 = vmatprep.subr.bf16.mxu0 0
        %2443 = vmatpush1.bf16.msra.mxu0 %v2204
        %2444 = vmatprep.subr.bf16.mxu0 0
        %2445 = vmatpush1.bf16.msra.mxu0 %v2203
        %2446 = vmatprep.subr.bf16.mxu0 0
        %2447 = vmatpush1.bf16.msra.mxu0 %v2202
        %2448 = vmatprep.subr.bf16.mxu0 0
        %2449 = vmatpush1.bf16.msra.mxu0 %v2201
        %2450 = vmatprep.subr.bf16.mxu0 0
        %2451 = vmatpush2.bf16.msra.mxu0 0
        %2452 = vmatprep.subr.bf16.mxu0 0
        %2453 = vmatpush2.bf16.msra.mxu0 0
        %2454 = vmatprep.subr.bf16.mxu0 0
        %2455 = vmatpush2.bf16.msra.mxu0 0
        %2456 = vmatprep.subr.bf16.mxu0 0
        %2457 = vmatpush2.bf16.msra.mxu0 0
        %2458 = vmatprep.subr.bf16.mxu0 0
        %2459 = vmatpush2.bf16.msra.mxu0 0
        %2460 = vmatprep.subr.bf16.mxu0 0
        %2461 = vmatpush2.bf16.msra.mxu0 0
        %2462 = vmatprep.subr.bf16.mxu0 0
        %2463 = vmatpush2.bf16.msra.mxu0 0
        %2464 = vmatprep.subr.bf16.mxu0 0
        %2465 = vmatpush2.bf16.msra.mxu0 0
        %2466 = vmatprep.mubr.bf16.mxu0 0
        %2467 = vmatmul.mubr.bf16.gmra.mxu0 %v2417
        %v2468 = vpop.f32.mrf.mxu0
        %v2469 = vadd.f32 %v2340, %v2468
        %v2470 = vpop.f32.mrf.mxu0
        %v2471 = vpop.f32.mrf.mxu0
        %v2472 = vadd.f32 %v2343, %v2471
        %v2473 = vpop.f32.mrf.mxu0
        %2474 = vmatprep.mubr.bf16.mxu0 0
        %2475 = vmatmul.mubr.bf16.gmra.mxu0 %v2420
        %v2476 = vpop.f32.mrf.mxu0
        %v2477 = vadd.f32 %v2348, %v2476
        %v2478 = vpop.f32.mrf.mxu0
        %v2479 = vpop.f32.mrf.mxu0
        %v2480 = vadd.f32 %v2351, %v2479
        %v2481 = vpop.f32.mrf.mxu0
        %2482 = vmatprep.mubr.bf16.mxu0 0
        %2483 = vmatmul.mubr.bf16.gmra.mxu0 %v2423
        %v2484 = vpop.f32.mrf.mxu0
        %v2485 = vadd.f32 %v2356, %v2484
        %v2486 = vpop.f32.mrf.mxu0
        %v2487 = vpop.f32.mrf.mxu0
        %v2488 = vadd.f32 %v2359, %v2487
        %v2489 = vpop.f32.mrf.mxu0
        %2490 = vmatprep.mubr.bf16.mxu0 0
        %2491 = vmatmul.mubr.bf16.gmra.mxu0 %v2426
        %v2492 = vpop.f32.mrf.mxu0
        %v2493 = vadd.f32 %v2364, %v2492
        %v2494 = vpop.f32.mrf.mxu0
        %v2495 = vpop.f32.mrf.mxu0
        %v2496 = vadd.f32 %v2367, %v2495
        %v2497 = vpop.f32.mrf.mxu0
        %2498 = vmatprep.mubr.bf16.mxu0 0
        %2499 = vmatmul.mubr.bf16.gmra.mxu0 %v2429
        %v2500 = vpop.f32.mrf.mxu0
        %v2501 = vadd.f32 %v2372, %v2500
        %v2502 = vpop.f32.mrf.mxu0
        %v2503 = vpop.f32.mrf.mxu0
        %v2504 = vadd.f32 %v2375, %v2503
        %v2505 = vpop.f32.mrf.mxu0
        %2506 = vmatprep.mubr.bf16.mxu0 0
        %2507 = vmatmul.mubr.bf16.gmra.mxu0 %v2432
        %v2508 = vpop.f32.mrf.mxu0
        %v2509 = vadd.f32 %v2380, %v2508
        %v2510 = vpop.f32.mrf.mxu0
        %v2511 = vpop.f32.mrf.mxu0
        %v2512 = vadd.f32 %v2383, %v2511
        %v2513 = vpop.f32.mrf.mxu0
        %2514 = vdwg.mxu0
        %s2515 = scalar_lea.vmem %s5, 96
        %v2516 = vld [vmem:[%s2515] sm:$0xf]
        %v2517 = vld [vmem:[%s2515 + $0x4] sm:$0xf]
        %v2518 = vld [vmem:[%s2515 + $0x8] sm:$0xf]
        %v2519 = vld [vmem:[%s2515 + $0xc] sm:$0xf]
        %v2520 = vld [vmem:[%s2515 + $0x10] sm:$0xf]
        %v2521 = vld [vmem:[%s2515 + $0x14] sm:$0xf]
        %v2522 = vld [vmem:[%s2515 + $0x18] sm:$0xf]
        %v2523 = vld [vmem:[%s2515 + $0x1c] sm:$0xf]
        %v2524 = vld [vmem:[%s2515 + $0x20] sm:$0xf]
        %v2525 = vld [vmem:[%s2515 + $0x24] sm:$0xf]
        %v2526 = vld [vmem:[%s2515 + $0x28] sm:$0xf]
        %v2527 = vld [vmem:[%s2515 + $0x2c] sm:$0xf]
        %2528 = vrot.lane.b32.xlu0 %v2147, 1
        %v2529 = vpop.permute.xlu0 %2528
        %2530 = vrot.lane.b32.xlu0 %v2148, 1
        %v2531 = vpop.permute.xlu0 %2530
        %2532 = vrot.lane.b32.xlu0 %v2149, 1
        %v2533 = vpop.permute.xlu0 %2532
        %2534 = vrot.lane.b32.xlu0 %v2150, 1
        %v2535 = vpop.permute.xlu0 %2534
        %2536 = vrot.lane.b32.xlu0 %v2151, 1
        %v2537 = vpop.permute.xlu0 %2536
        %2538 = vrot.lane.b32.xlu0 %v2152, 1
        %v2539 = vpop.permute.xlu0 %2538
        %v2541 = vsel %vm433, 0, %v2529
        %v2544 = vsel %vm433, 0, %v2531
        %v2547 = vsel %vm433, 0, %v2533
        %v2550 = vsel %vm433, 0, %v2535
        %v2553 = vsel %vm433, 0, %v2537
        %v2556 = vsel %vm433, 0, %v2539
        %v2558 = vsel %vm1230, %v2541, 0
        %v2559 = vsel %vm1230, %v2544, 0
        %v2560 = vsel %vm1230, %v2547, 0
        %v2561 = vsel %vm1230, %v2550, 0
        %v2562 = vsel %vm1230, %v2553, 0
        %v2563 = vsel %vm1230, %v2556, 0
        %v2576 = vunpack.c.l.b16 %v2516
        %v2577 = vunpack.c.l.b16 %v2517
        %v2578 = vunpack.c.l.b16 %v2518
        %v2579 = vunpack.c.l.b16 %v2519
        %v2580 = vunpack.c.l.b16 %v2520
        %v2581 = vunpack.c.l.b16 %v2521
        %v2582 = vunpack.c.l.b16 %v2522
        %v2583 = vunpack.c.l.b16 %v2523
        %v2584 = vunpack.c.l.b16 %v2524
        %v2585 = vunpack.c.l.b16 %v2525
        %v2586 = vunpack.c.l.b16 %v2526
        %v2587 = vunpack.c.l.b16 %v2527
        %v2588 = vpack.c.b16 %v2577, %v2576
        %v2589 = vpack.c.b16 %v2579, %v2578
        %v2590 = vpack.c.b16 %v2581, %v2580
        %v2591 = vpack.c.b16 %v2583, %v2582
        %v2592 = vpack.c.b16 %v2585, %v2584
        %v2593 = vpack.c.b16 %v2587, %v2586
        %v2595 = vsel %vm2286, %v2588, 0
        %v2598 = vsel %vm2286, %v2589, 0
        %v2601 = vsel %vm2286, %v2590, 0
        %v2604 = vsel %vm2286, %v2591, 0
        %v2607 = vsel %vm2286, %v2592, 0
        %v2610 = vsel %vm2286, %v2593, 0
        %2612 = vmatprep.subr.bf16.mxu0 0
        %2613 = vmatpush1.bf16.msra.mxu0 0
        %2614 = vmatprep.subr.bf16.mxu0 0
        %2615 = vmatpush1.bf16.msra.mxu0 0
        %2616 = vmatprep.subr.bf16.mxu0 0
        %2617 = vmatpush1.bf16.msra.mxu0 %v2563
        %2618 = vmatprep.subr.bf16.mxu0 0
        %2619 = vmatpush1.bf16.msra.mxu0 %v2562
        %2620 = vmatprep.subr.bf16.mxu0 0
        %2621 = vmatpush1.bf16.msra.mxu0 %v2561
        %2622 = vmatprep.subr.bf16.mxu0 0
        %2623 = vmatpush1.bf16.msra.mxu0 %v2560
        %2624 = vmatprep.subr.bf16.mxu0 0
        %2625 = vmatpush1.bf16.msra.mxu0 %v2559
        %2626 = vmatprep.subr.bf16.mxu0 0
        %2627 = vmatpush1.bf16.msra.mxu0 %v2558
        %2628 = vmatprep.subr.bf16.mxu0 0
        %2629 = vmatpush2.bf16.msra.mxu0 0
        %2630 = vmatprep.subr.bf16.mxu0 0
        %2631 = vmatpush2.bf16.msra.mxu0 0
        %2632 = vmatprep.subr.bf16.mxu0 0
        %2633 = vmatpush2.bf16.msra.mxu0 0
        %2634 = vmatprep.subr.bf16.mxu0 0
        %2635 = vmatpush2.bf16.msra.mxu0 0
        %2636 = vmatprep.subr.bf16.mxu0 0
        %2637 = vmatpush2.bf16.msra.mxu0 0
        %2638 = vmatprep.subr.bf16.mxu0 0
        %2639 = vmatpush2.bf16.msra.mxu0 0
        %2640 = vmatprep.subr.bf16.mxu0 0
        %2641 = vmatpush2.bf16.msra.mxu0 0
        %2642 = vmatprep.subr.bf16.mxu0 0
        %2643 = vmatpush2.bf16.msra.mxu0 0
        %2644 = vmatprep.mubr.bf16.mxu0 0
        %2645 = vmatmul.mubr.bf16.gmra.mxu0 %v2595
        %v2646 = vpop.f32.mrf.mxu0
        %v2647 = vadd.f32 0.0, %v2646
        %v2648 = vpop.f32.mrf.mxu0
        %v2649 = vpop.f32.mrf.mxu0
        %v2650 = vadd.f32 0.0, %v2649
        %v2651 = vpop.f32.mrf.mxu0
        %2652 = vmatprep.mubr.bf16.mxu0 0
        %2653 = vmatmul.mubr.bf16.gmra.mxu0 %v2598
        %v2654 = vpop.f32.mrf.mxu0
        %v2655 = vadd.f32 0.0, %v2654
        %v2656 = vpop.f32.mrf.mxu0
        %v2657 = vpop.f32.mrf.mxu0
        %v2658 = vadd.f32 0.0, %v2657
        %v2659 = vpop.f32.mrf.mxu0
        %2660 = vmatprep.mubr.bf16.mxu0 0
        %2661 = vmatmul.mubr.bf16.gmra.mxu0 %v2601
        %v2662 = vpop.f32.mrf.mxu0
        %v2663 = vadd.f32 0.0, %v2662
        %v2664 = vpop.f32.mrf.mxu0
        %v2665 = vpop.f32.mrf.mxu0
        %v2666 = vadd.f32 0.0, %v2665
        %v2667 = vpop.f32.mrf.mxu0
        %2668 = vmatprep.mubr.bf16.mxu0 0
        %2669 = vmatmul.mubr.bf16.gmra.mxu0 %v2604
        %v2670 = vpop.f32.mrf.mxu0
        %v2671 = vadd.f32 0.0, %v2670
        %v2672 = vpop.f32.mrf.mxu0
        %v2673 = vpop.f32.mrf.mxu0
        %v2674 = vadd.f32 0.0, %v2673
        %v2675 = vpop.f32.mrf.mxu0
        %2676 = vmatprep.mubr.bf16.mxu0 0
        %2677 = vmatmul.mubr.bf16.gmra.mxu0 %v2607
        %v2678 = vpop.f32.mrf.mxu0
        %v2679 = vadd.f32 0.0, %v2678
        %v2680 = vpop.f32.mrf.mxu0
        %v2681 = vpop.f32.mrf.mxu0
        %v2682 = vadd.f32 0.0, %v2681
        %v2683 = vpop.f32.mrf.mxu0
        %2684 = vmatprep.mubr.bf16.mxu0 0
        %2685 = vmatmul.mubr.bf16.gmra.mxu0 %v2610
        %v2686 = vpop.f32.mrf.mxu0
        %v2687 = vadd.f32 0.0, %v2686
        %v2688 = vpop.f32.mrf.mxu0
        %v2689 = vpop.f32.mrf.mxu0
        %v2690 = vadd.f32 0.0, %v2689
        %v2691 = vpop.f32.mrf.mxu0
        %2692 = vdwg.mxu0
        %v2693 = vadd.f32 %v2469, %v2647
        %v2694 = vadd.f32 %v2472, %v2650
        %v2695 = vadd.f32 %v2477, %v2655
        %v2696 = vadd.f32 %v2480, %v2658
        %v2697 = vadd.f32 %v2485, %v2663
        %v2698 = vadd.f32 %v2488, %v2666
        %v2699 = vadd.f32 %v2493, %v2671
        %v2700 = vadd.f32 %v2496, %v2674
        %v2701 = vadd.f32 %v2501, %v2679
        %v2702 = vadd.f32 %v2504, %v2682
        %v2703 = vadd.f32 %v2509, %v2687
        %v2704 = vadd.f32 %v2512, %v2690
        %s2705 = scalar_lea.vmem %s5, 144
        %v2706 = vld [vmem:[%s2705] sm:$0xf]
        %v2707 = vld [vmem:[%s2705 + $0x4] sm:$0xf]
        %v2708 = vld [vmem:[%s2705 + $0x8] sm:$0xf]
        %v2709 = vld [vmem:[%s2705 + $0xc] sm:$0xf]
        %v2710 = vld [vmem:[%s2705 + $0x10] sm:$0xf]
        %v2711 = vld [vmem:[%s2705 + $0x14] sm:$0xf]
        %v2712 = vld [vmem:[%s2705 + $0x18] sm:$0xf]
        %v2713 = vld [vmem:[%s2705 + $0x1c] sm:$0xf]
        %v2714 = vld [vmem:[%s2705 + $0x20] sm:$0xf]
        %v2715 = vld [vmem:[%s2705 + $0x24] sm:$0xf]
        %v2716 = vld [vmem:[%s2705 + $0x28] sm:$0xf]
        %v2717 = vld [vmem:[%s2705 + $0x2c] sm:$0xf]
        %v2730 = vunpack.c.l.b16 %v2706
        %v2731 = vunpack.c.l.b16 %v2707
        %v2732 = vunpack.c.l.b16 %v2708
        %v2733 = vunpack.c.l.b16 %v2709
        %v2734 = vunpack.c.l.b16 %v2710
        %v2735 = vunpack.c.l.b16 %v2711
        %v2736 = vunpack.c.l.b16 %v2712
        %v2737 = vunpack.c.l.b16 %v2713
        %v2738 = vunpack.c.l.b16 %v2714
        %v2739 = vunpack.c.l.b16 %v2715
        %v2740 = vunpack.c.l.b16 %v2716
        %v2741 = vunpack.c.l.b16 %v2717
        %v2742 = vpack.c.b16 %v2731, %v2730
        %v2743 = vpack.c.b16 %v2733, %v2732
        %v2744 = vpack.c.b16 %v2735, %v2734
        %v2745 = vpack.c.b16 %v2737, %v2736
        %v2746 = vpack.c.b16 %v2739, %v2738
        %v2747 = vpack.c.b16 %v2741, %v2740
        %v2749 = vsel %vm2286, %v2742, 0
        %v2752 = vsel %vm2286, %v2743, 0
        %v2755 = vsel %vm2286, %v2744, 0
        %v2758 = vsel %vm2286, %v2745, 0
        %v2761 = vsel %vm2286, %v2746, 0
        %v2764 = vsel %vm2286, %v2747, 0
        %2766 = vmatprep.subr.bf16.mxu0 0
        %2767 = vmatpush1.bf16.msra.mxu0 0
        %2768 = vmatprep.subr.bf16.mxu0 0
        %2769 = vmatpush1.bf16.msra.mxu0 0
        %2770 = vmatprep.subr.bf16.mxu0 0
        %2771 = vmatpush1.bf16.msra.mxu0 %v2152
        %2772 = vmatprep.subr.bf16.mxu0 0
        %2773 = vmatpush1.bf16.msra.mxu0 %v2151
        %2774 = vmatprep.subr.bf16.mxu0 0
        %2775 = vmatpush1.bf16.msra.mxu0 %v2150
        %2776 = vmatprep.subr.bf16.mxu0 0
        %2777 = vmatpush1.bf16.msra.mxu0 %v2149
        %2778 = vmatprep.subr.bf16.mxu0 0
        %2779 = vmatpush1.bf16.msra.mxu0 %v2148
        %2780 = vmatprep.subr.bf16.mxu0 0
        %2781 = vmatpush1.bf16.msra.mxu0 %v2147
        %2782 = vmatprep.subr.bf16.mxu0 0
        %2783 = vmatpush2.bf16.msra.mxu0 0
        %2784 = vmatprep.subr.bf16.mxu0 0
        %2785 = vmatpush2.bf16.msra.mxu0 0
        %2786 = vmatprep.subr.bf16.mxu0 0
        %2787 = vmatpush2.bf16.msra.mxu0 0
        %2788 = vmatprep.subr.bf16.mxu0 0
        %2789 = vmatpush2.bf16.msra.mxu0 0
        %2790 = vmatprep.subr.bf16.mxu0 0
        %2791 = vmatpush2.bf16.msra.mxu0 0
        %2792 = vmatprep.subr.bf16.mxu0 0
        %2793 = vmatpush2.bf16.msra.mxu0 0
        %2794 = vmatprep.subr.bf16.mxu0 0
        %2795 = vmatpush2.bf16.msra.mxu0 0
        %2796 = vmatprep.subr.bf16.mxu0 0
        %2797 = vmatpush2.bf16.msra.mxu0 0
        %2798 = vmatprep.mubr.bf16.mxu0 0
        %2799 = vmatmul.mubr.bf16.gmra.mxu0 %v2749
        %v2800 = vpop.f32.mrf.mxu0
        %v2801 = vadd.f32 0.0, %v2800
        %v2802 = vpop.f32.mrf.mxu0
        %v2803 = vpop.f32.mrf.mxu0
        %v2804 = vadd.f32 0.0, %v2803
        %v2805 = vpop.f32.mrf.mxu0
        %2806 = vmatprep.mubr.bf16.mxu0 0
        %2807 = vmatmul.mubr.bf16.gmra.mxu0 %v2752
        %v2808 = vpop.f32.mrf.mxu0
        %v2809 = vadd.f32 0.0, %v2808
        %v2810 = vpop.f32.mrf.mxu0
        %v2811 = vpop.f32.mrf.mxu0
        %v2812 = vadd.f32 0.0, %v2811
        %v2813 = vpop.f32.mrf.mxu0
        %2814 = vmatprep.mubr.bf16.mxu0 0
        %2815 = vmatmul.mubr.bf16.gmra.mxu0 %v2755
        %v2816 = vpop.f32.mrf.mxu0
        %v2817 = vadd.f32 0.0, %v2816
        %v2818 = vpop.f32.mrf.mxu0
        %v2819 = vpop.f32.mrf.mxu0
        %v2820 = vadd.f32 0.0, %v2819
        %v2821 = vpop.f32.mrf.mxu0
        %2822 = vmatprep.mubr.bf16.mxu0 0
        %2823 = vmatmul.mubr.bf16.gmra.mxu0 %v2758
        %v2824 = vpop.f32.mrf.mxu0
        %v2825 = vadd.f32 0.0, %v2824
        %v2826 = vpop.f32.mrf.mxu0
        %v2827 = vpop.f32.mrf.mxu0
        %v2828 = vadd.f32 0.0, %v2827
        %v2829 = vpop.f32.mrf.mxu0
        %2830 = vmatprep.mubr.bf16.mxu0 0
        %2831 = vmatmul.mubr.bf16.gmra.mxu0 %v2761
        %v2832 = vpop.f32.mrf.mxu0
        %v2833 = vadd.f32 0.0, %v2832
        %v2834 = vpop.f32.mrf.mxu0
        %v2835 = vpop.f32.mrf.mxu0
        %v2836 = vadd.f32 0.0, %v2835
        %v2837 = vpop.f32.mrf.mxu0
        %2838 = vmatprep.mubr.bf16.mxu0 0
        %2839 = vmatmul.mubr.bf16.gmra.mxu0 %v2764
        %v2840 = vpop.f32.mrf.mxu0
        %v2841 = vadd.f32 0.0, %v2840
        %v2842 = vpop.f32.mrf.mxu0
        %v2843 = vpop.f32.mrf.mxu0
        %v2844 = vadd.f32 0.0, %v2843
        %v2845 = vpop.f32.mrf.mxu0
        %2846 = vdwg.mxu0
        %v2847 = vadd.f32 %v2693, %v2801
        %v2848 = vadd.f32 %v2694, %v2804
        %v2849 = vadd.f32 %v2695, %v2809
        %v2850 = vadd.f32 %v2696, %v2812
        %v2851 = vadd.f32 %v2697, %v2817
        %v2852 = vadd.f32 %v2698, %v2820
        %v2853 = vadd.f32 %v2699, %v2825
        %v2854 = vadd.f32 %v2700, %v2828
        %v2855 = vadd.f32 %v2701, %v2833
        %v2856 = vadd.f32 %v2702, %v2836
        %v2857 = vadd.f32 %v2703, %v2841
        %v2858 = vadd.f32 %v2704, %v2844
        %s2859 = scalar_lea.vmem %s5, 192
        %v2860 = vld [vmem:[%s2859] sm:$0xf]
        %v2861 = vld [vmem:[%s2859 + $0x4] sm:$0xf]
        %v2862 = vld [vmem:[%s2859 + $0x8] sm:$0xf]
        %v2863 = vld [vmem:[%s2859 + $0xc] sm:$0xf]
        %v2864 = vld [vmem:[%s2859 + $0x10] sm:$0xf]
        %v2865 = vld [vmem:[%s2859 + $0x14] sm:$0xf]
        %v2866 = vld [vmem:[%s2859 + $0x18] sm:$0xf]
        %v2867 = vld [vmem:[%s2859 + $0x1c] sm:$0xf]
        %v2868 = vld [vmem:[%s2859 + $0x20] sm:$0xf]
        %v2869 = vld [vmem:[%s2859 + $0x24] sm:$0xf]
        %v2870 = vld [vmem:[%s2859 + $0x28] sm:$0xf]
        %v2871 = vld [vmem:[%s2859 + $0x2c] sm:$0xf]
        %2872 = vrot.lane.b32.xlu0 %v2147, 127
        %v2873 = vpop.permute.xlu0 %2872
        %2874 = vrot.lane.b32.xlu0 %v2148, 127
        %v2875 = vpop.permute.xlu0 %2874
        %2876 = vrot.lane.b32.xlu0 %v2149, 127
        %v2877 = vpop.permute.xlu0 %2876
        %2878 = vrot.lane.b32.xlu0 %v2150, 127
        %v2879 = vpop.permute.xlu0 %2878
        %2880 = vrot.lane.b32.xlu0 %v2151, 127
        %v2881 = vpop.permute.xlu0 %2880
        %2882 = vrot.lane.b32.xlu0 %v2152, 127
        %v2883 = vpop.permute.xlu0 %2882
        %v2885 = vsel %vm666, %v2873, 0
        %v2888 = vsel %vm666, %v2875, 0
        %v2891 = vsel %vm666, %v2877, 0
        %v2894 = vsel %vm666, %v2879, 0
        %v2897 = vsel %vm666, %v2881, 0
        %v2900 = vsel %vm666, %v2883, 0
        %v2902 = vsel %vm1556, %v2885, 0
        %v2903 = vsel %vm1556, %v2888, 0
        %v2904 = vsel %vm1556, %v2891, 0
        %v2905 = vsel %vm1556, %v2894, 0
        %v2906 = vsel %vm1556, %v2897, 0
        %v2907 = vsel %vm1556, %v2900, 0
        %v2920 = vunpack.c.l.b16 %v2860
        %v2921 = vunpack.c.l.b16 %v2861
        %v2922 = vunpack.c.l.b16 %v2862
        %v2923 = vunpack.c.l.b16 %v2863
        %v2924 = vunpack.c.l.b16 %v2864
        %v2925 = vunpack.c.l.b16 %v2865
        %v2926 = vunpack.c.l.b16 %v2866
        %v2927 = vunpack.c.l.b16 %v2867
        %v2928 = vunpack.c.l.b16 %v2868
        %v2929 = vunpack.c.l.b16 %v2869
        %v2930 = vunpack.c.l.b16 %v2870
        %v2931 = vunpack.c.l.b16 %v2871
        %v2932 = vpack.c.b16 %v2921, %v2920
        %v2933 = vpack.c.b16 %v2923, %v2922
        %v2934 = vpack.c.b16 %v2925, %v2924
        %v2935 = vpack.c.b16 %v2927, %v2926
        %v2936 = vpack.c.b16 %v2929, %v2928
        %v2937 = vpack.c.b16 %v2931, %v2930
        %v2939 = vsel %vm2286, %v2932, 0
        %v2942 = vsel %vm2286, %v2933, 0
        %v2945 = vsel %vm2286, %v2934, 0
        %v2948 = vsel %vm2286, %v2935, 0
        %v2951 = vsel %vm2286, %v2936, 0
        %v2954 = vsel %vm2286, %v2937, 0
        %2956 = vmatprep.subr.bf16.mxu0 0
        %2957 = vmatpush1.bf16.msra.mxu0 0
        %2958 = vmatprep.subr.bf16.mxu0 0
        %2959 = vmatpush1.bf16.msra.mxu0 0
        %2960 = vmatprep.subr.bf16.mxu0 0
        %2961 = vmatpush1.bf16.msra.mxu0 %v2907
        %2962 = vmatprep.subr.bf16.mxu0 0
        %2963 = vmatpush1.bf16.msra.mxu0 %v2906
        %2964 = vmatprep.subr.bf16.mxu0 0
        %2965 = vmatpush1.bf16.msra.mxu0 %v2905
        %2966 = vmatprep.subr.bf16.mxu0 0
        %2967 = vmatpush1.bf16.msra.mxu0 %v2904
        %2968 = vmatprep.subr.bf16.mxu0 0
        %2969 = vmatpush1.bf16.msra.mxu0 %v2903
        %2970 = vmatprep.subr.bf16.mxu0 0
        %2971 = vmatpush1.bf16.msra.mxu0 %v2902
        %2972 = vmatprep.subr.bf16.mxu0 0
        %2973 = vmatpush2.bf16.msra.mxu0 0
        %2974 = vmatprep.subr.bf16.mxu0 0
        %2975 = vmatpush2.bf16.msra.mxu0 0
        %2976 = vmatprep.subr.bf16.mxu0 0
        %2977 = vmatpush2.bf16.msra.mxu0 0
        %2978 = vmatprep.subr.bf16.mxu0 0
        %2979 = vmatpush2.bf16.msra.mxu0 0
        %2980 = vmatprep.subr.bf16.mxu0 0
        %2981 = vmatpush2.bf16.msra.mxu0 0
        %2982 = vmatprep.subr.bf16.mxu0 0
        %2983 = vmatpush2.bf16.msra.mxu0 0
        %2984 = vmatprep.subr.bf16.mxu0 0
        %2985 = vmatpush2.bf16.msra.mxu0 0
        %2986 = vmatprep.subr.bf16.mxu0 0
        %2987 = vmatpush2.bf16.msra.mxu0 0
        %2988 = vmatprep.mubr.bf16.mxu0 0
        %2989 = vmatmul.mubr.bf16.gmra.mxu0 %v2939
        %v2990 = vpop.f32.mrf.mxu0
        %v2991 = vadd.f32 0.0, %v2990
        %v2992 = vpop.f32.mrf.mxu0
        %v2993 = vpop.f32.mrf.mxu0
        %v2994 = vadd.f32 0.0, %v2993
        %v2995 = vpop.f32.mrf.mxu0
        %2996 = vmatprep.mubr.bf16.mxu0 0
        %2997 = vmatmul.mubr.bf16.gmra.mxu0 %v2942
        %v2998 = vpop.f32.mrf.mxu0
        %v2999 = vadd.f32 0.0, %v2998
        %v3000 = vpop.f32.mrf.mxu0
        %v3001 = vpop.f32.mrf.mxu0
        %v3002 = vadd.f32 0.0, %v3001
        %v3003 = vpop.f32.mrf.mxu0
        %3004 = vmatprep.mubr.bf16.mxu0 0
        %3005 = vmatmul.mubr.bf16.gmra.mxu0 %v2945
        %v3006 = vpop.f32.mrf.mxu0
        %v3007 = vadd.f32 0.0, %v3006
        %v3008 = vpop.f32.mrf.mxu0
        %v3009 = vpop.f32.mrf.mxu0
        %v3010 = vadd.f32 0.0, %v3009
        %v3011 = vpop.f32.mrf.mxu0
        %3012 = vmatprep.mubr.bf16.mxu0 0
        %3013 = vmatmul.mubr.bf16.gmra.mxu0 %v2948
        %v3014 = vpop.f32.mrf.mxu0
        %v3015 = vadd.f32 0.0, %v3014
        %v3016 = vpop.f32.mrf.mxu0
        %v3017 = vpop.f32.mrf.mxu0
        %v3018 = vadd.f32 0.0, %v3017
        %v3019 = vpop.f32.mrf.mxu0
        %3020 = vmatprep.mubr.bf16.mxu0 0
        %3021 = vmatmul.mubr.bf16.gmra.mxu0 %v2951
        %v3022 = vpop.f32.mrf.mxu0
        %v3023 = vadd.f32 0.0, %v3022
        %v3024 = vpop.f32.mrf.mxu0
        %v3025 = vpop.f32.mrf.mxu0
        %v3026 = vadd.f32 0.0, %v3025
        %v3027 = vpop.f32.mrf.mxu0
        %3028 = vmatprep.mubr.bf16.mxu0 0
        %3029 = vmatmul.mubr.bf16.gmra.mxu0 %v2954
        %v3030 = vpop.f32.mrf.mxu0
        %v3031 = vadd.f32 0.0, %v3030
        %v3032 = vpop.f32.mrf.mxu0
        %v3033 = vpop.f32.mrf.mxu0
        %v3034 = vadd.f32 0.0, %v3033
        %v3035 = vpop.f32.mrf.mxu0
        %3036 = vdwg.mxu0
        %v3037 = vadd.f32 %v2847, %v2991
        %v3038 = vadd.f32 %v2848, %v2994
        %v3039 = vadd.f32 %v2849, %v2999
        %v3040 = vadd.f32 %v2850, %v3002
        %v3041 = vadd.f32 %v2851, %v3007
        %v3042 = vadd.f32 %v2852, %v3010
        %v3043 = vadd.f32 %v2853, %v3015
        %v3044 = vadd.f32 %v2854, %v3018
        %v3045 = vadd.f32 %v2855, %v3023
        %v3046 = vadd.f32 %v2856, %v3026
        %v3047 = vadd.f32 %v2857, %v3031
        %v3048 = vadd.f32 %v2858, %v3034
        %s3049 = scalar_lea.vmem %s5, 240
        %v3050 = vld [vmem:[%s3049] sm:$0xf]
        %v3051 = vld [vmem:[%s3049 + $0x4] sm:$0xf]
        %v3052 = vld [vmem:[%s3049 + $0x8] sm:$0xf]
        %v3053 = vld [vmem:[%s3049 + $0xc] sm:$0xf]
        %v3054 = vld [vmem:[%s3049 + $0x10] sm:$0xf]
        %v3055 = vld [vmem:[%s3049 + $0x14] sm:$0xf]
        %v3056 = vld [vmem:[%s3049 + $0x18] sm:$0xf]
        %v3057 = vld [vmem:[%s3049 + $0x1c] sm:$0xf]
        %v3058 = vld [vmem:[%s3049 + $0x20] sm:$0xf]
        %v3059 = vld [vmem:[%s3049 + $0x24] sm:$0xf]
        %v3060 = vld [vmem:[%s3049 + $0x28] sm:$0xf]
        %v3061 = vld [vmem:[%s3049 + $0x2c] sm:$0xf]
        %3062 = vrot.lane.b32.xlu0 %v2147, 126
        %v3063 = vpop.permute.xlu0 %3062
        %3064 = vrot.lane.b32.xlu0 %v2148, 126
        %v3065 = vpop.permute.xlu0 %3064
        %3066 = vrot.lane.b32.xlu0 %v2149, 126
        %v3067 = vpop.permute.xlu0 %3066
        %3068 = vrot.lane.b32.xlu0 %v2150, 126
        %v3069 = vpop.permute.xlu0 %3068
        %3070 = vrot.lane.b32.xlu0 %v2151, 126
        %v3071 = vpop.permute.xlu0 %3070
        %3072 = vrot.lane.b32.xlu0 %v2152, 126
        %v3073 = vpop.permute.xlu0 %3072
        %v3075 = vsel %vm756, %v3063, 0
        %v3078 = vsel %vm756, %v3065, 0
        %v3081 = vsel %vm756, %v3067, 0
        %v3084 = vsel %vm756, %v3069, 0
        %v3087 = vsel %vm756, %v3071, 0
        %v3090 = vsel %vm756, %v3073, 0
        %v3092 = vsel %vm1728, %v3075, 0
        %v3093 = vsel %vm1728, %v3078, 0
        %v3094 = vsel %vm1728, %v3081, 0
        %v3095 = vsel %vm1728, %v3084, 0
        %v3096 = vsel %vm1728, %v3087, 0
        %v3097 = vsel %vm1728, %v3090, 0
        %v3110 = vunpack.c.l.b16 %v3050
        %v3111 = vunpack.c.l.b16 %v3051
        %v3112 = vunpack.c.l.b16 %v3052
        %v3113 = vunpack.c.l.b16 %v3053
        %v3114 = vunpack.c.l.b16 %v3054
        %v3115 = vunpack.c.l.b16 %v3055
        %v3116 = vunpack.c.l.b16 %v3056
        %v3117 = vunpack.c.l.b16 %v3057
        %v3118 = vunpack.c.l.b16 %v3058
        %v3119 = vunpack.c.l.b16 %v3059
        %v3120 = vunpack.c.l.b16 %v3060
        %v3121 = vunpack.c.l.b16 %v3061
        %v3122 = vpack.c.b16 %v3111, %v3110
        %v3123 = vpack.c.b16 %v3113, %v3112
        %v3124 = vpack.c.b16 %v3115, %v3114
        %v3125 = vpack.c.b16 %v3117, %v3116
        %v3126 = vpack.c.b16 %v3119, %v3118
        %v3127 = vpack.c.b16 %v3121, %v3120
        %v3129 = vsel %vm2286, %v3122, 0
        %v3132 = vsel %vm2286, %v3123, 0
        %v3135 = vsel %vm2286, %v3124, 0
        %v3138 = vsel %vm2286, %v3125, 0
        %v3141 = vsel %vm2286, %v3126, 0
        %v3144 = vsel %vm2286, %v3127, 0
        %3146 = vmatprep.subr.bf16.mxu0 0
        %3147 = vmatpush1.bf16.msra.mxu0 0
        %3148 = vmatprep.subr.bf16.mxu0 0
        %3149 = vmatpush1.bf16.msra.mxu0 0
        %3150 = vmatprep.subr.bf16.mxu0 0
        %3151 = vmatpush1.bf16.msra.mxu0 %v3097
        %3152 = vmatprep.subr.bf16.mxu0 0
        %3153 = vmatpush1.bf16.msra.mxu0 %v3096
        %3154 = vmatprep.subr.bf16.mxu0 0
        %3155 = vmatpush1.bf16.msra.mxu0 %v3095
        %3156 = vmatprep.subr.bf16.mxu0 0
        %3157 = vmatpush1.bf16.msra.mxu0 %v3094
        %3158 = vmatprep.subr.bf16.mxu0 0
        %3159 = vmatpush1.bf16.msra.mxu0 %v3093
        %3160 = vmatprep.subr.bf16.mxu0 0
        %3161 = vmatpush1.bf16.msra.mxu0 %v3092
        %3162 = vmatprep.subr.bf16.mxu0 0
        %3163 = vmatpush2.bf16.msra.mxu0 0
        %3164 = vmatprep.subr.bf16.mxu0 0
        %3165 = vmatpush2.bf16.msra.mxu0 0
        %3166 = vmatprep.subr.bf16.mxu0 0
        %3167 = vmatpush2.bf16.msra.mxu0 0
        %3168 = vmatprep.subr.bf16.mxu0 0
        %3169 = vmatpush2.bf16.msra.mxu0 0
        %3170 = vmatprep.subr.bf16.mxu0 0
        %3171 = vmatpush2.bf16.msra.mxu0 0
        %3172 = vmatprep.subr.bf16.mxu0 0
        %3173 = vmatpush2.bf16.msra.mxu0 0
        %3174 = vmatprep.subr.bf16.mxu0 0
        %3175 = vmatpush2.bf16.msra.mxu0 0
        %3176 = vmatprep.subr.bf16.mxu0 0
        %3177 = vmatpush2.bf16.msra.mxu0 0
        %3178 = vmatprep.mubr.bf16.mxu0 0
        %3179 = vmatmul.mubr.bf16.gmra.mxu0 %v3129
        %v3180 = vpop.f32.mrf.mxu0
        %v3181 = vadd.f32 0.0, %v3180
        %v3182 = vpop.f32.mrf.mxu0
        %v3183 = vpop.f32.mrf.mxu0
        %v3184 = vadd.f32 0.0, %v3183
        %v3185 = vpop.f32.mrf.mxu0
        %3186 = vmatprep.mubr.bf16.mxu0 0
        %3187 = vmatmul.mubr.bf16.gmra.mxu0 %v3132
        %v3188 = vpop.f32.mrf.mxu0
        %v3189 = vadd.f32 0.0, %v3188
        %v3190 = vpop.f32.mrf.mxu0
        %v3191 = vpop.f32.mrf.mxu0
        %v3192 = vadd.f32 0.0, %v3191
        %v3193 = vpop.f32.mrf.mxu0
        %3194 = vmatprep.mubr.bf16.mxu0 0
        %3195 = vmatmul.mubr.bf16.gmra.mxu0 %v3135
        %v3196 = vpop.f32.mrf.mxu0
        %v3197 = vadd.f32 0.0, %v3196
        %v3198 = vpop.f32.mrf.mxu0
        %v3199 = vpop.f32.mrf.mxu0
        %v3200 = vadd.f32 0.0, %v3199
        %v3201 = vpop.f32.mrf.mxu0
        %3202 = vmatprep.mubr.bf16.mxu0 0
        %3203 = vmatmul.mubr.bf16.gmra.mxu0 %v3138
        %v3204 = vpop.f32.mrf.mxu0
        %v3205 = vadd.f32 0.0, %v3204
        %v3206 = vpop.f32.mrf.mxu0
        %v3207 = vpop.f32.mrf.mxu0
        %v3208 = vadd.f32 0.0, %v3207
        %v3209 = vpop.f32.mrf.mxu0
        %3210 = vmatprep.mubr.bf16.mxu0 0
        %3211 = vmatmul.mubr.bf16.gmra.mxu0 %v3141
        %v3212 = vpop.f32.mrf.mxu0
        %v3213 = vadd.f32 0.0, %v3212
        %v3214 = vpop.f32.mrf.mxu0
        %v3215 = vpop.f32.mrf.mxu0
        %v3216 = vadd.f32 0.0, %v3215
        %v3217 = vpop.f32.mrf.mxu0
        %3218 = vmatprep.mubr.bf16.mxu0 0
        %3219 = vmatmul.mubr.bf16.gmra.mxu0 %v3144
        %v3220 = vpop.f32.mrf.mxu0
        %v3221 = vadd.f32 0.0, %v3220
        %v3222 = vpop.f32.mrf.mxu0
        %v3223 = vpop.f32.mrf.mxu0
        %v3224 = vadd.f32 0.0, %v3223
        %v3225 = vpop.f32.mrf.mxu0
        %3226 = vdwg.mxu0
        %v3227 = vadd.f32 %v3037, %v3181
        %v3228 = vadd.f32 %v3038, %v3184
        %v3229 = vadd.f32 %v3039, %v3189
        %v3230 = vadd.f32 %v3040, %v3192
        %v3231 = vadd.f32 %v3041, %v3197
        %v3232 = vadd.f32 %v3042, %v3200
        %v3233 = vadd.f32 %v3043, %v3205
        %v3234 = vadd.f32 %v3044, %v3208
        %v3235 = vadd.f32 %v3045, %v3213
        %v3236 = vadd.f32 %v3046, %v3216
        %v3237 = vadd.f32 %v3047, %v3221
        %v3238 = vadd.f32 %v3048, %v3224
        %s3239 = scalar_lea.vmem %s5, 288
        %v3240 = vld [vmem:[%s3239] sm:$0xf]
        %v3241 = vld [vmem:[%s3239 + $0x4] sm:$0xf]
        %v3242 = vld [vmem:[%s3239 + $0x8] sm:$0xf]
        %v3243 = vld [vmem:[%s3239 + $0xc] sm:$0xf]
        %v3244 = vld [vmem:[%s3239 + $0x10] sm:$0xf]
        %v3245 = vld [vmem:[%s3239 + $0x14] sm:$0xf]
        %v3246 = vld [vmem:[%s3239 + $0x18] sm:$0xf]
        %v3247 = vld [vmem:[%s3239 + $0x1c] sm:$0xf]
        %v3248 = vld [vmem:[%s3239 + $0x20] sm:$0xf]
        %v3249 = vld [vmem:[%s3239 + $0x24] sm:$0xf]
        %v3250 = vld [vmem:[%s3239 + $0x28] sm:$0xf]
        %v3251 = vld [vmem:[%s3239 + $0x2c] sm:$0xf]
        %3252 = vrot.lane.b32.xlu0 %v2147, 125
        %v3253 = vpop.permute.xlu0 %3252
        %3254 = vrot.lane.b32.xlu0 %v2148, 125
        %v3255 = vpop.permute.xlu0 %3254
        %3256 = vrot.lane.b32.xlu0 %v2149, 125
        %v3257 = vpop.permute.xlu0 %3256
        %3258 = vrot.lane.b32.xlu0 %v2150, 125
        %v3259 = vpop.permute.xlu0 %3258
        %3260 = vrot.lane.b32.xlu0 %v2151, 125
        %v3261 = vpop.permute.xlu0 %3260
        %3262 = vrot.lane.b32.xlu0 %v2152, 125
        %v3263 = vpop.permute.xlu0 %3262
        %v3265 = vsel %vm1889, %v3253, 0
        %v3268 = vsel %vm1889, %v3255, 0
        %v3271 = vsel %vm1889, %v3257, 0
        %v3274 = vsel %vm1889, %v3259, 0
        %v3277 = vsel %vm1889, %v3261, 0
        %v3280 = vsel %vm1889, %v3263, 0
        %v3282 = vsel %vm1907, %v3265, 0
        %v3283 = vsel %vm1907, %v3268, 0
        %v3284 = vsel %vm1907, %v3271, 0
        %v3285 = vsel %vm1907, %v3274, 0
        %v3286 = vsel %vm1907, %v3277, 0
        %v3287 = vsel %vm1907, %v3280, 0
        %v3300 = vunpack.c.l.b16 %v3240
        %v3301 = vunpack.c.l.b16 %v3241
        %v3302 = vunpack.c.l.b16 %v3242
        %v3303 = vunpack.c.l.b16 %v3243
        %v3304 = vunpack.c.l.b16 %v3244
        %v3305 = vunpack.c.l.b16 %v3245
        %v3306 = vunpack.c.l.b16 %v3246
        %v3307 = vunpack.c.l.b16 %v3247
        %v3308 = vunpack.c.l.b16 %v3248
        %v3309 = vunpack.c.l.b16 %v3249
        %v3310 = vunpack.c.l.b16 %v3250
        %v3311 = vunpack.c.l.b16 %v3251
        %v3312 = vpack.c.b16 %v3301, %v3300
        %v3313 = vpack.c.b16 %v3303, %v3302
        %v3314 = vpack.c.b16 %v3305, %v3304
        %v3315 = vpack.c.b16 %v3307, %v3306
        %v3316 = vpack.c.b16 %v3309, %v3308
        %v3317 = vpack.c.b16 %v3311, %v3310
        %v3319 = vsel %vm2286, %v3312, 0
        %v3322 = vsel %vm2286, %v3313, 0
        %v3325 = vsel %vm2286, %v3314, 0
        %v3328 = vsel %vm2286, %v3315, 0
        %v3331 = vsel %vm2286, %v3316, 0
        %v3334 = vsel %vm2286, %v3317, 0
        %3336 = vmatprep.subr.bf16.mxu0 0
        %3337 = vmatpush1.bf16.msra.mxu0 0
        %3338 = vmatprep.subr.bf16.mxu0 0
        %3339 = vmatpush1.bf16.msra.mxu0 0
        %3340 = vmatprep.subr.bf16.mxu0 0
        %3341 = vmatpush1.bf16.msra.mxu0 %v3287
        %3342 = vmatprep.subr.bf16.mxu0 0
        %3343 = vmatpush1.bf16.msra.mxu0 %v3286
        %3344 = vmatprep.subr.bf16.mxu0 0
        %3345 = vmatpush1.bf16.msra.mxu0 %v3285
        %3346 = vmatprep.subr.bf16.mxu0 0
        %3347 = vmatpush1.bf16.msra.mxu0 %v3284
        %3348 = vmatprep.subr.bf16.mxu0 0
        %3349 = vmatpush1.bf16.msra.mxu0 %v3283
        %3350 = vmatprep.subr.bf16.mxu0 0
        %3351 = vmatpush1.bf16.msra.mxu0 %v3282
        %3352 = vmatprep.subr.bf16.mxu0 0
        %3353 = vmatpush2.bf16.msra.mxu0 0
        %3354 = vmatprep.subr.bf16.mxu0 0
        %3355 = vmatpush2.bf16.msra.mxu0 0
        %3356 = vmatprep.subr.bf16.mxu0 0
        %3357 = vmatpush2.bf16.msra.mxu0 0
        %3358 = vmatprep.subr.bf16.mxu0 0
        %3359 = vmatpush2.bf16.msra.mxu0 0
        %3360 = vmatprep.subr.bf16.mxu0 0
        %3361 = vmatpush2.bf16.msra.mxu0 0
        %3362 = vmatprep.subr.bf16.mxu0 0
        %3363 = vmatpush2.bf16.msra.mxu0 0
        %3364 = vmatprep.subr.bf16.mxu0 0
        %3365 = vmatpush2.bf16.msra.mxu0 0
        %3366 = vmatprep.subr.bf16.mxu0 0
        %3367 = vmatpush2.bf16.msra.mxu0 0
        %3368 = vmatprep.mubr.bf16.mxu0 0
        %3369 = vmatmul.mubr.bf16.gmra.mxu0 %v3319
        %v3370 = vpop.f32.mrf.mxu0
        %v3371 = vadd.f32 0.0, %v3370
        %v3372 = vpop.f32.mrf.mxu0
        %v3373 = vpop.f32.mrf.mxu0
        %v3374 = vadd.f32 0.0, %v3373
        %v3375 = vpop.f32.mrf.mxu0
        %3376 = vmatprep.mubr.bf16.mxu0 0
        %3377 = vmatmul.mubr.bf16.gmra.mxu0 %v3322
        %v3378 = vpop.f32.mrf.mxu0
        %v3379 = vadd.f32 0.0, %v3378
        %v3380 = vpop.f32.mrf.mxu0
        %v3381 = vpop.f32.mrf.mxu0
        %v3382 = vadd.f32 0.0, %v3381
        %v3383 = vpop.f32.mrf.mxu0
        %3384 = vmatprep.mubr.bf16.mxu0 0
        %3385 = vmatmul.mubr.bf16.gmra.mxu0 %v3325
        %v3386 = vpop.f32.mrf.mxu0
        %v3387 = vadd.f32 0.0, %v3386
        %v3388 = vpop.f32.mrf.mxu0
        %v3389 = vpop.f32.mrf.mxu0
        %v3390 = vadd.f32 0.0, %v3389
        %v3391 = vpop.f32.mrf.mxu0
        %3392 = vmatprep.mubr.bf16.mxu0 0
        %3393 = vmatmul.mubr.bf16.gmra.mxu0 %v3328
        %v3394 = vpop.f32.mrf.mxu0
        %v3395 = vadd.f32 0.0, %v3394
        %v3396 = vpop.f32.mrf.mxu0
        %v3397 = vpop.f32.mrf.mxu0
        %v3398 = vadd.f32 0.0, %v3397
        %v3399 = vpop.f32.mrf.mxu0
        %3400 = vmatprep.mubr.bf16.mxu0 0
        %3401 = vmatmul.mubr.bf16.gmra.mxu0 %v3331
        %v3402 = vpop.f32.mrf.mxu0
        %v3403 = vadd.f32 0.0, %v3402
        %v3404 = vpop.f32.mrf.mxu0
        %v3405 = vpop.f32.mrf.mxu0
        %v3406 = vadd.f32 0.0, %v3405
        %v3407 = vpop.f32.mrf.mxu0
        %3408 = vmatprep.mubr.bf16.mxu0 0
        %3409 = vmatmul.mubr.bf16.gmra.mxu0 %v3334
        %v3410 = vpop.f32.mrf.mxu0
        %v3411 = vadd.f32 0.0, %v3410
        %v3412 = vpop.f32.mrf.mxu0
        %v3413 = vpop.f32.mrf.mxu0
        %v3414 = vadd.f32 0.0, %v3413
        %v3415 = vpop.f32.mrf.mxu0
        %3416 = vdwg.mxu0
        %v3417 = vadd.f32 %v3227, %v3371
        %v3418 = vadd.f32 %v3228, %v3374
        %v3419 = vadd.f32 %v3229, %v3379
        %v3420 = vadd.f32 %v3230, %v3382
        %v3421 = vadd.f32 %v3231, %v3387
        %v3422 = vadd.f32 %v3232, %v3390
        %v3423 = vadd.f32 %v3233, %v3395
        %v3424 = vadd.f32 %v3234, %v3398
        %v3425 = vadd.f32 %v3235, %v3403
        %v3426 = vadd.f32 %v3236, %v3406
        %v3427 = vadd.f32 %v3237, %v3411
        %v3428 = vadd.f32 %v3238, %v3414
        %v3429 = vld [vmem:[%s6] sm:$0xff]
        %v3430 = vld [vmem:[%s6 + $0x8] sm:$0xff]
        %v3431 = vld [vmem:[%s6 + $0x10] sm:$0xff]
        %v3432 = vld [vmem:[%s6 + $0x18] sm:$0xff]
        %v3433 = vld [vmem:[%s6 + $0x20] sm:$0xff]
        %v3434 = vld [vmem:[%s6 + $0x28] sm:$0xff]
        %v3435 = vld [vmem:[%s6 + $0x30] sm:$0xff]
        %v3436 = vld [vmem:[%s6 + $0x38] sm:$0xff]
        %v3437 = vld [vmem:[%s6 + $0x40] sm:$0xff]
        %v3438 = vld [vmem:[%s6 + $0x48] sm:$0xff]
        %v3439 = vld [vmem:[%s6 + $0x50] sm:$0xff]
        %v3440 = vld [vmem:[%s6 + $0x58] sm:$0xff]
        %3442 = vset.pattern.permute.xlu0 0
        %3443 = vperm.xlu0 %3442, %v3429
        %v3444 = vpop.permute.xlu0 %3443
        %3447 = vset.pattern.permute.xlu0 0
        %3448 = vperm.xlu0 %3447, %v3430
        %v3449 = vpop.permute.xlu0 %3448
        %3452 = vset.pattern.permute.xlu0 0
        %3453 = vperm.xlu0 %3452, %v3431
        %v3454 = vpop.permute.xlu0 %3453
        %3457 = vset.pattern.permute.xlu0 0
        %3458 = vperm.xlu0 %3457, %v3432
        %v3459 = vpop.permute.xlu0 %3458
        %3462 = vset.pattern.permute.xlu0 0
        %3463 = vperm.xlu0 %3462, %v3433
        %v3464 = vpop.permute.xlu0 %3463
        %3467 = vset.pattern.permute.xlu0 0
        %3468 = vperm.xlu0 %3467, %v3434
        %v3469 = vpop.permute.xlu0 %3468
        %3472 = vset.pattern.permute.xlu0 0
        %3473 = vperm.xlu0 %3472, %v3435
        %v3474 = vpop.permute.xlu0 %3473
        %3477 = vset.pattern.permute.xlu0 0
        %3478 = vperm.xlu0 %3477, %v3436
        %v3479 = vpop.permute.xlu0 %3478
        %3482 = vset.pattern.permute.xlu0 0
        %3483 = vperm.xlu0 %3482, %v3437
        %v3484 = vpop.permute.xlu0 %3483
        %3487 = vset.pattern.permute.xlu0 0
        %3488 = vperm.xlu0 %3487, %v3438
        %v3489 = vpop.permute.xlu0 %3488
        %3492 = vset.pattern.permute.xlu0 0
        %3493 = vperm.xlu0 %3492, %v3439
        %v3494 = vpop.permute.xlu0 %3493
        %3497 = vset.pattern.permute.xlu0 0
        %3498 = vperm.xlu0 %3497, %v3440
        %v3499 = vpop.permute.xlu0 %3498
        %v3501 = vadd.f32 %v3417, %v3444
        %v3502 = vadd.f32 %v3418, %v3449
        %v3503 = vadd.f32 %v3419, %v3454
        %v3504 = vadd.f32 %v3420, %v3459
        %v3505 = vadd.f32 %v3421, %v3464
        %v3506 = vadd.f32 %v3422, %v3469
        %v3507 = vadd.f32 %v3423, %v3474
        %v3508 = vadd.f32 %v3424, %v3479
        %v3509 = vadd.f32 %v3425, %v3484
        %v3510 = vadd.f32 %v3426, %v3489
        %v3511 = vadd.f32 %v3427, %v3494
        %v3512 = vadd.f32 %v3428, %v3499
        %v3513 = vadd.f32 %v3501, %v867
        %v3514 = vadd.f32 %v3502, %v868
        %v3515 = vadd.f32 %v3503, %v869
        %v3516 = vadd.f32 %v3504, %v870
        %v3517 = vmax.f32 %v3513, 0.0
        %v3518 = vmax.f32 %v3514, 0.0
        %v3519 = vmax.f32 %v3515, 0.0
        %v3520 = vmax.f32 %v3516, 0.0
        %v3521 = vadd.f32 %v3505, %v867
        %v3522 = vadd.f32 %v3506, %v868
        %v3523 = vadd.f32 %v3507, %v869
        %v3524 = vadd.f32 %v3508, %v870
        %v3525 = vmax.f32 %v3521, 0.0
        %v3526 = vmax.f32 %v3522, 0.0
        %v3527 = vmax.f32 %v3523, 0.0
        %v3528 = vmax.f32 %v3524, 0.0
        %v3529 = vadd.f32 %v3509, %v867
        %v3530 = vadd.f32 %v3510, %v868
        %v3531 = vadd.f32 %v3511, %v869
        %v3532 = vadd.f32 %v3512, %v870
        %v3533 = vmax.f32 %v3529, 0.0
        %v3534 = vmax.f32 %v3530, 0.0
        %v3535 = vmax.f32 %v3531, 0.0
        %v3536 = vmax.f32 %v3532, 0.0
        %v3537 = vld [vmem:[%s7] sm:$0xf]
        %v3538 = vld [vmem:[%s7 + $0x4] sm:$0xf]
        %v3539 = vld [vmem:[%s7 + $0x8] sm:$0xf]
        %v3540 = vld [vmem:[%s7 + $0xc] sm:$0xf]
        %v3541 = vpack.c.bf16 %v3518, %v3517
        %v3542 = vpack.c.bf16 %v3520, %v3519
        %v3543 = vpack.c.bf16 %v3526, %v3525
        %v3544 = vpack.c.bf16 %v3528, %v3527
        %v3545 = vpack.c.bf16 %v3534, %v3533
        %v3546 = vpack.c.bf16 %v3536, %v3535
        %v3547 = vld [vmem:[%s8] sm:$0xff]
        %v3548 = vld [vmem:[%s8 + $0x8] sm:$0xff]
        %v3549 = vld [vmem:[%s8 + $0x10] sm:$0xff]
        %v3550 = vld [vmem:[%s8 + $0x18] sm:$0xff]
        %3552 = vset.pattern.permute.xlu0 0
        %3553 = vperm.xlu0 %3552, %v3547
        %v3554 = vpop.permute.xlu0 %3553
        %3557 = vset.pattern.permute.xlu0 0
        %3558 = vperm.xlu0 %3557, %v3548
        %v3559 = vpop.permute.xlu0 %3558
        %3562 = vset.pattern.permute.xlu0 0
        %3563 = vperm.xlu0 %3562, %v3549
        %v3564 = vpop.permute.xlu0 %3563
        %3567 = vset.pattern.permute.xlu0 0
        %3568 = vperm.xlu0 %3567, %v3550
        %v3569 = vpop.permute.xlu0 %3568
        %v3575 = vunpack.c.l.b16 %v3537
        %v3576 = vunpack.c.l.b16 %v3538
        %v3577 = vunpack.c.l.b16 %v3539
        %v3578 = vunpack.c.l.b16 %v3540
        %v3579 = vpack.c.b16 %v3576, %v3575
        %v3580 = vpack.c.b16 %v3578, %v3577
        %v3582 = vsel %vm2286, %v3579, 0
        %v3585 = vsel %vm2286, %v3580, 0
        %3587 = vmatprep.subr.bf16.mxu0 0
        %3588 = vmatpush1.bf16.msra.mxu0 0
        %3589 = vmatprep.subr.bf16.mxu0 0
        %3590 = vmatpush1.bf16.msra.mxu0 0
        %3591 = vmatprep.subr.bf16.mxu0 0
        %3592 = vmatpush1.bf16.msra.mxu0 %v3546
        %3593 = vmatprep.subr.bf16.mxu0 0
        %3594 = vmatpush1.bf16.msra.mxu0 %v3545
        %3595 = vmatprep.subr.bf16.mxu0 0
        %3596 = vmatpush1.bf16.msra.mxu0 %v3544
        %3597 = vmatprep.subr.bf16.mxu0 0
        %3598 = vmatpush1.bf16.msra.mxu0 %v3543
        %3599 = vmatprep.subr.bf16.mxu0 0
        %3600 = vmatpush1.bf16.msra.mxu0 %v3542
        %3601 = vmatprep.subr.bf16.mxu0 0
        %3602 = vmatpush1.bf16.msra.mxu0 %v3541
        %3603 = vmatprep.subr.bf16.mxu0 0
        %3604 = vmatpush2.bf16.msra.mxu0 0
        %3605 = vmatprep.subr.bf16.mxu0 0
        %3606 = vmatpush2.bf16.msra.mxu0 0
        %3607 = vmatprep.subr.bf16.mxu0 0
        %3608 = vmatpush2.bf16.msra.mxu0 0
        %3609 = vmatprep.subr.bf16.mxu0 0
        %3610 = vmatpush2.bf16.msra.mxu0 0
        %3611 = vmatprep.subr.bf16.mxu0 0
        %3612 = vmatpush2.bf16.msra.mxu0 0
        %3613 = vmatprep.subr.bf16.mxu0 0
        %3614 = vmatpush2.bf16.msra.mxu0 0
        %3615 = vmatprep.subr.bf16.mxu0 0
        %3616 = vmatpush2.bf16.msra.mxu0 0
        %3617 = vmatprep.subr.bf16.mxu0 0
        %3618 = vmatpush2.bf16.msra.mxu0 0
        %3619 = vmatprep.mubr.bf16.mxu0 0
        %3620 = vmatmul.mubr.bf16.gmra.mxu0 %v3582
        %v3621 = vpop.f32.mrf.mxu0
        %v3622 = vadd.f32 %v3554, %v3621
        %v3623 = vpop.f32.mrf.mxu0
        %v3624 = vpop.f32.mrf.mxu0
        %v3625 = vadd.f32 %v3559, %v3624
        %v3626 = vpop.f32.mrf.mxu0
        %3627 = vmatprep.mubr.bf16.mxu0 0
        %3628 = vmatmul.mubr.bf16.gmra.mxu0 %v3585
        %v3629 = vpop.f32.mrf.mxu0
        %v3630 = vadd.f32 %v3564, %v3629
        %v3631 = vpop.f32.mrf.mxu0
        %v3632 = vpop.f32.mrf.mxu0
        %v3633 = vadd.f32 %v3569, %v3632
        %v3634 = vpop.f32.mrf.mxu0
        %3635 = vdwg.mxu0
        %v3636 = vmax.f32 %v3622, 0.0
        %v3637 = vmax.f32 %v3625, 0.0
        %v3638 = vmax.f32 %v3630, 0.0
        %v3639 = vmax.f32 %v3633, 0.0
        %v3640 = vpack.c.bf16 %v3637, %v3636
        %v3641 = vpack.c.bf16 %v3639, %v3638
        %v3642 = vld [vmem:[%s9] sm:$0x3]
        %3645 = vrot.lane.b32.xlu0 %v3640, 1
        %v3646 = vpop.permute.xlu0 %3645
        %3647 = vrot.lane.b32.xlu0 %v3641, 1
        %v3648 = vpop.permute.xlu0 %3647
        %v3650 = vsel %vm433, 0, %v3646
        %v3653 = vsel %vm433, 0, %v3648
        %v3655 = vsel %vm1230, %v3650, 0
        %v3656 = vsel %vm1230, %v3653, 0
        %s3657 = scalar_lea.vmem %s9, 2
        %v3658 = vld [vmem:[%s3657] sm:$0x3]
        %v3660 = vsel %vm973, %v3658, 0
        %3662 = vmatprep.subr.bf16.mxu0 0
        %3663 = vmatpush1.bf16.msra.mxu0 0
        %3664 = vmatprep.subr.bf16.mxu0 0
        %3665 = vmatpush1.bf16.msra.mxu0 0
        %3666 = vmatprep.subr.bf16.mxu0 0
        %3667 = vmatpush1.bf16.msra.mxu0 0
        %3668 = vmatprep.subr.bf16.mxu0 0
        %3669 = vmatpush1.bf16.msra.mxu0 0
        %3670 = vmatprep.subr.bf16.mxu0 0
        %3671 = vmatpush1.bf16.msra.mxu0 0
        %3672 = vmatprep.subr.bf16.mxu0 0
        %3673 = vmatpush1.bf16.msra.mxu0 0
        %3674 = vmatprep.subr.bf16.mxu0 0
        %3675 = vmatpush1.bf16.msra.mxu0 %v3641
        %3676 = vmatprep.subr.bf16.mxu0 0
        %3677 = vmatpush1.bf16.msra.mxu0 %v3640
        %3678 = vmatprep.subr.bf16.mxu0 0
        %3679 = vmatpush2.bf16.msra.mxu0 0
        %3680 = vmatprep.subr.bf16.mxu0 0
        %3681 = vmatpush2.bf16.msra.mxu0 0
        %3682 = vmatprep.subr.bf16.mxu0 0
        %3683 = vmatpush2.bf16.msra.mxu0 0
        %3684 = vmatprep.subr.bf16.mxu0 0
        %3685 = vmatpush2.bf16.msra.mxu0 0
        %3686 = vmatprep.subr.bf16.mxu0 0
        %3687 = vmatpush2.bf16.msra.mxu0 0
        %3688 = vmatprep.subr.bf16.mxu0 0
        %3689 = vmatpush2.bf16.msra.mxu0 0
        %3690 = vmatprep.subr.bf16.mxu0 0
        %3691 = vmatpush2.bf16.msra.mxu0 0
        %3692 = vmatprep.subr.bf16.mxu0 0
        %3693 = vmatpush2.bf16.msra.mxu0 0
        %3694 = vmatprep.mubr.bf16.mxu0 0
        %3695 = vmatmul.mubr.bf16.gmra.mxu0 %v3660
        %v3696 = vpop.f32.mrf.mxu0
        %v3697 = vadd.f32 0.0, %v3696
        %v3698 = vpop.f32.mrf.mxu0
        %v3699 = vpop.f32.mrf.mxu0
        %v3700 = vpop.f32.mrf.mxu0
        %3701 = vdwg.mxu0
        %v3703 = vsel %vm973, %v3642, 0
        %3705 = vmatprep.subr.bf16.mxu0 0
        %3706 = vmatpush1.bf16.msra.mxu0 0
        %3707 = vmatprep.subr.bf16.mxu0 0
        %3708 = vmatpush1.bf16.msra.mxu0 0
        %3709 = vmatprep.subr.bf16.mxu0 0
        %3710 = vmatpush1.bf16.msra.mxu0 0
        %3711 = vmatprep.subr.bf16.mxu0 0
        %3712 = vmatpush1.bf16.msra.mxu0 0
        %3713 = vmatprep.subr.bf16.mxu0 0
        %3714 = vmatpush1.bf16.msra.mxu0 0
        %3715 = vmatprep.subr.bf16.mxu0 0
        %3716 = vmatpush1.bf16.msra.mxu0 0
        %3717 = vmatprep.subr.bf16.mxu0 0
        %3718 = vmatpush1.bf16.msra.mxu0 %v3656
        %3719 = vmatprep.subr.bf16.mxu0 0
        %3720 = vmatpush1.bf16.msra.mxu0 %v3655
        %3721 = vmatprep.subr.bf16.mxu0 0
        %3722 = vmatpush2.bf16.msra.mxu0 0
        %3723 = vmatprep.subr.bf16.mxu0 0
        %3724 = vmatpush2.bf16.msra.mxu0 0
        %3725 = vmatprep.subr.bf16.mxu0 0
        %3726 = vmatpush2.bf16.msra.mxu0 0
        %3727 = vmatprep.subr.bf16.mxu0 0
        %3728 = vmatpush2.bf16.msra.mxu0 0
        %3729 = vmatprep.subr.bf16.mxu0 0
        %3730 = vmatpush2.bf16.msra.mxu0 0
        %3731 = vmatprep.subr.bf16.mxu0 0
        %3732 = vmatpush2.bf16.msra.mxu0 0
        %3733 = vmatprep.subr.bf16.mxu0 0
        %3734 = vmatpush2.bf16.msra.mxu0 0
        %3735 = vmatprep.subr.bf16.mxu0 0
        %3736 = vmatpush2.bf16.msra.mxu0 0
        %3737 = vmatprep.mubr.bf16.mxu0 0
        %3738 = vmatmul.mubr.bf16.gmra.mxu0 %v3703
        %v3739 = vpop.f32.mrf.mxu0
        %v3740 = vadd.f32 %v3697, %v3739
        %v3741 = vpop.f32.mrf.mxu0
        %v3742 = vpop.f32.mrf.mxu0
        %v3743 = vpop.f32.mrf.mxu0
        %3744 = vdwg.mxu0
        %s3745 = scalar_lea.vmem %s9, 4
        %v3746 = vld [vmem:[%s3745] sm:$0x3]
        %3747 = vrot.lane.b32.xlu0 %v3640, 127
        %v3748 = vpop.permute.xlu0 %3747
        %3749 = vrot.lane.b32.xlu0 %v3641, 127
        %v3750 = vpop.permute.xlu0 %3749
        %v3752 = vsel %vm666, %v3748, 0
        %v3755 = vsel %vm666, %v3750, 0
        %v3757 = vsel %vm1556, %v3752, 0
        %v3758 = vsel %vm1556, %v3755, 0
        %v3760 = vsel %vm973, %v3746, 0
        %3762 = vmatprep.subr.bf16.mxu0 0
        %3763 = vmatpush1.bf16.msra.mxu0 0
        %3764 = vmatprep.subr.bf16.mxu0 0
        %3765 = vmatpush1.bf16.msra.mxu0 0
        %3766 = vmatprep.subr.bf16.mxu0 0
        %3767 = vmatpush1.bf16.msra.mxu0 0
        %3768 = vmatprep.subr.bf16.mxu0 0
        %3769 = vmatpush1.bf16.msra.mxu0 0
        %3770 = vmatprep.subr.bf16.mxu0 0
        %3771 = vmatpush1.bf16.msra.mxu0 0
        %3772 = vmatprep.subr.bf16.mxu0 0
        %3773 = vmatpush1.bf16.msra.mxu0 0
        %3774 = vmatprep.subr.bf16.mxu0 0
        %3775 = vmatpush1.bf16.msra.mxu0 %v3758
        %3776 = vmatprep.subr.bf16.mxu0 0
        %3777 = vmatpush1.bf16.msra.mxu0 %v3757
        %3778 = vmatprep.subr.bf16.mxu0 0
        %3779 = vmatpush2.bf16.msra.mxu0 0
        %3780 = vmatprep.subr.bf16.mxu0 0
        %3781 = vmatpush2.bf16.msra.mxu0 0
        %3782 = vmatprep.subr.bf16.mxu0 0
        %3783 = vmatpush2.bf16.msra.mxu0 0
        %3784 = vmatprep.subr.bf16.mxu0 0
        %3785 = vmatpush2.bf16.msra.mxu0 0
        %3786 = vmatprep.subr.bf16.mxu0 0
        %3787 = vmatpush2.bf16.msra.mxu0 0
        %3788 = vmatprep.subr.bf16.mxu0 0
        %3789 = vmatpush2.bf16.msra.mxu0 0
        %3790 = vmatprep.subr.bf16.mxu0 0
        %3791 = vmatpush2.bf16.msra.mxu0 0
        %3792 = vmatprep.subr.bf16.mxu0 0
        %3793 = vmatpush2.bf16.msra.mxu0 0
        %3794 = vmatprep.mubr.bf16.mxu0 0
        %3795 = vmatmul.mubr.bf16.gmra.mxu0 %v3760
        %v3796 = vpop.f32.mrf.mxu0
        %v3797 = vadd.f32 0.0, %v3796
        %v3798 = vpop.f32.mrf.mxu0
        %v3799 = vpop.f32.mrf.mxu0
        %v3800 = vpop.f32.mrf.mxu0
        %3801 = vdwg.mxu0
        %v3802 = vadd.f32 %v3740, %v3797
        %v3803 = vld [vmem:[%s10] sm:$0xf]
        %3805 = vset.pattern.permute.xlu0 0
        %3806 = vperm.xlu0 %3805, %v3803
        %v3807 = vpop.permute.xlu0 %3806
        %v3809 = vadd.f32 %v3802, %v3807
        %vm3810 = vcmask 125952
        %3811 = vst.msk [vmem:[%s377] sm:$0xf] %vm3810, %v3809
        %s3812 = sand.u32 %s269, 1
        %s3813 = scalar_lea.sflag [#allocation3], %s3812
        %s3814 = sand.u32 %s269, 1
        %s3815 = smul.addr %s3814, 4
        %s3816 = scalar_lea.vmem [#allocation2], %s3815
        // Predicated region
        $region65: #{tpu_custom_call.1} parent=63 // pred_check
          %p3817 = pneg %p279
        $region66: #{tpu_custom_call.1} parent=63 // pred_check_branch
          %3819 = sbr.rel (%p3817) target = $region68
        $region67: #{tpu_custom_call.1} parent=63 // pred_region
          %s3821 = ssub.s32 64, 64
          %3822 = vsyncadd %s3813, %s3821
          %s3823 = smul.addr %s25, 64
          %s3824 = scalar_lea.hbm %s11, %s3823
          %s3826 = sshll.u32 %s3816, 4
          %s3827 = int_to_ptr.vmem [resolvable:$true] %s3826
          %3829 = dma.vmem_to_hbm [thread:$0]  %s3827, 64, %s3824, %s3813
        $region68: #{tpu_custom_call.1} parent=63 // pred_fallthru
          _
      $region64: #{tpu_custom_call.1} parent=5 // pred_fallthru
        _
      %p3830 = scmp.le.s32.totalorder 2, %s20
      // Predicated region
      $region69: #{tpu_custom_call.1} parent=5 // pred_check
        %p3831 = pneg %p3830
      $region70: #{tpu_custom_call.1} parent=5 // pred_check_branch
        %3833 = sbr.rel (%p3831) target = $region72
      $region71: #{tpu_custom_call.1} parent=5 // pred_region
        %s3834 = ssub.s32 %s20, 2
        // Predicated region
        $region73: #{tpu_custom_call.1} parent=71 // pred_check
          %p3835 = pneg %p285
        $region74: #{tpu_custom_call.1} parent=71 // pred_check_branch
          %3837 = sbr.rel (%p3835) target = $region76
        $region75: #{tpu_custom_call.1} parent=71 // pred_region
          %s3838 = sand.u32 %s270, 1
          %s3839 = scalar_lea.sflag [#allocation3], %s3838
          %s3840 = sand.u32 %s270, 1
          %s3841 = smul.addr %s3840, 4
          %s3842 = scalar_lea.vmem [#allocation2], %s3841
          %3843 = dma.done %s3839, 64
        $region76: #{tpu_custom_call.1} parent=71 // pred_fallthru
          _
      $region72: #{tpu_custom_call.1} parent=5 // pred_fallthru
        _
    $region6: #{tpu_custom_call.1} parent=1 // loop_footer
      %s24 = sadd.s32 1, %s20
    $region7: #{tpu_custom_call.1} parent=1 // loop_footer_branch
      %19 = sbr.rel target = $region3
    $region8: #{tpu_custom_call.1} parent=1 // loop_exit
      _
    %3844 = vsyncpa [#allocation3], 1
    %s3845 = scalar_lea.sflag [#allocation3], 1
    %3846 = vsyncpa %s3845, 1

</llo_original>
